<compile_context>
chip_gen: v5e
topology: v5e:2x2
jax: 0.10.0
libtpu: 0.0.40
codegen_flags: <defaults>
</compile_context>

<pallas_src>
import functools

import jax
import jax.numpy as jnp
from jax.experimental import pallas as pl
from jax.experimental.pallas import tpu as pltpu

HID = 128            # hidden_dim of the module
CATT = 2 * HID       # 256 = concat of h and x

_VMEM_LIMIT = 40 * 1024 * 1024   # <= 40 MiB: headroom on the 64 MiB v7x part
_TARGET_TILE_ROWS = 1024         # matmul rows per tile (two-pass fallback)
_FUSED_MAX_ROWS = 3072           # fused whole-image path only when H*W <= this
                                 # (conservative vs ~8 KiB/pixel f32 temporaries)


def _cdiv(a, b):
    return -(-a // b)


# ---------------------------------------------------------------------------
# Shared in-kernel building blocks.
# ---------------------------------------------------------------------------
def _conv3(tap_y, cout, bias, *, lead, rows, inner, first_m, last_m, flat_mask):
    """tap_y: (rows, 3*cout) f32, taps fused along the output dim.
    out[l] = tap0[l-1] + tap1[l] + tap2[l+1] + bias   (zeros at the edges),
    where l steps along the conv axis with flattened-row stride `inner`."""
    y0 = tap_y[:, :cout]
    y1 = tap_y[:, cout:2 * cout]
    y2 = tap_y[:, 2 * cout:]
    t0 = pltpu.roll(y0, shift=inner, axis=0)          # brings row l-1 to l
    t2 = pltpu.roll(y2, shift=rows - inner, axis=0)   # brings row l+1 to l
    oshape = lead + (cout,)
    if flat_mask:
        # masks live in flattened (rows, 1) space (vertical direction)
        t0 = jnp.where(first_m, 0.0, t0).reshape(oshape)
        t2 = jnp.where(last_m, 0.0, t2).reshape(oshape)
    else:
        # masks have shape (conv_len, 1) and broadcast against the conv axis
        # (second-minor dim) of the lead-shaped taps (horizontal direction)
        t0 = jnp.where(first_m, 0.0, t0.reshape(oshape))
        t2 = jnp.where(last_m, 0.0, t2.reshape(oshape))
    return y1.reshape(oshape) + t0 + t2 + bias


def _half_step(h_bf, x_bf, wzr, bzr, wqh, wqx, bq, *,
               lead, rows, inner, first_m, last_m, flat_mask):
    """One GRU half-step (one separable conv direction).
    h_bf, x_bf: (rows, 128) bf16; weights bf16, biases f32.
    Returns the new hidden state with shape lead + (128,), f32."""
    kw = dict(lead=lead, rows=rows, inner=inner,
              first_m=first_m, last_m=last_m, flat_mask=flat_mask)

    # [z|r] gates: one K=256 bf16 matmul, taps fused along N (N = 768).
    hx_bf = jnp.concatenate([h_bf, x_bf], axis=-1)           # (rows, 256) bf16
    zr_taps = jnp.dot(hx_bf, wzr, preferred_element_type=jnp.float32)
    zr = _conv3(zr_taps, 2 * HID, bzr, **kw)
    # sigmoid via tanh: stays on the EUP slot instead of an exact f32 divide.
    z = 0.5 * (jnp.tanh(0.5 * zr[..., :HID]) + 1.0)
    r = 0.5 * (jnp.tanh(0.5 * zr[..., HID:]) + 1.0)

    # q gate: the x-part has no dependence on z/r (overlaps the sigmoid chain
    # on the MXU); the (r*h)-part follows.
    qx_taps = jnp.dot(x_bf, wqx, preferred_element_type=jnp.float32)
    h32 = h_bf.astype(jnp.float32).reshape(lead + (HID,))
    rh_bf = (r * h32).reshape(rows, HID).astype(jnp.bfloat16)
    qh_taps = jnp.dot(rh_bf, wqh, preferred_element_type=jnp.float32)
    q = jnp.tanh(_conv3(qx_taps + qh_taps, HID, bq, **kw))

    # h_new = (1 - z) * h + z * q  ==  h + z * (q - h)
    return h32 + z * (q - h32)


def _flat_bf16(v, rows):
    """Flatten a lead+(128,) bf16 block to (rows, 128).  bf16 packs 2 rows per
    sublane word, so a free relabel needs second-minor % 16 == 0; otherwise
    round-trip the reshape through f32 (aligned at 8, known-good lowering)."""
    if v.shape[-2] % 16 == 0:
        return v.reshape(rows, v.shape[-1])
    return v.astype(jnp.float32).reshape(rows, v.shape[-1]).astype(jnp.bfloat16)


# ---------------------------------------------------------------------------
# Kernels.
# ---------------------------------------------------------------------------
def _fused_kernel(h_ref, x_ref,
                  wzr1_ref, bzr1_ref, wqh1_ref, wqx1_ref, bq1_ref,
                  wzr2_ref, bzr2_ref, wqh2_ref, wqx2_ref, bq2_ref,
                  out_ref):
    """Both half-steps on one whole-image (1, H, W, 128) bf16 block."""
    lead = h_ref.shape[:-1]                  # (1, H, W)
    H, W = lead[1], lead[2]
    rows = H * W

    h_bf = _flat_bf16(h_ref[...], rows)
    x_bf = _flat_bf16(x_ref[...], rows)

    # half-step 1: (1,3) conv along W (stride 1 in flattened rows).
    w_idx = jax.lax.broadcasted_iota(jnp.int32, (W, 1), 0)
    h1 = _half_step(h_bf, x_bf,
                    wzr1_ref[...], bzr1_ref[0], wqh1_ref[...], wqx1_ref[...],
                    bq1_ref[0],
                    lead=lead, rows=rows, inner=1,
                    first_m=(w_idx == 0), last_m=(w_idx == W - 1),
                    flat_mask=False)

    # half-step 2: (3,1) conv along H (stride W in flattened rows).
    h1_bf = h1.reshape(rows, HID).astype(jnp.bfloat16)
    r_idx = jax.lax.broadcasted_iota(jnp.int32, (rows, 1), 0)
    h2 = _half_step(h1_bf, x_bf,
                    wzr2_ref[...], bzr2_ref[0], wqh2_ref[...], wqx2_ref[...],
                    bq2_ref[0],
                    lead=lead, rows=rows, inner=W,
                    first_m=(r_idx < W), last_m=(r_idx >= (H - 1) * W),
                    flat_mask=True)

    out_ref[...] = h2.astype(out_ref.dtype)


def _pass_w_kernel(h_ref, x_ref, wzr_ref, bzr_ref, wqh_ref, wqx_ref, bq_ref,
                   out_ref):
    """(1,3) half-step on a (bm, W, 128) row tile (conv along axis 1)."""
    lead = h_ref.shape[:-1]
    W = lead[1]
    rows = lead[0] * W
    h_bf = _flat_bf16(h_ref[...], rows)
    x_bf = _flat_bf16(x_ref[...], rows)
    w_idx = jax.lax.broadcasted_iota(jnp.int32, (W, 1), 0)
    h1 = _half_step(h_bf, x_bf, wzr_ref[...], bzr_ref[0], wqh_ref[...],
                    wqx_ref[...], bq_ref[0],
                    lead=lead, rows=rows, inner=1,
                    first_m=(w_idx == 0), last_m=(w_idx == W - 1),
                    flat_mask=False)
    out_ref[...] = h1.astype(out_ref.dtype)


def _pass_h_kernel(h_ref, x_ref, wzr_ref, bzr_ref, wqh_ref, wqx_ref, bq_ref,
                   out_ref):
    """(3,1) half-step on a (1, H, tw, 128) NHWC tile (conv along axis 1)."""
    lead = h_ref.shape[:-1]
    H, TW = lead[1], lead[2]
    rows = H * TW
    h_bf = _flat_bf16(h_ref[...], rows)
    x_bf = _flat_bf16(x_ref[...], rows)
    r_idx = jax.lax.broadcasted_iota(jnp.int32, (rows, 1), 0)
    h2 = _half_step(h_bf, x_bf, wzr_ref[...], bzr_ref[0], wqh_ref[...],
                    wqx_ref[...], bq_ref[0],
                    lead=lead, rows=rows, inner=TW,
                    first_m=(r_idx < TW), last_m=(r_idx >= (H - 1) * TW),
                    flat_mask=True)
    out_ref[...] = h2.astype(out_ref.dtype)


# ---------------------------------------------------------------------------
# pallas_call wrappers.
# ---------------------------------------------------------------------------
def _wspec(a):
    # Constant index_map: Pallas skips the re-DMA of weights between grid steps.
    nd = a.ndim
    return pl.BlockSpec(a.shape, lambda i, _nd=nd: (0,) * _nd)


def _gru_fused(h, x, horiz, vert):
    N, H, W, C = h.shape
    blk = pl.BlockSpec((1, H, W, C), lambda n: (n, 0, 0, 0))
    weights = (*horiz, *vert)
    return pl.pallas_call(
        _fused_kernel,
        out_shape=jax.ShapeDtypeStruct((N, H, W, C), h.dtype),
        grid_spec=pltpu.PrefetchScalarGridSpec(
            num_scalar_prefetch=0,
            grid=(N,),
            in_specs=[blk, blk] + [_wspec(a) for a in weights],
            out_specs=blk),
        compiler_params=pltpu.CompilerParams(
            dimension_semantics=("parallel",),
            vmem_limit_bytes=_VMEM_LIMIT),
    )(h, x, *weights)


def _pick_bm(M, W):
    """Rows-per-block for the (1,3) pass: ~_TARGET_TILE_ROWS matmul rows per
    tile, preferring an even number of grid steps (2 TensorCores on v7x)."""
    bm = max(1, min(M, _TARGET_TILE_ROWS // max(W, 1)))
    steps = _cdiv(M, bm)
    if steps > 1 and steps % 2 == 1:
        bm = max(1, _cdiv(M, steps + 1))
    return bm


def _pick_tw(W, H):
    """W-tile for the (3,1) pass: multiple of 8, ~_TARGET_TILE_ROWS rows,
    preferring an even number of W-tiles."""
    tw = max(8, min(W, (_TARGET_TILE_ROWS // max(H, 1)) // 8 * 8))
    steps = _cdiv(W, tw)
    if steps > 1 and steps % 2 == 1:
        tw = max(8, _cdiv(_cdiv(W, steps + 1), 8) * 8)
    return min(tw, W)


def _gru_pass_w(h_rows, x_rows, weights):
    """(1,3) half-step: conv along W on (N*H, W, C) row tiles (cdiv grid;
    rows are independent so partial last blocks are safe)."""
    M, W, C = h_rows.shape
    bm = _pick_bm(M, W)
    blk = pl.BlockSpec((bm, W, C), lambda i: (i, 0, 0))
    return pl.pallas_call(
        _pass_w_kernel,
        out_shape=jax.ShapeDtypeStruct((M, W, C), h_rows.dtype),
        grid_spec=pltpu.PrefetchScalarGridSpec(
            num_scalar_prefetch=0,
            grid=(_cdiv(M, bm),),
            in_specs=[blk, blk] + [_wspec(a) for a in weights],
            out_specs=blk),
        compiler_params=pltpu.CompilerParams(
            dimension_semantics=("parallel",),
            vmem_limit_bytes=_VMEM_LIMIT),
    )(h_rows, x_rows, *weights)


def _gru_pass_h(h_nhwc, x_nhwc, weights):
    """(3,1) half-step: conv along H on (1, H, tw, C) NHWC tiles.  The (N,
    W-tiles) grid is flattened to one parallel axis so v7x's 2 TCs split it."""
    N, H, W, C = h_nhwc.shape
    tw = _pick_tw(W, H)
    nw = _cdiv(W, tw)
    blk = pl.BlockSpec((1, H, tw, C), lambda i: (i // nw, 0, i % nw, 0))
    return pl.pallas_call(
        _pass_h_kernel,
        out_shape=jax.ShapeDtypeStruct((N, H, W, C), h_nhwc.dtype),
        grid_spec=pltpu.PrefetchScalarGridSpec(
            num_scalar_prefetch=0,
            grid=(N * nw,),
            in_specs=[blk, blk] + [_wspec(a) for a in weights],
            out_specs=blk),
        compiler_params=pltpu.CompilerParams(
            dimension_semantics=("parallel",),
            vmem_limit_bytes=_VMEM_LIMIT),
    )(h_nhwc, x_nhwc, *weights)


# ---------------------------------------------------------------------------
# PyTorch OIHW conv weights -> tap-fused matmul weights (bf16).
# ---------------------------------------------------------------------------
def _pack_weights(wz, bz, wr, br, wq, bq, kernel_axis, w_dtype=jnp.bfloat16):
    """wz/wr/wq: (128, 256, kh, kw); kernel_axis is the size-3 axis (3 for the
    (1,3) conv along W, 2 for the (3,1) conv along H).  Tap k multiplies the
    input at offset k-1 along the conv axis."""
    def taps(w):
        w = jnp.squeeze(w, axis=5 - kernel_axis)        # (128, 256, 3)
        return jnp.transpose(w, (2, 1, 0))              # (3, in=256, out=128)

    wz_t, wr_t, wq_t = taps(wz), taps(wr), taps(wq)
    zr_t = jnp.concatenate([wz_t, wr_t], axis=-1)                  # (3,256,256)
    wzr = jnp.concatenate([zr_t[0], zr_t[1], zr_t[2]], axis=-1)    # (256, 768)
    wq_h = jnp.concatenate([wq_t[0][:HID], wq_t[1][:HID], wq_t[2][:HID]], axis=-1)
    wq_x = jnp.concatenate([wq_t[0][HID:], wq_t[1][HID:], wq_t[2][HID:]], axis=-1)
    bzr = jnp.concatenate([bz, br]).reshape(1, 2 * HID).astype(jnp.float32)
    bq2 = bq.reshape(1, HID).astype(jnp.float32)
    return (wzr.astype(w_dtype), bzr,
            wq_h.astype(w_dtype), wq_x.astype(w_dtype), bq2)


def pack_params(p):
    horiz = _pack_weights(p['wz1'], p['bz1'], p['wr1'], p['br1'],
                          p['wq1'], p['bq1'], kernel_axis=3)
    vert = _pack_weights(p['wz2'], p['bz2'], p['wr2'], p['br2'],
                         p['wq2'], p['bq2'], kernel_axis=2)
    return horiz, vert


# ---------------------------------------------------------------------------
# Forward passes.
# ---------------------------------------------------------------------------
def sepconv_gru_forward_nhwc(h_nhwc, x_nhwc, packed, *, force_two_pass=False):
    """NHWC entry point (preferred: keep the RAFT hidden state NHWC/bf16 so no
    transposes are needed around the GRU)."""
    N, H, W, C = h_nhwc.shape
    assert C == HID
    horiz, vert = packed
    out_dtype = h_nhwc.dtype

    h = h_nhwc.astype(jnp.bfloat16)
    x = x_nhwc.astype(jnp.bfloat16)

    # Pad W up to a multiple of 8 only when needed so the in-kernel row
    # flattening stays tile-aligned.  The zero pad reproduces the horizontal
    # conv's own zero padding; padded columns never leak into valid pixels
    # (the vertical conv does not mix W) and are sliced off below.
    Wp = _cdiv(W, 8) * 8
    if Wp != W:
        pad = ((0, 0), (0, 0), (0, Wp - W), (0, 0))
        h = jnp.pad(h, pad)
        x = jnp.pad(x, pad)

    if (not force_two_pass) and H * Wp <= _FUSED_MAX_ROWS:
        # Fused: both half-steps in one call, h1 never touches HBM.
        out = _gru_fused(h, x, horiz, vert)
    else:
        # Two-pass fallback for images too large for whole-image VMEM blocks.
        h1 = _gru_pass_w(h.reshape(N * H, Wp, HID),
                         x.reshape(N * H, Wp, HID), horiz)
        out = _gru_pass_h(h1.reshape(N, H, Wp, HID), x, vert)

    if Wp != W:
        out = out[:, :, :W, :]
    return out.astype(out_dtype)


def sepconv_gru_forward(h_nchw, x_nchw, torch_params, *, force_two_pass=False):
    """NCHW drop-in for the PyTorch module.  For repeated GRU iterations keep
    the state NHWC/bf16 and call sepconv_gru_forward_nhwc directly instead."""
    packed = pack_params(torch_params)
    h = jnp.transpose(h_nchw.astype(jnp.bfloat16), (0, 2, 3, 1))
    x = jnp.transpose(x_nchw.astype(jnp.bfloat16), (0, 2, 3, 1))
    out = sepconv_gru_forward_nhwc(h, x, packed, force_two_pass=force_two_pass)
    return jnp.transpose(out, (0, 3, 1, 2)).astype(h_nchw.dtype)


# ---------------------------------------------------------------------------
# Pure-JAX references (mirror the PyTorch forward, NCHW / OIHW).
# ---------------------------------------------------------------------------
def _conv2d_ref(x, w, b, pad, cast_bf16=False):
    if cast_bf16:
        x = x.astype(jnp.bfloat16)
        w = w.astype(jnp.bfloat16)
    out = jax.lax.conv_general_dilated(
        x, w, window_strides=(1, 1),
        padding=[(pad[0], pad[0]), (pad[1], pad[1])],
        dimension_numbers=('NCHW', 'OIHW', 'NCHW'),
        preferred_element_type=jnp.float32)
    return out + b[None, :, None, None]


def sepconv_gru_ref(h, x, p, cast_bf16=False):
    hx = jnp.concatenate([h, x], axis=1)
    z = jax.nn.sigmoid(_conv2d_ref(hx, p['wz1'], p['bz1'], (0, 1), cast_bf16))
    r = jax.nn.sigmoid(_conv2d_ref(hx, p['wr1'], p['br1'], (0, 1), cast_bf16))
    q = jnp.tanh(_conv2d_ref(jnp.concatenate([r * h, x], axis=1),
                             p['wq1'], p['bq1'], (0, 1), cast_bf16))
    h = (1 - z) * h + z * q
    hx = jnp.concatenate([h, x], axis=1)
    z = jax.nn.sigmoid(_conv2d_ref(hx, p['wz2'], p['bz2'], (1, 0), cast_bf16))
    r = jax.nn.sigmoid(_conv2d_ref(hx, p['wr2'], p['br2'], (1, 0), cast_bf16))
    q = jnp.tanh(_conv2d_ref(jnp.concatenate([r * h, x], axis=1),
                             p['wq2'], p['bq2'], (1, 0), cast_bf16))
    h = (1 - z) * h + z * q
    return h


if __name__ == "__main__":
    key = jax.random.PRNGKey(0)
    keys = jax.random.split(key, 20)

    def w_init(k, shape):
        return 0.05 * jax.random.normal(k, shape, jnp.float32)

    params = {
        # horizontal (1,3) convs
        'wz1': w_init(keys[2], (HID, CATT, 1, 3)), 'bz1': w_init(keys[3], (HID,)),
        'wr1': w_init(keys[4], (HID, CATT, 1, 3)), 'br1': w_init(keys[5], (HID,)),
        'wq1': w_init(keys[6], (HID, CATT, 1, 3)), 'bq1': w_init(keys[7], (HID,)),
        # vertical (3,1) convs
        'wz2': w_init(keys[8], (HID, CATT, 3, 1)), 'bz2': w_init(keys[9], (HID,)),
        'wr2': w_init(keys[10], (HID, CATT, 3, 1)), 'br2': w_init(keys[11], (HID,)),
        'wq2': w_init(keys[12], (HID, CATT, 3, 1)), 'bq2': w_init(keys[13], (HID,)),
    }

    def check(h0, x0, force_two_pass):
        fwd = jax.jit(functools.partial(sepconv_gru_forward,
                                        torch_params=params,
                                        force_two_pass=force_two_pass))
        out = jax.block_until_ready(fwd(h0, x0))
        ref_bf = jax.block_until_ready(sepconv_gru_ref(h0, x0, params,
                                                       cast_bf16=True))
        ref_f32 = jax.block_until_ready(sepconv_gru_ref(h0, x0, params))
        assert out.shape == h0.shape and out.dtype == h0.dtype
        err_bf = float(jnp.max(jnp.abs(out - ref_bf)))
        err_f32 = float(jnp.max(jnp.abs(out - ref_f32)))
        # Tight-ish check vs a reference whose conv inputs/weights are also
        # bf16 (isolates structural bugs from quantization noise) + loose
        # sanity check vs the pure-f32 reference.
        assert jnp.allclose(out, ref_bf, atol=5e-2, rtol=5e-2), \
            (force_two_pass, err_bf, err_f32)
        assert err_f32 < 0.3, (force_two_pass, err_bf, err_f32)

    # 1) Fused single-call path (whole image fits the VMEM budget).
    h0 = jax.random.normal(keys[0], (2, HID, 8, 8), jnp.float32)
    x0 = jax.random.normal(keys[1], (2, HID, 8, 8), jnp.float32)
    check(h0, x0, force_two_pass=False)

    # 2) Two-pass fallback path (exercises the row/W tiling + flattened grid).
    h1 = jax.random.normal(keys[14], (1, HID, 16, 128), jnp.float32)
    x1 = jax.random.normal(keys[15], (1, HID, 16, 128), jnp.float32)
    check(h1, x1, force_two_pass=True)

    print("KERNEL_OK")
</pallas_src>

<mosaic_0001>
module attributes {stable_mosaic.version = 11 : i64} {
  func.func @_fused_kernel(%arg0: i32, %arg1: memref<1x8x8x128xbf16, #tpu.memory_space<vmem>>, %arg2: memref<1x8x8x128xbf16, #tpu.memory_space<vmem>>, %arg3: memref<256x768xbf16, #tpu.memory_space<vmem>>, %arg4: memref<1x256xf32, #tpu.memory_space<vmem>>, %arg5: memref<128x384xbf16, #tpu.memory_space<vmem>>, %arg6: memref<128x384xbf16, #tpu.memory_space<vmem>>, %arg7: memref<1x128xf32, #tpu.memory_space<vmem>>, %arg8: memref<256x768xbf16, #tpu.memory_space<vmem>>, %arg9: memref<1x256xf32, #tpu.memory_space<vmem>>, %arg10: memref<128x384xbf16, #tpu.memory_space<vmem>>, %arg11: memref<128x384xbf16, #tpu.memory_space<vmem>>, %arg12: memref<1x128xf32, #tpu.memory_space<vmem>>, %arg13: memref<1x8x8x128xbf16, #tpu.memory_space<vmem>>) attributes {dimension_semantics = [#tpu.dimension_semantics<parallel>], iteration_bounds = array<i64: 2>, scalar_prefetch = 0 : i64, scratch_operands = 0 : i64, tpu.core_type = #tpu.core_type<tc>, window_params = [{transform_indices = @transform_0, window_bounds = array<i64: 1, 8, 8, 128>}, {transform_indices = @transform_1, window_bounds = array<i64: 1, 8, 8, 128>}, {pipeline_mode = #tpu.pipeline_mode<synchronous>, transform_indices = @transform_2, window_bounds = array<i64: 256, 768>}, {pipeline_mode = #tpu.pipeline_mode<synchronous>, transform_indices = @transform_3, window_bounds = array<i64: 1, 256>}, {pipeline_mode = #tpu.pipeline_mode<synchronous>, transform_indices = @transform_4, window_bounds = array<i64: 128, 384>}, {pipeline_mode = #tpu.pipeline_mode<synchronous>, transform_indices = @transform_5, window_bounds = array<i64: 128, 384>}, {pipeline_mode = #tpu.pipeline_mode<synchronous>, transform_indices = @transform_6, window_bounds = array<i64: 1, 128>}, {pipeline_mode = #tpu.pipeline_mode<synchronous>, transform_indices = @transform_7, window_bounds = array<i64: 256, 768>}, {pipeline_mode = #tpu.pipeline_mode<synchronous>, transform_indices = @transform_8, window_bounds = array<i64: 1, 256>}, {pipeline_mode = #tpu.pipeline_mode<synchronous>, transform_indices = @transform_9, window_bounds = array<i64: 128, 384>}, {pipeline_mode = #tpu.pipeline_mode<synchronous>, transform_indices = @transform_10, window_bounds = array<i64: 128, 384>}, {pipeline_mode = #tpu.pipeline_mode<synchronous>, transform_indices = @transform_11, window_bounds = array<i64: 1, 128>}, {transform_indices = @transform_12, window_bounds = array<i64: 1, 8, 8, 128>}]} {
    %c0 = arith.constant 0 : index
    %c0_0 = arith.constant 0 : index
    %c0_1 = arith.constant 0 : index
    %c0_2 = arith.constant 0 : index
    %0 = vector.load %arg1[%c0, %c0_0, %c0_1, %c0_2] : memref<1x8x8x128xbf16, #tpu.memory_space<vmem>>, vector<1x8x8x128xbf16>
    %1 = arith.extf %0 : vector<1x8x8x128xbf16> to vector<1x8x8x128xf32>
    %2 = vector.shape_cast %1 : vector<1x8x8x128xf32> to vector<64x128xf32>
    %3 = arith.truncf %2 : vector<64x128xf32> to vector<64x128xbf16>
    %c0_3 = arith.constant 0 : index
    %c0_4 = arith.constant 0 : index
    %c0_5 = arith.constant 0 : index
    %c0_6 = arith.constant 0 : index
    %4 = vector.load %arg2[%c0_3, %c0_4, %c0_5, %c0_6] : memref<1x8x8x128xbf16, #tpu.memory_space<vmem>>, vector<1x8x8x128xbf16>
    %5 = arith.extf %4 : vector<1x8x8x128xbf16> to vector<1x8x8x128xf32>
    %6 = vector.shape_cast %5 : vector<1x8x8x128xf32> to vector<64x128xf32>
    %7 = arith.truncf %6 : vector<64x128xf32> to vector<64x128xbf16>
    %8 = tpu.iota {dimensions = array<i32: 0>} : vector<8x1xi32>
    %c0_7 = arith.constant 0 : index
    %c0_8 = arith.constant 0 : index
    %9 = vector.load %arg3[%c0_7, %c0_8] : memref<256x768xbf16, #tpu.memory_space<vmem>>, vector<256x768xbf16>
    %c0_9 = arith.constant 0 : index
    %c0_10 = arith.constant 0 : index
    %10 = vector.load %arg4[%c0_9, %c0_10] : memref<1x256xf32, #tpu.memory_space<vmem>>, vector<1x256xf32>
    %11 = vector.shape_cast %10 : vector<1x256xf32> to vector<256xf32>
    %c0_11 = arith.constant 0 : index
    %c0_12 = arith.constant 0 : index
    %12 = vector.load %arg5[%c0_11, %c0_12] : memref<128x384xbf16, #tpu.memory_space<vmem>>, vector<128x384xbf16>
    %c0_13 = arith.constant 0 : index
    %c0_14 = arith.constant 0 : index
    %13 = vector.load %arg6[%c0_13, %c0_14] : memref<128x384xbf16, #tpu.memory_space<vmem>>, vector<128x384xbf16>
    %c0_15 = arith.constant 0 : index
    %c0_16 = arith.constant 0 : index
    %14 = vector.load %arg7[%c0_15, %c0_16] : memref<1x128xf32, #tpu.memory_space<vmem>>, vector<1x128xf32>
    %15 = vector.shape_cast %14 : vector<1x128xf32> to vector<128xf32>
    %c0_i32 = arith.constant 0 : i32
    %16 = vector.broadcast %c0_i32 : i32 to vector<8x1xi32>
    %17 = arith.cmpi eq, %8, %16 : vector<8x1xi32>
    %c7_i32 = arith.constant 7 : i32
    %18 = vector.broadcast %c7_i32 : i32 to vector<8x1xi32>
    %19 = arith.cmpi eq, %8, %18 : vector<8x1xi32>
    %20 = tpu.concatenate %3, %7 in 1 : vector<64x128xbf16>, vector<64x128xbf16> -> vector<64x256xbf16>
    %cst = arith.constant dense<0.000000e+00> : vector<64x768xf32>
    %21 = tpu.matmul %20, %9, %cst {dimension_numbers = #tpu.dot_dimension_numbers<[1], [0], [0], [1], [0, 0, 1, 1], [], []>} : vector<64x256xbf16>, vector<256x768xbf16>, vector<64x768xf32> -> vector<64x768xf32>
    %22 = vector.extract_strided_slice %21 {offsets = [0, 0], sizes = [64, 256], strides = [1, 1]} : vector<64x768xf32> to vector<64x256xf32>
    %23 = vector.extract_strided_slice %21 {offsets = [0, 256], sizes = [64, 256], strides = [1, 1]} : vector<64x768xf32> to vector<64x256xf32>
    %24 = vector.extract_strided_slice %21 {offsets = [0, 512], sizes = [64, 256], strides = [1, 1]} : vector<64x768xf32> to vector<64x256xf32>
    %c1_i32 = arith.constant 1 : i32
    %25 = tpu.dynamic_rotate %22 by %c1_i32 dim 0 : vector<64x256xf32>, i32 -> vector<64x256xf32>
    %c63_i32 = arith.constant 63 : i32
    %26 = tpu.dynamic_rotate %24 by %c63_i32 dim 0 : vector<64x256xf32>, i32 -> vector<64x256xf32>
    %27 = vector.shape_cast %25 : vector<64x256xf32> to vector<1x8x8x256xf32>
    %cst_17 = arith.constant 0.000000e+00 : f32
    %28 = vector.shape_cast %17 : vector<8x1xi1> to vector<1x1x8x1xi1>
    %29 = vector.broadcast %28 : vector<1x1x8x1xi1> to vector<1x8x8x256xi1>
    %30 = vector.broadcast %cst_17 : f32 to vector<1x8x8x256xf32>
    %31 = arith.select %29, %30, %27 : vector<1x8x8x256xi1>, vector<1x8x8x256xf32>
    %32 = vector.shape_cast %26 : vector<64x256xf32> to vector<1x8x8x256xf32>
    %cst_18 = arith.constant 0.000000e+00 : f32
    %33 = vector.shape_cast %19 : vector<8x1xi1> to vector<1x1x8x1xi1>
    %34 = vector.broadcast %33 : vector<1x1x8x1xi1> to vector<1x8x8x256xi1>
    %35 = vector.broadcast %cst_18 : f32 to vector<1x8x8x256xf32>
    %36 = arith.select %34, %35, %32 : vector<1x8x8x256xi1>, vector<1x8x8x256xf32>
    %37 = vector.shape_cast %23 : vector<64x256xf32> to vector<1x8x8x256xf32>
    %38 = arith.addf %37, %31 : vector<1x8x8x256xf32>
    %39 = arith.addf %38, %36 : vector<1x8x8x256xf32>
    %40 = vector.shape_cast %11 : vector<256xf32> to vector<1x1x1x256xf32>
    %41 = vector.broadcast %40 : vector<1x1x1x256xf32> to vector<1x8x8x256xf32>
    %42 = arith.addf %39, %41 : vector<1x8x8x256xf32>
    %43 = vector.extract_strided_slice %42 {offsets = [0, 0, 0, 0], sizes = [1, 8, 8, 128], strides = [1, 1, 1, 1]} : vector<1x8x8x256xf32> to vector<1x8x8x128xf32>
    %cst_19 = arith.constant 5.000000e-01 : f32
    %44 = vector.broadcast %cst_19 : f32 to vector<1x8x8x128xf32>
    %45 = arith.mulf %44, %43 : vector<1x8x8x128xf32>
    %46 = math.tanh %45 : vector<1x8x8x128xf32>
    %cst_20 = arith.constant 1.000000e+00 : f32
    %47 = vector.broadcast %cst_20 : f32 to vector<1x8x8x128xf32>
    %48 = arith.addf %46, %47 : vector<1x8x8x128xf32>
    %cst_21 = arith.constant 5.000000e-01 : f32
    %49 = vector.broadcast %cst_21 : f32 to vector<1x8x8x128xf32>
    %50 = arith.mulf %49, %48 : vector<1x8x8x128xf32>
    %51 = vector.extract_strided_slice %42 {offsets = [0, 0, 0, 128], sizes = [1, 8, 8, 128], strides = [1, 1, 1, 1]} : vector<1x8x8x256xf32> to vector<1x8x8x128xf32>
    %cst_22 = arith.constant 5.000000e-01 : f32
    %52 = vector.broadcast %cst_22 : f32 to vector<1x8x8x128xf32>
    %53 = arith.mulf %52, %51 : vector<1x8x8x128xf32>
    %54 = math.tanh %53 : vector<1x8x8x128xf32>
    %cst_23 = arith.constant 1.000000e+00 : f32
    %55 = vector.broadcast %cst_23 : f32 to vector<1x8x8x128xf32>
    %56 = arith.addf %54, %55 : vector<1x8x8x128xf32>
    %cst_24 = arith.constant 5.000000e-01 : f32
    %57 = vector.broadcast %cst_24 : f32 to vector<1x8x8x128xf32>
    %58 = arith.mulf %57, %56 : vector<1x8x8x128xf32>
    %cst_25 = arith.constant dense<0.000000e+00> : vector<64x384xf32>
    %59 = tpu.matmul %7, %13, %cst_25 {dimension_numbers = #tpu.dot_dimension_numbers<[1], [0], [0], [1], [0, 0, 1, 1], [], []>} : vector<64x128xbf16>, vector<128x384xbf16>, vector<64x384xf32> -> vector<64x384xf32>
    %60 = arith.extf %3 : vector<64x128xbf16> to vector<64x128xf32>
    %61 = vector.shape_cast %60 : vector<64x128xf32> to vector<1x8x8x128xf32>
    %62 = arith.mulf %58, %61 : vector<1x8x8x128xf32>
    %63 = vector.shape_cast %62 : vector<1x8x8x128xf32> to vector<64x128xf32>
    %64 = arith.truncf %63 : vector<64x128xf32> to vector<64x128xbf16>
    %cst_26 = arith.constant dense<0.000000e+00> : vector<64x384xf32>
    %65 = tpu.matmul %64, %12, %cst_26 {dimension_numbers = #tpu.dot_dimension_numbers<[1], [0], [0], [1], [0, 0, 1, 1], [], []>} : vector<64x128xbf16>, vector<128x384xbf16>, vector<64x384xf32> -> vector<64x384xf32>
    %66 = arith.addf %59, %65 : vector<64x384xf32>
    %67 = vector.extract_strided_slice %66 {offsets = [0, 0], sizes = [64, 128], strides = [1, 1]} : vector<64x384xf32> to vector<64x128xf32>
    %68 = vector.extract_strided_slice %66 {offsets = [0, 128], sizes = [64, 128], strides = [1, 1]} : vector<64x384xf32> to vector<64x128xf32>
    %69 = vector.extract_strided_slice %66 {offsets = [0, 256], sizes = [64, 128], strides = [1, 1]} : vector<64x384xf32> to vector<64x128xf32>
    %c1_i32_27 = arith.constant 1 : i32
    %70 = tpu.dynamic_rotate %67 by %c1_i32_27 dim 0 : vector<64x128xf32>, i32 -> vector<64x128xf32>
    %c63_i32_28 = arith.constant 63 : i32
    %71 = tpu.dynamic_rotate %69 by %c63_i32_28 dim 0 : vector<64x128xf32>, i32 -> vector<64x128xf32>
    %72 = vector.shape_cast %70 : vector<64x128xf32> to vector<1x8x8x128xf32>
    %cst_29 = arith.constant 0.000000e+00 : f32
    %73 = vector.shape_cast %17 : vector<8x1xi1> to vector<1x1x8x1xi1>
    %74 = vector.broadcast %73 : vector<1x1x8x1xi1> to vector<1x8x8x128xi1>
    %75 = vector.broadcast %cst_29 : f32 to vector<1x8x8x128xf32>
    %76 = arith.select %74, %75, %72 : vector<1x8x8x128xi1>, vector<1x8x8x128xf32>
    %77 = vector.shape_cast %71 : vector<64x128xf32> to vector<1x8x8x128xf32>
    %cst_30 = arith.constant 0.000000e+00 : f32
    %78 = vector.shape_cast %19 : vector<8x1xi1> to vector<1x1x8x1xi1>
    %79 = vector.broadcast %78 : vector<1x1x8x1xi1> to vector<1x8x8x128xi1>
    %80 = vector.broadcast %cst_30 : f32 to vector<1x8x8x128xf32>
    %81 = arith.select %79, %80, %77 : vector<1x8x8x128xi1>, vector<1x8x8x128xf32>
    %82 = vector.shape_cast %68 : vector<64x128xf32> to vector<1x8x8x128xf32>
    %83 = arith.addf %82, %76 : vector<1x8x8x128xf32>
    %84 = arith.addf %83, %81 : vector<1x8x8x128xf32>
    %85 = vector.shape_cast %15 : vector<128xf32> to vector<1x1x1x128xf32>
    %86 = vector.broadcast %85 : vector<1x1x1x128xf32> to vector<1x8x8x128xf32>
    %87 = arith.addf %84, %86 : vector<1x8x8x128xf32>
    %88 = math.tanh %87 : vector<1x8x8x128xf32>
    %89 = arith.subf %88, %61 : vector<1x8x8x128xf32>
    %90 = arith.mulf %50, %89 : vector<1x8x8x128xf32>
    %91 = arith.addf %61, %90 : vector<1x8x8x128xf32>
    %92 = vector.shape_cast %91 : vector<1x8x8x128xf32> to vector<64x128xf32>
    %93 = arith.truncf %92 : vector<64x128xf32> to vector<64x128xbf16>
    %94 = tpu.iota {dimensions = array<i32: 0>} : vector<64x1xi32>
    %c0_31 = arith.constant 0 : index
    %c0_32 = arith.constant 0 : index
    %95 = vector.load %arg8[%c0_31, %c0_32] : memref<256x768xbf16, #tpu.memory_space<vmem>>, vector<256x768xbf16>
    %c0_33 = arith.constant 0 : index
    %c0_34 = arith.constant 0 : index
    %96 = vector.load %arg9[%c0_33, %c0_34] : memref<1x256xf32, #tpu.memory_space<vmem>>, vector<1x256xf32>
    %97 = vector.shape_cast %96 : vector<1x256xf32> to vector<256xf32>
    %c0_35 = arith.constant 0 : index
    %c0_36 = arith.constant 0 : index
    %98 = vector.load %arg10[%c0_35, %c0_36] : memref<128x384xbf16, #tpu.memory_space<vmem>>, vector<128x384xbf16>
    %c0_37 = arith.constant 0 : index
    %c0_38 = arith.constant 0 : index
    %99 = vector.load %arg11[%c0_37, %c0_38] : memref<128x384xbf16, #tpu.memory_space<vmem>>, vector<128x384xbf16>
    %c0_39 = arith.constant 0 : index
    %c0_40 = arith.constant 0 : index
    %100 = vector.load %arg12[%c0_39, %c0_40] : memref<1x128xf32, #tpu.memory_space<vmem>>, vector<1x128xf32>
    %101 = vector.shape_cast %100 : vector<1x128xf32> to vector<128xf32>
    %c8_i32 = arith.constant 8 : i32
    %102 = vector.broadcast %c8_i32 : i32 to vector<64x1xi32>
    %103 = arith.cmpi slt, %94, %102 : vector<64x1xi32>
    %c56_i32 = arith.constant 56 : i32
    %104 = vector.broadcast %c56_i32 : i32 to vector<64x1xi32>
    %105 = arith.cmpi sge, %94, %104 : vector<64x1xi32>
    %106 = tpu.concatenate %93, %7 in 1 : vector<64x128xbf16>, vector<64x128xbf16> -> vector<64x256xbf16>
    %cst_41 = arith.constant dense<0.000000e+00> : vector<64x768xf32>
    %107 = tpu.matmul %106, %95, %cst_41 {dimension_numbers = #tpu.dot_dimension_numbers<[1], [0], [0], [1], [0, 0, 1, 1], [], []>} : vector<64x256xbf16>, vector<256x768xbf16>, vector<64x768xf32> -> vector<64x768xf32>
    %108 = vector.extract_strided_slice %107 {offsets = [0, 0], sizes = [64, 256], strides = [1, 1]} : vector<64x768xf32> to vector<64x256xf32>
    %109 = vector.extract_strided_slice %107 {offsets = [0, 256], sizes = [64, 256], strides = [1, 1]} : vector<64x768xf32> to vector<64x256xf32>
    %110 = vector.extract_strided_slice %107 {offsets = [0, 512], sizes = [64, 256], strides = [1, 1]} : vector<64x768xf32> to vector<64x256xf32>
    %c8_i32_42 = arith.constant 8 : i32
    %111 = tpu.dynamic_rotate %108 by %c8_i32_42 dim 0 : vector<64x256xf32>, i32 -> vector<64x256xf32>
    %c56_i32_43 = arith.constant 56 : i32
    %112 = tpu.dynamic_rotate %110 by %c56_i32_43 dim 0 : vector<64x256xf32>, i32 -> vector<64x256xf32>
    %cst_44 = arith.constant 0.000000e+00 : f32
    %113 = vector.shape_cast %103 : vector<64x1xi1> to vector<64x1xi1>
    %114 = vector.broadcast %113 : vector<64x1xi1> to vector<64x256xi1>
    %115 = vector.broadcast %cst_44 : f32 to vector<64x256xf32>
    %116 = arith.select %114, %115, %111 : vector<64x256xi1>, vector<64x256xf32>
    %117 = vector.shape_cast %116 : vector<64x256xf32> to vector<1x8x8x256xf32>
    %cst_45 = arith.constant 0.000000e+00 : f32
    %118 = vector.shape_cast %105 : vector<64x1xi1> to vector<64x1xi1>
    %119 = vector.broadcast %118 : vector<64x1xi1> to vector<64x256xi1>
    %120 = vector.broadcast %cst_45 : f32 to vector<64x256xf32>
    %121 = arith.select %119, %120, %112 : vector<64x256xi1>, vector<64x256xf32>
    %122 = vector.shape_cast %121 : vector<64x256xf32> to vector<1x8x8x256xf32>
    %123 = vector.shape_cast %109 : vector<64x256xf32> to vector<1x8x8x256xf32>
    %124 = arith.addf %123, %117 : vector<1x8x8x256xf32>
    %125 = arith.addf %124, %122 : vector<1x8x8x256xf32>
    %126 = vector.shape_cast %97 : vector<256xf32> to vector<1x1x1x256xf32>
    %127 = vector.broadcast %126 : vector<1x1x1x256xf32> to vector<1x8x8x256xf32>
    %128 = arith.addf %125, %127 : vector<1x8x8x256xf32>
    %129 = vector.extract_strided_slice %128 {offsets = [0, 0, 0, 0], sizes = [1, 8, 8, 128], strides = [1, 1, 1, 1]} : vector<1x8x8x256xf32> to vector<1x8x8x128xf32>
    %cst_46 = arith.constant 5.000000e-01 : f32
    %130 = vector.broadcast %cst_46 : f32 to vector<1x8x8x128xf32>
    %131 = arith.mulf %130, %129 : vector<1x8x8x128xf32>
    %132 = math.tanh %131 : vector<1x8x8x128xf32>
    %cst_47 = arith.constant 1.000000e+00 : f32
    %133 = vector.broadcast %cst_47 : f32 to vector<1x8x8x128xf32>
    %134 = arith.addf %132, %133 : vector<1x8x8x128xf32>
    %cst_48 = arith.constant 5.000000e-01 : f32
    %135 = vector.broadcast %cst_48 : f32 to vector<1x8x8x128xf32>
    %136 = arith.mulf %135, %134 : vector<1x8x8x128xf32>
    %137 = vector.extract_strided_slice %128 {offsets = [0, 0, 0, 128], sizes = [1, 8, 8, 128], strides = [1, 1, 1, 1]} : vector<1x8x8x256xf32> to vector<1x8x8x128xf32>
    %cst_49 = arith.constant 5.000000e-01 : f32
    %138 = vector.broadcast %cst_49 : f32 to vector<1x8x8x128xf32>
    %139 = arith.mulf %138, %137 : vector<1x8x8x128xf32>
    %140 = math.tanh %139 : vector<1x8x8x128xf32>
    %cst_50 = arith.constant 1.000000e+00 : f32
    %141 = vector.broadcast %cst_50 : f32 to vector<1x8x8x128xf32>
    %142 = arith.addf %140, %141 : vector<1x8x8x128xf32>
    %cst_51 = arith.constant 5.000000e-01 : f32
    %143 = vector.broadcast %cst_51 : f32 to vector<1x8x8x128xf32>
    %144 = arith.mulf %143, %142 : vector<1x8x8x128xf32>
    %cst_52 = arith.constant dense<0.000000e+00> : vector<64x384xf32>
    %145 = tpu.matmul %7, %99, %cst_52 {dimension_numbers = #tpu.dot_dimension_numbers<[1], [0], [0], [1], [0, 0, 1, 1], [], []>} : vector<64x128xbf16>, vector<128x384xbf16>, vector<64x384xf32> -> vector<64x384xf32>
    %146 = arith.extf %93 : vector<64x128xbf16> to vector<64x128xf32>
    %147 = vector.shape_cast %146 : vector<64x128xf32> to vector<1x8x8x128xf32>
    %148 = arith.mulf %144, %147 : vector<1x8x8x128xf32>
    %149 = vector.shape_cast %148 : vector<1x8x8x128xf32> to vector<64x128xf32>
    %150 = arith.truncf %149 : vector<64x128xf32> to vector<64x128xbf16>
    %cst_53 = arith.constant dense<0.000000e+00> : vector<64x384xf32>
    %151 = tpu.matmul %150, %98, %cst_53 {dimension_numbers = #tpu.dot_dimension_numbers<[1], [0], [0], [1], [0, 0, 1, 1], [], []>} : vector<64x128xbf16>, vector<128x384xbf16>, vector<64x384xf32> -> vector<64x384xf32>
    %152 = arith.addf %145, %151 : vector<64x384xf32>
    %153 = vector.extract_strided_slice %152 {offsets = [0, 0], sizes = [64, 128], strides = [1, 1]} : vector<64x384xf32> to vector<64x128xf32>
    %154 = vector.extract_strided_slice %152 {offsets = [0, 128], sizes = [64, 128], strides = [1, 1]} : vector<64x384xf32> to vector<64x128xf32>
    %155 = vector.extract_strided_slice %152 {offsets = [0, 256], sizes = [64, 128], strides = [1, 1]} : vector<64x384xf32> to vector<64x128xf32>
    %c8_i32_54 = arith.constant 8 : i32
    %156 = tpu.dynamic_rotate %153 by %c8_i32_54 dim 0 : vector<64x128xf32>, i32 -> vector<64x128xf32>
    %c56_i32_55 = arith.constant 56 : i32
    %157 = tpu.dynamic_rotate %155 by %c56_i32_55 dim 0 : vector<64x128xf32>, i32 -> vector<64x128xf32>
    %cst_56 = arith.constant 0.000000e+00 : f32
    %158 = vector.shape_cast %103 : vector<64x1xi1> to vector<64x1xi1>
    %159 = vector.broadcast %158 : vector<64x1xi1> to vector<64x128xi1>
    %160 = vector.broadcast %cst_56 : f32 to vector<64x128xf32>
    %161 = arith.select %159, %160, %156 : vector<64x128xi1>, vector<64x128xf32>
    %162 = vector.shape_cast %161 : vector<64x128xf32> to vector<1x8x8x128xf32>
    %cst_57 = arith.constant 0.000000e+00 : f32
    %163 = vector.shape_cast %105 : vector<64x1xi1> to vector<64x1xi1>
    %164 = vector.broadcast %163 : vector<64x1xi1> to vector<64x128xi1>
    %165 = vector.broadcast %cst_57 : f32 to vector<64x128xf32>
    %166 = arith.select %164, %165, %157 : vector<64x128xi1>, vector<64x128xf32>
    %167 = vector.shape_cast %166 : vector<64x128xf32> to vector<1x8x8x128xf32>
    %168 = vector.shape_cast %154 : vector<64x128xf32> to vector<1x8x8x128xf32>
    %169 = arith.addf %168, %162 : vector<1x8x8x128xf32>
    %170 = arith.addf %169, %167 : vector<1x8x8x128xf32>
    %171 = vector.shape_cast %101 : vector<128xf32> to vector<1x1x1x128xf32>
    %172 = vector.broadcast %171 : vector<1x1x1x128xf32> to vector<1x8x8x128xf32>
    %173 = arith.addf %170, %172 : vector<1x8x8x128xf32>
    %174 = math.tanh %173 : vector<1x8x8x128xf32>
    %175 = arith.subf %174, %147 : vector<1x8x8x128xf32>
    %176 = arith.mulf %136, %175 : vector<1x8x8x128xf32>
    %177 = arith.addf %147, %176 : vector<1x8x8x128xf32>
    %178 = arith.truncf %177 : vector<1x8x8x128xf32> to vector<1x8x8x128xbf16>
    %c0_58 = arith.constant 0 : index
    %c0_59 = arith.constant 0 : index
    %c0_60 = arith.constant 0 : index
    %c0_61 = arith.constant 0 : index
    %179 = vector.load %arg13[%c0_58, %c0_59, %c0_60, %c0_61] : memref<1x8x8x128xbf16, #tpu.memory_space<vmem>>, vector<1x8x8x128xbf16>
    tpu.vector_store %arg13[%c0_58, %c0_59, %c0_60, %c0_61], %178 {strides = array<i32>} : memref<1x8x8x128xbf16, #tpu.memory_space<vmem>>, vector<1x8x8x128xbf16>,
    return
  }
  func.func @transform_0(%arg0: i32) -> (i32, i32, i32, i32) {
    %c0_i32 = arith.constant 0 : i32
    %c0_i32_0 = arith.constant 0 : i32
    %c0_i32_1 = arith.constant 0 : i32
    %c0_i32_2 = arith.constant 0 : i32
    return %arg0, %c0_i32, %c0_i32_0, %c0_i32_1 : i32, i32, i32, i32
  }
  func.func @transform_1(%arg0: i32) -> (i32, i32, i32, i32) {
    %c0_i32 = arith.constant 0 : i32
    %c0_i32_0 = arith.constant 0 : i32
    %c0_i32_1 = arith.constant 0 : i32
    %c0_i32_2 = arith.constant 0 : i32
    return %arg0, %c0_i32, %c0_i32_0, %c0_i32_1 : i32, i32, i32, i32
  }
  func.func @transform_2(%arg0: i32) -> (i32, i32) {
    %c0_i32 = arith.constant 0 : i32
    %c0_i32_0 = arith.constant 0 : i32
    %c0_i32_1 = arith.constant 0 : i32
    return %c0_i32, %c0_i32_0 : i32, i32
  }
  func.func @transform_3(%arg0: i32) -> (i32, i32) {
    %c0_i32 = arith.constant 0 : i32
    %c0_i32_0 = arith.constant 0 : i32
    %c0_i32_1 = arith.constant 0 : i32
    return %c0_i32, %c0_i32_0 : i32, i32
  }
  func.func @transform_4(%arg0: i32) -> (i32, i32) {
    %c0_i32 = arith.constant 0 : i32
    %c0_i32_0 = arith.constant 0 : i32
    %c0_i32_1 = arith.constant 0 : i32
    return %c0_i32, %c0_i32_0 : i32, i32
  }
  func.func @transform_5(%arg0: i32) -> (i32, i32) {
    %c0_i32 = arith.constant 0 : i32
    %c0_i32_0 = arith.constant 0 : i32
    %c0_i32_1 = arith.constant 0 : i32
    return %c0_i32, %c0_i32_0 : i32, i32
  }
  func.func @transform_6(%arg0: i32) -> (i32, i32) {
    %c0_i32 = arith.constant 0 : i32
    %c0_i32_0 = arith.constant 0 : i32
    %c0_i32_1 = arith.constant 0 : i32
    return %c0_i32, %c0_i32_0 : i32, i32
  }
  func.func @transform_7(%arg0: i32) -> (i32, i32) {
    %c0_i32 = arith.constant 0 : i32
    %c0_i32_0 = arith.constant 0 : i32
    %c0_i32_1 = arith.constant 0 : i32
    return %c0_i32, %c0_i32_0 : i32, i32
  }
  func.func @transform_8(%arg0: i32) -> (i32, i32) {
    %c0_i32 = arith.constant 0 : i32
    %c0_i32_0 = arith.constant 0 : i32
    %c0_i32_1 = arith.constant 0 : i32
    return %c0_i32, %c0_i32_0 : i32, i32
  }
  func.func @transform_9(%arg0: i32) -> (i32, i32) {
    %c0_i32 = arith.constant 0 : i32
    %c0_i32_0 = arith.constant 0 : i32
    %c0_i32_1 = arith.constant 0 : i32
    return %c0_i32, %c0_i32_0 : i32, i32
  }
  func.func @transform_10(%arg0: i32) -> (i32, i32) {
    %c0_i32 = arith.constant 0 : i32
    %c0_i32_0 = arith.constant 0 : i32
    %c0_i32_1 = arith.constant 0 : i32
    return %c0_i32, %c0_i32_0 : i32, i32
  }
  func.func @transform_11(%arg0: i32) -> (i32, i32) {
    %c0_i32 = arith.constant 0 : i32
    %c0_i32_0 = arith.constant 0 : i32
    %c0_i32_1 = arith.constant 0 : i32
    return %c0_i32, %c0_i32_0 : i32, i32
  }
  func.func @transform_12(%arg0: i32) -> (i32, i32, i32, i32) {
    %c0_i32 = arith.constant 0 : i32
    %c0_i32_0 = arith.constant 0 : i32
    %c0_i32_1 = arith.constant 0 : i32
    %c0_i32_2 = arith.constant 0 : i32
    return %arg0, %c0_i32, %c0_i32_0, %c0_i32_1 : i32, i32, i32, i32
  }
}

</mosaic_0001>

<llo_original>
// kernel: sepconv_gru_forward.1
$region0: #{sepconv_gru_forward.1}
  #allocation0 [shape = 'u32[]', space=smem, size = 0x4, offset = 0x4, fixed_abs, tag = 'smem constant byte address 0x4 - core index']
  #allocation1 [shape = 'u32[72,128]{1,0:T(1,128)}', space=vmem, size = 0x9000, scoped, tag = 'internal scratch']
  %s0 = inlined_call_operand.vmem [shape: bf16[2,8,8,128], index: 0, kind: input, shape index: {}]
  %s1 = inlined_call_operand.vmem [shape: bf16[2,8,8,128], index: 1, kind: input, shape index: {}]
  %s2 = inlined_call_operand.hbm [shape: bf16[256,768], index: 2, kind: input, shape index: {}]
  %s3 = inlined_call_operand.vmem [shape: f32[1,256], index: 3, kind: input, shape index: {}]
  %s4 = inlined_call_operand.vmem [shape: bf16[128,384], index: 4, kind: input, shape index: {}]
  %s5 = inlined_call_operand.hbm [shape: bf16[128,384], index: 5, kind: input, shape index: {}]
  %s6 = inlined_call_operand.vmem [shape: f32[1,128], index: 6, kind: input, shape index: {}]
  %s7 = inlined_call_operand.hbm [shape: bf16[256,768], index: 7, kind: input, shape index: {}]
  %s8 = inlined_call_operand.vmem [shape: f32[1,256], index: 8, kind: input, shape index: {}]
  %s9 = inlined_call_operand.hbm [shape: bf16[128,384], index: 9, kind: input, shape index: {}]
  %s10 = inlined_call_operand.hbm [shape: bf16[128,384], index: 10, kind: input, shape index: {}]
  %s11 = inlined_call_operand.vmem [shape: f32[1,128], index: 11, kind: input, shape index: {}]
  %s12 = inlined_call_operand.vmem [shape: bf16[2,8,8,128], index: 12, kind: output, shape index: {}]
  %s13 = sld [smem:[#allocation0]]
  $region101: #{sepconv_gru_forward.1} parent=0
    _
  %s15 = ssub.s32 1, %s13
  %s16 = scalar_select 0, %s15, %s13
  $region1: #{sepconv_gru_forward.1} parent=0
    #allocation2 [shape = 'u8[393216]{0}', space=vmem, size = 0x60000, scoped, tag = 'input window, operand 2, single buffered']
    #allocation3 [shape = 's32[2]{0}', space=sflag, size = 0x8, scoped, tag = 'scoped memory for sepconv_gru_forward.1']
    #allocation4 [shape = 'u8[98304]{0}', space=vmem, size = 0x18000, scoped, tag = 'input window, operand 5, single buffered']
    #allocation5 [shape = 's32[1]{0}', space=sflag, size = 0x4, scoped, tag = 'scoped memory for sepconv_gru_forward.1']
    #allocation6 [shape = 'u8[393216]{0}', space=vmem, size = 0x60000, scoped, tag = 'input window, operand 7, single buffered']
    #allocation7 [shape = 'u8[98304]{0}', space=vmem, size = 0x18000, scoped, tag = 'input window, operand 9, single buffered']
    #allocation8 [shape = 's32[1]{0}', space=sflag, size = 0x4, scoped, tag = 'scoped memory for sepconv_gru_forward.1']
    #allocation9 [shape = 'u8[98304]{0}', space=vmem, size = 0x18000, scoped, tag = 'input window, operand 10, single buffered']
    %17 = vsyncpa [#allocation3], 0
    %18 = vsyncpa [#allocation5], 0
    %19 = vsyncpa [#allocation8], 0
    loop: start=0, step=1, limit=4
    $region2: #{sepconv_gru_forward.1} parent=1 // loop_pre_header
      _
    $region3: #{sepconv_gru_forward.1} parent=1 // loop_header
      %s21 = sphi 0, %s25
      %p22 = scmp.ge.s32.totalorder %s21, 4
      %s31 = sphi 0, %s33
      %s34 = sphi 0, %s31
      %s35 = sphi 0, %s34
      %s51 = sphi 0, %s35
      %s57 = sphi 0, %s59
      %s60 = sphi 0, %s57
      %s61 = sphi 0, %s60
      %s77 = sphi 0, %s61
      %s81 = sphi 0, %s81
      %s83 = sphi 0, %s81
      %s84 = sphi 0, %s83
      %s98 = sphi 0, %s84
      %s102 = sphi 0, %s102
      %s104 = sphi 0, %s102
      %s105 = sphi 0, %s104
      %s119 = sphi 0, %s105
      %s123 = sphi 0, %s123
      %s125 = sphi 0, %s123
      %s126 = sphi 0, %s125
      %s140 = sphi 0, %s126
      %s144 = sphi 0, %s144
      %s146 = sphi 0, %s144
      %s147 = sphi 0, %s146
      %s161 = sphi 0, %s147
      %s165 = sphi 0, %s165
      %s167 = sphi 0, %s165
      %s168 = sphi 0, %s167
      %s182 = sphi 0, %s168
      %s186 = sphi 0, %s186
      %s188 = sphi 0, %s186
      %s189 = sphi 0, %s188
      %s203 = sphi 0, %s189
      %s207 = sphi 0, %s207
      %s209 = sphi 0, %s207
      %s210 = sphi 0, %s209
      %s224 = sphi 0, %s210
      %s228 = sphi 0, %s228
      %s230 = sphi 0, %s228
      %s231 = sphi 0, %s230
      %s245 = sphi 0, %s231
      %s249 = sphi 0, %s249
      %s251 = sphi 0, %s249
      %s252 = sphi 0, %s251
      %s266 = sphi 0, %s252
      %s270 = sphi 0, %s270
      %s272 = sphi 0, %s270
      %s273 = sphi 0, %s272
      %s287 = sphi 0, %s273
      %s293 = sphi 0, %s295
      %s296 = sphi 0, %s293
      %s297 = sphi 0, %s296
      %s313 = sphi 0, %s297
    $region4: #{sepconv_gru_forward.1} parent=1 // loop_header_branch
      %24 = sbr.rel (%p22) target = $region8
    $region5: #{sepconv_gru_forward.1} parent=1 // loop_body
      %s26 = ssub.s32 %s21, 1
      %s27 = ssub.s32 %s21, 2
      %s28 = sadd.s32 %s21, 1
      %s29 = ssub.s32 %s21, %s28
      %p30 = scmp.eq.s32.totalorder %s29, 0
      %s32 = sadd.s32 %s31, 1
      %s33 = scalar_select %p30, %s31, %s32
      %p36 = pneg %p30
      %p37 = scmp.eq.s32.totalorder %s21, 1
      %p38 = por %p36, %p37
      %p39 = scmp.ne.s32.totalorder %s31, %s34
      %p40 = scmp.eq.s32.totalorder %s21, 0
      %p41 = por %p39, %p40
      %p42 = scmp.ne.s32.totalorder %s31, %s34
      %p43 = scmp.eq.s32.totalorder %s26, 1
      %p44 = por %p42, %p43
      %p45 = scmp.ne.s32.totalorder %s34, %s35
      %p46 = scmp.eq.s32.totalorder %s26, 0
      %p47 = por %p45, %p46
      %p48 = scmp.ne.s32.totalorder %s34, %s35
      %p49 = scmp.eq.s32.totalorder %s27, 1
      %p50 = por %p48, %p49
      %p52 = scmp.ne.s32.totalorder %s35, %s51
      %p53 = scmp.eq.s32.totalorder %s27, 0
      %p54 = por %p52, %p53
      %s55 = ssub.s32 %s21, %s28
      %p56 = scmp.eq.s32.totalorder %s55, 0
      %s58 = sadd.s32 %s57, 1
      %s59 = scalar_select %p56, %s57, %s58
      %p62 = pneg %p56
      %p63 = scmp.eq.s32.totalorder %s21, 1
      %p64 = por %p62, %p63
      %p65 = scmp.ne.s32.totalorder %s57, %s60
      %p66 = scmp.eq.s32.totalorder %s21, 0
      %p67 = por %p65, %p66
      %p68 = scmp.ne.s32.totalorder %s57, %s60
      %p69 = scmp.eq.s32.totalorder %s26, 1
      %p70 = por %p68, %p69
      %p71 = scmp.ne.s32.totalorder %s60, %s61
      %p72 = scmp.eq.s32.totalorder %s26, 0
      %p73 = por %p71, %p72
      %p74 = scmp.ne.s32.totalorder %s60, %s61
      %p75 = scmp.eq.s32.totalorder %s27, 1
      %p76 = por %p74, %p75
      %p78 = scmp.ne.s32.totalorder %s61, %s77
      %p79 = scmp.eq.s32.totalorder %s27, 0
      %p80 = por %p78, %p79
      %s82 = sadd.s32 %s81, 1
      %p85 = scmp.eq.s32.totalorder %s21, 1
      %p86 = scmp.ne.s32.totalorder %s81, %s83
      %p87 = scmp.eq.s32.totalorder %s21, 0
      %p88 = por %p86, %p87
      %p89 = scmp.ne.s32.totalorder %s81, %s83
      %p90 = scmp.eq.s32.totalorder %s26, 1
      %p91 = por %p89, %p90
      %p92 = scmp.ne.s32.totalorder %s83, %s84
      %p93 = scmp.eq.s32.totalorder %s26, 0
      %p94 = por %p92, %p93
      %p95 = scmp.ne.s32.totalorder %s83, %s84
      %p96 = scmp.eq.s32.totalorder %s27, 1
      %p97 = por %p95, %p96
      %p99 = scmp.ne.s32.totalorder %s84, %s98
      %p100 = scmp.eq.s32.totalorder %s27, 0
      %p101 = por %p99, %p100
      %s103 = sadd.s32 %s102, 1
      %p106 = scmp.eq.s32.totalorder %s21, 1
      %p107 = scmp.ne.s32.totalorder %s102, %s104
      %p108 = scmp.eq.s32.totalorder %s21, 0
      %p109 = por %p107, %p108
      %p110 = scmp.ne.s32.totalorder %s102, %s104
      %p111 = scmp.eq.s32.totalorder %s26, 1
      %p112 = por %p110, %p111
      %p113 = scmp.ne.s32.totalorder %s104, %s105
      %p114 = scmp.eq.s32.totalorder %s26, 0
      %p115 = por %p113, %p114
      %p116 = scmp.ne.s32.totalorder %s104, %s105
      %p117 = scmp.eq.s32.totalorder %s27, 1
      %p118 = por %p116, %p117
      %p120 = scmp.ne.s32.totalorder %s105, %s119
      %p121 = scmp.eq.s32.totalorder %s27, 0
      %p122 = por %p120, %p121
      %s124 = sadd.s32 %s123, 1
      %p127 = scmp.eq.s32.totalorder %s21, 1
      %p128 = scmp.ne.s32.totalorder %s123, %s125
      %p129 = scmp.eq.s32.totalorder %s21, 0
      %p130 = por %p128, %p129
      %p131 = scmp.ne.s32.totalorder %s123, %s125
      %p132 = scmp.eq.s32.totalorder %s26, 1
      %p133 = por %p131, %p132
      %p134 = scmp.ne.s32.totalorder %s125, %s126
      %p135 = scmp.eq.s32.totalorder %s26, 0
      %p136 = por %p134, %p135
      %p137 = scmp.ne.s32.totalorder %s125, %s126
      %p138 = scmp.eq.s32.totalorder %s27, 1
      %p139 = por %p137, %p138
      %p141 = scmp.ne.s32.totalorder %s126, %s140
      %p142 = scmp.eq.s32.totalorder %s27, 0
      %p143 = por %p141, %p142
      %s145 = sadd.s32 %s144, 1
      %p148 = scmp.eq.s32.totalorder %s21, 1
      %p149 = scmp.ne.s32.totalorder %s144, %s146
      %p150 = scmp.eq.s32.totalorder %s21, 0
      %p151 = por %p149, %p150
      %p152 = scmp.ne.s32.totalorder %s144, %s146
      %p153 = scmp.eq.s32.totalorder %s26, 1
      %p154 = por %p152, %p153
      %p155 = scmp.ne.s32.totalorder %s146, %s147
      %p156 = scmp.eq.s32.totalorder %s26, 0
      %p157 = por %p155, %p156
      %p158 = scmp.ne.s32.totalorder %s146, %s147
      %p159 = scmp.eq.s32.totalorder %s27, 1
      %p160 = por %p158, %p159
      %p162 = scmp.ne.s32.totalorder %s147, %s161
      %p163 = scmp.eq.s32.totalorder %s27, 0
      %p164 = por %p162, %p163
      %s166 = sadd.s32 %s165, 1
      %p169 = scmp.eq.s32.totalorder %s21, 1
      %p170 = scmp.ne.s32.totalorder %s165, %s167
      %p171 = scmp.eq.s32.totalorder %s21, 0
      %p172 = por %p170, %p171
      %p173 = scmp.ne.s32.totalorder %s165, %s167
      %p174 = scmp.eq.s32.totalorder %s26, 1
      %p175 = por %p173, %p174
      %p176 = scmp.ne.s32.totalorder %s167, %s168
      %p177 = scmp.eq.s32.totalorder %s26, 0
      %p178 = por %p176, %p177
      %p179 = scmp.ne.s32.totalorder %s167, %s168
      %p180 = scmp.eq.s32.totalorder %s27, 1
      %p181 = por %p179, %p180
      %p183 = scmp.ne.s32.totalorder %s168, %s182
      %p184 = scmp.eq.s32.totalorder %s27, 0
      %p185 = por %p183, %p184
      %s187 = sadd.s32 %s186, 1
      %p190 = scmp.eq.s32.totalorder %s21, 1
      %p191 = scmp.ne.s32.totalorder %s186, %s188
      %p192 = scmp.eq.s32.totalorder %s21, 0
      %p193 = por %p191, %p192
      %p194 = scmp.ne.s32.totalorder %s186, %s188
      %p195 = scmp.eq.s32.totalorder %s26, 1
      %p196 = por %p194, %p195
      %p197 = scmp.ne.s32.totalorder %s188, %s189
      %p198 = scmp.eq.s32.totalorder %s26, 0
      %p199 = por %p197, %p198
      %p200 = scmp.ne.s32.totalorder %s188, %s189
      %p201 = scmp.eq.s32.totalorder %s27, 1
      %p202 = por %p200, %p201
      %p204 = scmp.ne.s32.totalorder %s189, %s203
      %p205 = scmp.eq.s32.totalorder %s27, 0
      %p206 = por %p204, %p205
      %s208 = sadd.s32 %s207, 1
      %p211 = scmp.eq.s32.totalorder %s21, 1
      %p212 = scmp.ne.s32.totalorder %s207, %s209
      %p213 = scmp.eq.s32.totalorder %s21, 0
      %p214 = por %p212, %p213
      %p215 = scmp.ne.s32.totalorder %s207, %s209
      %p216 = scmp.eq.s32.totalorder %s26, 1
      %p217 = por %p215, %p216
      %p218 = scmp.ne.s32.totalorder %s209, %s210
      %p219 = scmp.eq.s32.totalorder %s26, 0
      %p220 = por %p218, %p219
      %p221 = scmp.ne.s32.totalorder %s209, %s210
      %p222 = scmp.eq.s32.totalorder %s27, 1
      %p223 = por %p221, %p222
      %p225 = scmp.ne.s32.totalorder %s210, %s224
      %p226 = scmp.eq.s32.totalorder %s27, 0
      %p227 = por %p225, %p226
      %s229 = sadd.s32 %s228, 1
      %p232 = scmp.eq.s32.totalorder %s21, 1
      %p233 = scmp.ne.s32.totalorder %s228, %s230
      %p234 = scmp.eq.s32.totalorder %s21, 0
      %p235 = por %p233, %p234
      %p236 = scmp.ne.s32.totalorder %s228, %s230
      %p237 = scmp.eq.s32.totalorder %s26, 1
      %p238 = por %p236, %p237
      %p239 = scmp.ne.s32.totalorder %s230, %s231
      %p240 = scmp.eq.s32.totalorder %s26, 0
      %p241 = por %p239, %p240
      %p242 = scmp.ne.s32.totalorder %s230, %s231
      %p243 = scmp.eq.s32.totalorder %s27, 1
      %p244 = por %p242, %p243
      %p246 = scmp.ne.s32.totalorder %s231, %s245
      %p247 = scmp.eq.s32.totalorder %s27, 0
      %p248 = por %p246, %p247
      %s250 = sadd.s32 %s249, 1
      %p253 = scmp.eq.s32.totalorder %s21, 1
      %p254 = scmp.ne.s32.totalorder %s249, %s251
      %p255 = scmp.eq.s32.totalorder %s21, 0
      %p256 = por %p254, %p255
      %p257 = scmp.ne.s32.totalorder %s249, %s251
      %p258 = scmp.eq.s32.totalorder %s26, 1
      %p259 = por %p257, %p258
      %p260 = scmp.ne.s32.totalorder %s251, %s252
      %p261 = scmp.eq.s32.totalorder %s26, 0
      %p262 = por %p260, %p261
      %p263 = scmp.ne.s32.totalorder %s251, %s252
      %p264 = scmp.eq.s32.totalorder %s27, 1
      %p265 = por %p263, %p264
      %p267 = scmp.ne.s32.totalorder %s252, %s266
      %p268 = scmp.eq.s32.totalorder %s27, 0
      %p269 = por %p267, %p268
      %s271 = sadd.s32 %s270, 1
      %p274 = scmp.eq.s32.totalorder %s21, 1
      %p275 = scmp.ne.s32.totalorder %s270, %s272
      %p276 = scmp.eq.s32.totalorder %s21, 0
      %p277 = por %p275, %p276
      %p278 = scmp.ne.s32.totalorder %s270, %s272
      %p279 = scmp.eq.s32.totalorder %s26, 1
      %p280 = por %p278, %p279
      %p281 = scmp.ne.s32.totalorder %s272, %s273
      %p282 = scmp.eq.s32.totalorder %s26, 0
      %p283 = por %p281, %p282
      %p284 = scmp.ne.s32.totalorder %s272, %s273
      %p285 = scmp.eq.s32.totalorder %s27, 1
      %p286 = por %p284, %p285
      %p288 = scmp.ne.s32.totalorder %s273, %s287
      %p289 = scmp.eq.s32.totalorder %s27, 0
      %p290 = por %p288, %p289
      %s291 = ssub.s32 %s21, %s28
      %p292 = scmp.eq.s32.totalorder %s291, 0
      %s294 = sadd.s32 %s293, 1
      %s295 = scalar_select %p292, %s293, %s294
      %p298 = pneg %p292
      %p299 = scmp.eq.s32.totalorder %s21, 1
      %p300 = por %p298, %p299
      %p301 = scmp.ne.s32.totalorder %s293, %s296
      %p302 = scmp.eq.s32.totalorder %s21, 0
      %p303 = por %p301, %p302
      %p304 = scmp.ne.s32.totalorder %s293, %s296
      %p305 = scmp.eq.s32.totalorder %s26, 1
      %p306 = por %p304, %p305
      %p307 = scmp.ne.s32.totalorder %s296, %s297
      %p308 = scmp.eq.s32.totalorder %s26, 0
      %p309 = por %p307, %p308
      %p310 = scmp.ne.s32.totalorder %s296, %s297
      %p311 = scmp.eq.s32.totalorder %s27, 1
      %p312 = por %p310, %p311
      %p314 = scmp.ne.s32.totalorder %s297, %s313
      %p315 = scmp.eq.s32.totalorder %s27, 0
      %p316 = por %p314, %p315
      %p317 = scmp.le.s32.totalorder 1, %s21
      %p318 = scmp.lt.s32.totalorder %s21, 3
      %p319 = pnand %p317, %p318
      %p320 = pneg %p319
      // Predicated region
      $region9: #{sepconv_gru_forward.1} parent=5 // pred_check
        _
      $region10: #{sepconv_gru_forward.1} parent=5 // pred_check_branch
        %322 = sbr.rel (%p319) target = $region12
      $region11: #{sepconv_gru_forward.1} parent=5 // pred_region
        %s323 = ssub.s32 %s21, 1
        // Predicated region
        $region13: #{sepconv_gru_forward.1} parent=11 // pred_check
          %p324 = pneg %p94
        $region14: #{sepconv_gru_forward.1} parent=11 // pred_check_branch
          %326 = sbr.rel (%p324) target = $region16
        $region15: #{sepconv_gru_forward.1} parent=11 // pred_region
          %328 = vsyncadd [#allocation3], 0
          %s329 = sshll.u32 %s2, 4
          %s330 = int_to_ptr.hbm [resolvable:$true] %s329
          %s331 = sshll.u32 [#allocation2], 4
          %s332 = int_to_ptr.vmem [resolvable:$true] %s331
          %337 = dma.hbm_to_vmem [thread:$0]  %s330, 12288, %s332, [#allocation3], 384, 384, 24
        $region16: #{sepconv_gru_forward.1} parent=11 // pred_fallthru
          _
        // Predicated region
        $region17: #{sepconv_gru_forward.1} parent=11 // pred_check
          %p338 = pneg %p115
        $region18: #{sepconv_gru_forward.1} parent=11 // pred_check_branch
          %340 = sbr.rel (%p338) target = $region20
        $region19: #{sepconv_gru_forward.1} parent=11 // pred_region
          _
        $region20: #{sepconv_gru_forward.1} parent=11 // pred_fallthru
          _
        // Predicated region
        $region21: #{sepconv_gru_forward.1} parent=11 // pred_check
          %p341 = pneg %p136
        $region22: #{sepconv_gru_forward.1} parent=11 // pred_check_branch
          %343 = sbr.rel (%p341) target = $region24
        $region23: #{sepconv_gru_forward.1} parent=11 // pred_region
          _
        $region24: #{sepconv_gru_forward.1} parent=11 // pred_fallthru
          _
        // Predicated region
        $region25: #{sepconv_gru_forward.1} parent=11 // pred_check
          %p344 = pneg %p157
        $region26: #{sepconv_gru_forward.1} parent=11 // pred_check_branch
          %346 = sbr.rel (%p344) target = $region28
        $region27: #{sepconv_gru_forward.1} parent=11 // pred_region
          %348 = vsyncadd [#allocation5], 0
          %s349 = sshll.u32 %s5, 4
          %s350 = int_to_ptr.hbm [resolvable:$true] %s349
          %s351 = sshll.u32 [#allocation4], 4
          %s352 = int_to_ptr.vmem [resolvable:$true] %s351
          %357 = dma.hbm_to_vmem [thread:$0]  %s350, 3072, %s352, [#allocation5], 192, 192, 12
        $region28: #{sepconv_gru_forward.1} parent=11 // pred_fallthru
          _
        // Predicated region
        $region29: #{sepconv_gru_forward.1} parent=11 // pred_check
          %p358 = pneg %p178
        $region30: #{sepconv_gru_forward.1} parent=11 // pred_check_branch
          %360 = sbr.rel (%p358) target = $region32
        $region31: #{sepconv_gru_forward.1} parent=11 // pred_region
          _
        $region32: #{sepconv_gru_forward.1} parent=11 // pred_fallthru
          _
        // Predicated region
        $region33: #{sepconv_gru_forward.1} parent=11 // pred_check
          %p361 = pneg %p199
        $region34: #{sepconv_gru_forward.1} parent=11 // pred_check_branch
          %363 = sbr.rel (%p361) target = $region36
        $region35: #{sepconv_gru_forward.1} parent=11 // pred_region
          %365 = vsyncadd [#allocation5], 0
          %s366 = sshll.u32 %s7, 4
          %s367 = int_to_ptr.hbm [resolvable:$true] %s366
          %s368 = sshll.u32 [#allocation6], 4
          %s369 = int_to_ptr.vmem [resolvable:$true] %s368
          %374 = dma.hbm_to_vmem [thread:$0]  %s367, 12288, %s369, [#allocation5], 384, 384, 24
        $region36: #{sepconv_gru_forward.1} parent=11 // pred_fallthru
          _
        // Predicated region
        $region37: #{sepconv_gru_forward.1} parent=11 // pred_check
          %p375 = pneg %p220
        $region38: #{sepconv_gru_forward.1} parent=11 // pred_check_branch
          %377 = sbr.rel (%p375) target = $region40
        $region39: #{sepconv_gru_forward.1} parent=11 // pred_region
          _
        $region40: #{sepconv_gru_forward.1} parent=11 // pred_fallthru
          _
        // Predicated region
        $region41: #{sepconv_gru_forward.1} parent=11 // pred_check
          %p378 = pneg %p241
        $region42: #{sepconv_gru_forward.1} parent=11 // pred_check_branch
          %380 = sbr.rel (%p378) target = $region44
        $region43: #{sepconv_gru_forward.1} parent=11 // pred_region
          %382 = vsyncadd [#allocation8], 0
          %s383 = sshll.u32 %s9, 4
          %s384 = int_to_ptr.hbm [resolvable:$true] %s383
          %s385 = sshll.u32 [#allocation7], 4
          %s386 = int_to_ptr.vmem [resolvable:$true] %s385
          %391 = dma.hbm_to_vmem [thread:$0]  %s384, 3072, %s386, [#allocation8], 192, 192, 12
        $region44: #{sepconv_gru_forward.1} parent=11 // pred_fallthru
          _
        // Predicated region
        $region45: #{sepconv_gru_forward.1} parent=11 // pred_check
          %p392 = pneg %p262
        $region46: #{sepconv_gru_forward.1} parent=11 // pred_check_branch
          %394 = sbr.rel (%p392) target = $region48
        $region47: #{sepconv_gru_forward.1} parent=11 // pred_region
          %396 = vsyncadd [#allocation8], 0
          %s397 = sshll.u32 %s10, 4
          %s398 = int_to_ptr.hbm [resolvable:$true] %s397
          %s399 = sshll.u32 [#allocation9], 4
          %s400 = int_to_ptr.vmem [resolvable:$true] %s399
          %405 = dma.hbm_to_vmem [thread:$0]  %s398, 3072, %s400, [#allocation8], 192, 192, 12
        $region48: #{sepconv_gru_forward.1} parent=11 // pred_fallthru
          _
        // Predicated region
        $region49: #{sepconv_gru_forward.1} parent=11 // pred_check
          %p406 = pneg %p283
        $region50: #{sepconv_gru_forward.1} parent=11 // pred_check_branch
          %408 = sbr.rel (%p406) target = $region52
        $region51: #{sepconv_gru_forward.1} parent=11 // pred_region
          _
        $region52: #{sepconv_gru_forward.1} parent=11 // pred_fallthru
          _
      $region12: #{sepconv_gru_forward.1} parent=5 // pred_fallthru
        _
      %p409 = scmp.lt.s32.totalorder %s21, 2
      // Predicated region
      $region53: #{sepconv_gru_forward.1} parent=5 // pred_check
        %p410 = pneg %p409
      $region54: #{sepconv_gru_forward.1} parent=5 // pred_check_branch
        %412 = sbr.rel (%p410) target = $region56
      $region55: #{sepconv_gru_forward.1} parent=5 // pred_region
        // Predicated region
        $region57: #{sepconv_gru_forward.1} parent=55 // pred_check
          %p413 = pneg %p41
        $region58: #{sepconv_gru_forward.1} parent=55 // pred_check_branch
          %415 = sbr.rel (%p413) target = $region60
        $region59: #{sepconv_gru_forward.1} parent=55 // pred_region
          %p416 = scmp.lt.s32.totalorder %s21, 1
          %s417 = scalar_select %p416, %s21, 1
          %s418 = smul.addr %s417, 8
          %s419 = smul.addr %s418, 4
          %s420 = scalar_lea.vmem %s0, %s419
        $region60: #{sepconv_gru_forward.1} parent=55 // pred_fallthru
          _
        // Predicated region
        $region61: #{sepconv_gru_forward.1} parent=55 // pred_check
          %p421 = pneg %p67
        $region62: #{sepconv_gru_forward.1} parent=55 // pred_check_branch
          %423 = sbr.rel (%p421) target = $region64
        $region63: #{sepconv_gru_forward.1} parent=55 // pred_region
          %p424 = scmp.lt.s32.totalorder %s21, 1
          %s425 = scalar_select %p424, %s21, 1
          %s426 = smul.addr %s425, 8
          %s427 = smul.addr %s426, 4
          %s428 = scalar_lea.vmem %s1, %s427
        $region64: #{sepconv_gru_forward.1} parent=55 // pred_fallthru
          _
      $region56: #{sepconv_gru_forward.1} parent=5 // pred_fallthru
        _
      %p429 = scmp.le.s32.totalorder 1, %s21
      %p430 = scmp.lt.s32.totalorder %s21, 3
      %p431 = pnand %p429, %p430
      %p432 = pneg %p431
      // Predicated region
      $region65: #{sepconv_gru_forward.1} parent=5 // pred_check
        _
      $region66: #{sepconv_gru_forward.1} parent=5 // pred_check_branch
        %434 = sbr.rel (%p431) target = $region68
      $region67: #{sepconv_gru_forward.1} parent=5 // pred_region
        %s435 = ssub.s32 %s21, 1
        // Predicated region
        $region69: #{sepconv_gru_forward.1} parent=67 // pred_check
          %p436 = pneg %p94
        $region70: #{sepconv_gru_forward.1} parent=67 // pred_check_branch
          %438 = sbr.rel (%p436) target = $region72
        $region71: #{sepconv_gru_forward.1} parent=67 // pred_region
          %440 = dma.done [#allocation3], 12288
        $region72: #{sepconv_gru_forward.1} parent=67 // pred_fallthru
          _
        // Predicated region
        $region73: #{sepconv_gru_forward.1} parent=67 // pred_check
          %p441 = pneg %p157
        $region74: #{sepconv_gru_forward.1} parent=67 // pred_check_branch
          %443 = sbr.rel (%p441) target = $region76
        $region75: #{sepconv_gru_forward.1} parent=67 // pred_region
          %445 = dma.done [#allocation5], 3072
        $region76: #{sepconv_gru_forward.1} parent=67 // pred_fallthru
          _
        // Predicated region
        $region77: #{sepconv_gru_forward.1} parent=67 // pred_check
          %p446 = pneg %p199
        $region78: #{sepconv_gru_forward.1} parent=67 // pred_check_branch
          %448 = sbr.rel (%p446) target = $region80
        $region79: #{sepconv_gru_forward.1} parent=67 // pred_region
          %450 = dma.done [#allocation5], 12288
        $region80: #{sepconv_gru_forward.1} parent=67 // pred_fallthru
          _
        // Predicated region
        $region81: #{sepconv_gru_forward.1} parent=67 // pred_check
          %p451 = pneg %p241
        $region82: #{sepconv_gru_forward.1} parent=67 // pred_check_branch
          %453 = sbr.rel (%p451) target = $region84
        $region83: #{sepconv_gru_forward.1} parent=67 // pred_region
          %455 = dma.done [#allocation8], 3072
        $region84: #{sepconv_gru_forward.1} parent=67 // pred_fallthru
          _
        // Predicated region
        $region85: #{sepconv_gru_forward.1} parent=67 // pred_check
          %p456 = pneg %p262
        $region86: #{sepconv_gru_forward.1} parent=67 // pred_check_branch
          %458 = sbr.rel (%p456) target = $region88
        $region87: #{sepconv_gru_forward.1} parent=67 // pred_region
          %460 = dma.done [#allocation8], 3072
        $region88: #{sepconv_gru_forward.1} parent=67 // pred_fallthru
          _
        %p461 = scmp.lt.s32.totalorder %s26, 1
        %s462 = scalar_select %p461, %s26, 1
        %s463 = smul.addr %s462, 8
        %s464 = smul.addr %s463, 4
        %s465 = scalar_lea.vmem %s0, %s464
        %p466 = pneg %p47
        %p467 = pneg %p44
        %p468 = scmp.lt.s32.totalorder %s26, 1
        %s469 = scalar_select %p468, %s26, 1
        %s470 = smul.addr %s469, 8
        %s471 = smul.addr %s470, 4
        %s472 = scalar_lea.vmem %s1, %s471
        %p473 = pneg %p73
        %p474 = pneg %p70
        %p475 = pneg %p94
        %p476 = pneg %p91
        %p477 = pneg %p115
        %p478 = pneg %p112
        %p479 = pneg %p136
        %p480 = pneg %p133
        %p481 = pneg %p157
        %p482 = pneg %p154
        %p483 = pneg %p178
        %p484 = pneg %p175
        %p485 = pneg %p199
        %p486 = pneg %p196
        %p487 = pneg %p220
        %p488 = pneg %p217
        %p489 = pneg %p241
        %p490 = pneg %p238
        %p491 = pneg %p262
        %p492 = pneg %p259
        %p493 = pneg %p283
        %p494 = pneg %p280
        %p495 = pneg %p309
        %p496 = pneg %p306
        %p497 = scmp.lt.s32.totalorder %s26, 1
        %s498 = scalar_select %p497, %s26, 1
        %s499 = smul.addr %s498, 8
        %s500 = smul.addr %s499, 4
        %s501 = scalar_lea.vmem %s12, %s500
        %p502 = scmp.lt.s32.totalorder %s26, 1
        %s503 = scalar_select %p502, %s26, 1
        %s504 = smul.addr %s503, 8
        %s505 = smul.addr %s504, 4
        %s506 = scalar_lea.vmem %s0, %s505
        %p507 = scmp.lt.s32.totalorder %s26, 1
        %s508 = scalar_select %p507, %s26, 1
        %s509 = smul.addr %s508, 8
        %s510 = smul.addr %s509, 4
        %s511 = scalar_lea.vmem %s1, %s510
        %p512 = scmp.lt.s32.totalorder %s26, 1
        %s513 = scalar_select %p512, %s26, 1
        %s514 = smul.addr %s513, 8
        %s515 = smul.addr %s514, 4
        %s516 = scalar_lea.vmem %s12, %s515
        %v517 = vld [vmem:[%s506] sm:$0xf]
        %v518 = vld [vmem:[%s506 + $0x4] sm:$0xf]
        %v519 = vld [vmem:[%s506 + $0x8] sm:$0xf]
        %v520 = vld [vmem:[%s506 + $0xc] sm:$0xf]
        %v521 = vld [vmem:[%s506 + $0x10] sm:$0xf]
        %v522 = vld [vmem:[%s506 + $0x14] sm:$0xf]
        %v523 = vld [vmem:[%s506 + $0x18] sm:$0xf]
        %v524 = vld [vmem:[%s506 + $0x1c] sm:$0xf]
        %v525 = vunpack.c.l.bf16 %v517
        %v526 = vunpack.c.l.bf16 %v518
        %v527 = vunpack.c.l.bf16 %v519
        %v528 = vunpack.c.l.bf16 %v520
        %v529 = vunpack.c.l.bf16 %v521
        %v530 = vunpack.c.l.bf16 %v522
        %v531 = vunpack.c.l.bf16 %v523
        %v532 = vunpack.c.l.bf16 %v524
        %v533 = vpack.c.bf16 %v525, %v525
        %v534 = vpack.c.bf16 %v526, %v526
        %v535 = vpack.c.bf16 %v527, %v527
        %v536 = vpack.c.bf16 %v528, %v528
        %v537 = vpack.c.bf16 %v529, %v529
        %v538 = vpack.c.bf16 %v530, %v530
        %v539 = vpack.c.bf16 %v531, %v531
        %v540 = vpack.c.bf16 %v532, %v532
        %v541 = vld [vmem:[%s511] sm:$0xf]
        %v542 = vld [vmem:[%s511 + $0x4] sm:$0xf]
        %v543 = vld [vmem:[%s511 + $0x8] sm:$0xf]
        %v544 = vld [vmem:[%s511 + $0xc] sm:$0xf]
        %v545 = vld [vmem:[%s511 + $0x10] sm:$0xf]
        %v546 = vld [vmem:[%s511 + $0x14] sm:$0xf]
        %v547 = vld [vmem:[%s511 + $0x18] sm:$0xf]
        %v548 = vld [vmem:[%s511 + $0x1c] sm:$0xf]
        %v549 = vunpack.c.l.bf16 %v541
        %v550 = vunpack.c.l.bf16 %v542
        %v551 = vunpack.c.l.bf16 %v543
        %v552 = vunpack.c.l.bf16 %v544
        %v553 = vunpack.c.l.bf16 %v545
        %v554 = vunpack.c.l.bf16 %v546
        %v555 = vunpack.c.l.bf16 %v547
        %v556 = vunpack.c.l.bf16 %v548
        %v557 = vpack.c.bf16 %v549, %v549
        %v558 = vpack.c.bf16 %v550, %v550
        %v559 = vpack.c.bf16 %v551, %v551
        %v560 = vpack.c.bf16 %v552, %v552
        %v561 = vpack.c.bf16 %v553, %v553
        %v562 = vpack.c.bf16 %v554, %v554
        %v563 = vpack.c.bf16 %v555, %v555
        %v564 = vpack.c.bf16 %v556, %v556
        %v565 = vlaneseq
        %v566 = vshrl.u32 %v565, 7
        %v567 = vld [vmem:[#allocation2] sm:$0xff]
        %v568 = vld [vmem:[#allocation2 + $0x8] sm:$0xff]
        %v569 = vld [vmem:[#allocation2 + $0x10] sm:$0xff]
        %v570 = vld [vmem:[#allocation2 + $0x18] sm:$0xff]
        %v571 = vld [vmem:[#allocation2 + $0x20] sm:$0xff]
        %v572 = vld [vmem:[#allocation2 + $0x28] sm:$0xff]
        %v573 = vld [vmem:[#allocation2 + $0x30] sm:$0xff]
        %v574 = vld [vmem:[#allocation2 + $0x38] sm:$0xff]
        %v575 = vld [vmem:[#allocation2 + $0x40] sm:$0xff]
        %v576 = vld [vmem:[#allocation2 + $0x48] sm:$0xff]
        %v577 = vld [vmem:[#allocation2 + $0x50] sm:$0xff]
        %v578 = vld [vmem:[#allocation2 + $0x58] sm:$0xff]
        %v579 = vld [vmem:[#allocation2 + $0x60] sm:$0xff]
        %v580 = vld [vmem:[#allocation2 + $0x68] sm:$0xff]
        %v581 = vld [vmem:[#allocation2 + $0x70] sm:$0xff]
        %v582 = vld [vmem:[#allocation2 + $0x78] sm:$0xff]
        %v583 = vld [vmem:[#allocation2 + $0x80] sm:$0xff]
        %v584 = vld [vmem:[#allocation2 + $0x88] sm:$0xff]
        %v585 = vld [vmem:[#allocation2 + $0x90] sm:$0xff]
        %v586 = vld [vmem:[#allocation2 + $0x98] sm:$0xff]
        %v587 = vld [vmem:[#allocation2 + $0xa0] sm:$0xff]
        %v588 = vld [vmem:[#allocation2 + $0xa8] sm:$0xff]
        %v589 = vld [vmem:[#allocation2 + $0xb0] sm:$0xff]
        %v590 = vld [vmem:[#allocation2 + $0xb8] sm:$0xff]
        %v591 = vld [vmem:[#allocation2 + $0xc0] sm:$0xff]
        %v592 = vld [vmem:[#allocation2 + $0xc8] sm:$0xff]
        %v593 = vld [vmem:[#allocation2 + $0xd0] sm:$0xff]
        %v594 = vld [vmem:[#allocation2 + $0xd8] sm:$0xff]
        %v595 = vld [vmem:[#allocation2 + $0xe0] sm:$0xff]
        %v596 = vld [vmem:[#allocation2 + $0xe8] sm:$0xff]
        %v597 = vld [vmem:[#allocation2 + $0xf0] sm:$0xff]
        %v598 = vld [vmem:[#allocation2 + $0xf8] sm:$0xff]
        %v599 = vld [vmem:[#allocation2 + $0x100] sm:$0xff]
        %v600 = vld [vmem:[#allocation2 + $0x108] sm:$0xff]
        %v601 = vld [vmem:[#allocation2 + $0x110] sm:$0xff]
        %v602 = vld [vmem:[#allocation2 + $0x118] sm:$0xff]
        %v603 = vld [vmem:[#allocation2 + $0x120] sm:$0xff]
        %v604 = vld [vmem:[#allocation2 + $0x128] sm:$0xff]
        %v605 = vld [vmem:[#allocation2 + $0x130] sm:$0xff]
        %v606 = vld [vmem:[#allocation2 + $0x138] sm:$0xff]
        %v607 = vld [vmem:[#allocation2 + $0x140] sm:$0xff]
        %v608 = vld [vmem:[#allocation2 + $0x148] sm:$0xff]
        %v609 = vld [vmem:[#allocation2 + $0x150] sm:$0xff]
        %v610 = vld [vmem:[#allocation2 + $0x158] sm:$0xff]
        %v611 = vld [vmem:[#allocation2 + $0x160] sm:$0xff]
        %v612 = vld [vmem:[#allocation2 + $0x168] sm:$0xff]
        %v613 = vld [vmem:[#allocation2 + $0x170] sm:$0xff]
        %v614 = vld [vmem:[#allocation2 + $0x178] sm:$0xff]
        %v615 = vld [vmem:[#allocation2 + $0x180] sm:$0xff]
        %v616 = vld [vmem:[#allocation2 + $0x188] sm:$0xff]
        %v617 = vld [vmem:[#allocation2 + $0x190] sm:$0xff]
        %v618 = vld [vmem:[#allocation2 + $0x198] sm:$0xff]
        %v619 = vld [vmem:[#allocation2 + $0x1a0] sm:$0xff]
        %v620 = vld [vmem:[#allocation2 + $0x1a8] sm:$0xff]
        %v621 = vld [vmem:[#allocation2 + $0x1b0] sm:$0xff]
        %v622 = vld [vmem:[#allocation2 + $0x1b8] sm:$0xff]
        %v623 = vld [vmem:[#allocation2 + $0x1c0] sm:$0xff]
        %v624 = vld [vmem:[#allocation2 + $0x1c8] sm:$0xff]
        %v625 = vld [vmem:[#allocation2 + $0x1d0] sm:$0xff]
        %v626 = vld [vmem:[#allocation2 + $0x1d8] sm:$0xff]
        %v627 = vld [vmem:[#allocation2 + $0x1e0] sm:$0xff]
        %v628 = vld [vmem:[#allocation2 + $0x1e8] sm:$0xff]
        %v629 = vld [vmem:[#allocation2 + $0x1f0] sm:$0xff]
        %v630 = vld [vmem:[#allocation2 + $0x1f8] sm:$0xff]
        %v631 = vld [vmem:[#allocation2 + $0x200] sm:$0xff]
        %v632 = vld [vmem:[#allocation2 + $0x208] sm:$0xff]
        %v633 = vld [vmem:[#allocation2 + $0x210] sm:$0xff]
        %v634 = vld [vmem:[#allocation2 + $0x218] sm:$0xff]
        %v635 = vld [vmem:[#allocation2 + $0x220] sm:$0xff]
        %v636 = vld [vmem:[#allocation2 + $0x228] sm:$0xff]
        %v637 = vld [vmem:[#allocation2 + $0x230] sm:$0xff]
        %v638 = vld [vmem:[#allocation2 + $0x238] sm:$0xff]
        %v639 = vld [vmem:[#allocation2 + $0x240] sm:$0xff]
        %v640 = vld [vmem:[#allocation2 + $0x248] sm:$0xff]
        %v641 = vld [vmem:[#allocation2 + $0x250] sm:$0xff]
        %v642 = vld [vmem:[#allocation2 + $0x258] sm:$0xff]
        %v643 = vld [vmem:[#allocation2 + $0x260] sm:$0xff]
        %v644 = vld [vmem:[#allocation2 + $0x268] sm:$0xff]
        %v645 = vld [vmem:[#allocation2 + $0x270] sm:$0xff]
        %v646 = vld [vmem:[#allocation2 + $0x278] sm:$0xff]
        %v647 = vld [vmem:[#allocation2 + $0x280] sm:$0xff]
        %v648 = vld [vmem:[#allocation2 + $0x288] sm:$0xff]
        %v649 = vld [vmem:[#allocation2 + $0x290] sm:$0xff]
        %v650 = vld [vmem:[#allocation2 + $0x298] sm:$0xff]
        %v651 = vld [vmem:[#allocation2 + $0x2a0] sm:$0xff]
        %v652 = vld [vmem:[#allocation2 + $0x2a8] sm:$0xff]
        %v653 = vld [vmem:[#allocation2 + $0x2b0] sm:$0xff]
        %v654 = vld [vmem:[#allocation2 + $0x2b8] sm:$0xff]
        %v655 = vld [vmem:[#allocation2 + $0x2c0] sm:$0xff]
        %v656 = vld [vmem:[#allocation2 + $0x2c8] sm:$0xff]
        %v657 = vld [vmem:[#allocation2 + $0x2d0] sm:$0xff]
        %v658 = vld [vmem:[#allocation2 + $0x2d8] sm:$0xff]
        %v659 = vld [vmem:[#allocation2 + $0x2e0] sm:$0xff]
        %v660 = vld [vmem:[#allocation2 + $0x2e8] sm:$0xff]
        %v661 = vld [vmem:[#allocation2 + $0x2f0] sm:$0xff]
        %v662 = vld [vmem:[#allocation2 + $0x2f8] sm:$0xff]
        %v663 = vld [vmem:[%s3] sm:$0x3]
        %v664 = vld [vmem:[%s4] sm:$0xff]
        %v665 = vld [vmem:[%s4 + $0x8] sm:$0xf]
        %v666 = vld [vmem:[%s4 + $0xc] sm:$0xff]
        %v667 = vld [vmem:[%s4 + $0x14] sm:$0xf]
        %v668 = vld [vmem:[%s4 + $0x18] sm:$0xff]
        %v669 = vld [vmem:[%s4 + $0x20] sm:$0xf]
        %v670 = vld [vmem:[%s4 + $0x24] sm:$0xff]
        %v671 = vld [vmem:[%s4 + $0x2c] sm:$0xf]
        %v672 = vld [vmem:[%s4 + $0x30] sm:$0xff]
        %v673 = vld [vmem:[%s4 + $0x38] sm:$0xf]
        %v674 = vld [vmem:[%s4 + $0x3c] sm:$0xff]
        %v675 = vld [vmem:[%s4 + $0x44] sm:$0xf]
        %v676 = vld [vmem:[%s4 + $0x48] sm:$0xff]
        %v677 = vld [vmem:[%s4 + $0x50] sm:$0xf]
        %v678 = vld [vmem:[%s4 + $0x54] sm:$0xff]
        %v679 = vld [vmem:[%s4 + $0x5c] sm:$0xf]
        %v680 = vld [vmem:[%s4 + $0x60] sm:$0xff]
        %v681 = vld [vmem:[%s4 + $0x68] sm:$0xf]
        %v682 = vld [vmem:[%s4 + $0x6c] sm:$0xff]
        %v683 = vld [vmem:[%s4 + $0x74] sm:$0xf]
        %v684 = vld [vmem:[%s4 + $0x78] sm:$0xff]
        %v685 = vld [vmem:[%s4 + $0x80] sm:$0xf]
        %v686 = vld [vmem:[%s4 + $0x84] sm:$0xff]
        %v687 = vld [vmem:[%s4 + $0x8c] sm:$0xf]
        %v688 = vld [vmem:[%s4 + $0x90] sm:$0xff]
        %v689 = vld [vmem:[%s4 + $0x98] sm:$0xf]
        %v690 = vld [vmem:[%s4 + $0x9c] sm:$0xff]
        %v691 = vld [vmem:[%s4 + $0xa4] sm:$0xf]
        %v692 = vld [vmem:[%s4 + $0xa8] sm:$0xff]
        %v693 = vld [vmem:[%s4 + $0xb0] sm:$0xf]
        %v694 = vld [vmem:[%s4 + $0xb4] sm:$0xff]
        %v695 = vld [vmem:[%s4 + $0xbc] sm:$0xf]
        %v696 = vld [vmem:[#allocation4] sm:$0xff]
        %v697 = vld [vmem:[#allocation4 + $0x8] sm:$0xf]
        %v698 = vld [vmem:[#allocation4 + $0xc] sm:$0xff]
        %v699 = vld [vmem:[#allocation4 + $0x14] sm:$0xf]
        %v700 = vld [vmem:[#allocation4 + $0x18] sm:$0xff]
        %v701 = vld [vmem:[#allocation4 + $0x20] sm:$0xf]
        %v702 = vld [vmem:[#allocation4 + $0x24] sm:$0xff]
        %v703 = vld [vmem:[#allocation4 + $0x2c] sm:$0xf]
        %v704 = vld [vmem:[#allocation4 + $0x30] sm:$0xff]
        %v705 = vld [vmem:[#allocation4 + $0x38] sm:$0xf]
        %v706 = vld [vmem:[#allocation4 + $0x3c] sm:$0xff]
        %v707 = vld [vmem:[#allocation4 + $0x44] sm:$0xf]
        %v708 = vld [vmem:[#allocation4 + $0x48] sm:$0xff]
        %v709 = vld [vmem:[#allocation4 + $0x50] sm:$0xf]
        %v710 = vld [vmem:[#allocation4 + $0x54] sm:$0xff]
        %v711 = vld [vmem:[#allocation4 + $0x5c] sm:$0xf]
        %v712 = vld [vmem:[#allocation4 + $0x60] sm:$0xff]
        %v713 = vld [vmem:[#allocation4 + $0x68] sm:$0xf]
        %v714 = vld [vmem:[#allocation4 + $0x6c] sm:$0xff]
        %v715 = vld [vmem:[#allocation4 + $0x74] sm:$0xf]
        %v716 = vld [vmem:[#allocation4 + $0x78] sm:$0xff]
        %v717 = vld [vmem:[#allocation4 + $0x80] sm:$0xf]
        %v718 = vld [vmem:[#allocation4 + $0x84] sm:$0xff]
        %v719 = vld [vmem:[#allocation4 + $0x8c] sm:$0xf]
        %v720 = vld [vmem:[#allocation4 + $0x90] sm:$0xff]
        %v721 = vld [vmem:[#allocation4 + $0x98] sm:$0xf]
        %v722 = vld [vmem:[#allocation4 + $0x9c] sm:$0xff]
        %v723 = vld [vmem:[#allocation4 + $0xa4] sm:$0xf]
        %v724 = vld [vmem:[#allocation4 + $0xa8] sm:$0xff]
        %v725 = vld [vmem:[#allocation4 + $0xb0] sm:$0xf]
        %v726 = vld [vmem:[#allocation4 + $0xb4] sm:$0xff]
        %v727 = vld [vmem:[#allocation4 + $0xbc] sm:$0xf]
        %v728 = vld [vmem:[%s6] sm:$0x1]
        %vm729 = vcmp.eq.s32.totalorder %v566, 0
        %vm730 = vcmp.eq.s32.totalorder %v566, 7
        %v739 = vunpack.c.l.b16 %v533
        %v740 = vunpack.c.l.b16 %v534
        %v741 = vunpack.c.l.b16 %v535
        %v742 = vunpack.c.l.b16 %v536
        %v743 = vunpack.c.l.b16 %v537
        %v744 = vunpack.c.l.b16 %v538
        %v745 = vunpack.c.l.b16 %v539
        %v746 = vunpack.c.l.b16 %v540
        %v747 = vpack.c.b16 %v740, %v739
        %v748 = vpack.c.b16 %v742, %v741
        %v749 = vpack.c.b16 %v744, %v743
        %v750 = vpack.c.b16 %v746, %v745
        %v763 = vunpack.c.l.b16 %v557
        %v764 = vunpack.c.l.b16 %v558
        %v765 = vunpack.c.l.b16 %v559
        %v766 = vunpack.c.l.b16 %v560
        %v767 = vunpack.c.l.b16 %v561
        %v768 = vunpack.c.l.b16 %v562
        %v769 = vunpack.c.l.b16 %v563
        %v770 = vunpack.c.l.b16 %v564
        %v771 = vpack.c.b16 %v764, %v763
        %v772 = vpack.c.b16 %v766, %v765
        %v773 = vpack.c.b16 %v768, %v767
        %v774 = vpack.c.b16 %v770, %v769
        %v875 = vunpack.c.l.b16 %v567
        %v876 = vunpack.c.h.b16 %v567
        %v877 = vunpack.c.l.b16 %v568
        %v878 = vunpack.c.h.b16 %v568
        %v879 = vunpack.c.l.b16 %v569
        %v880 = vunpack.c.h.b16 %v569
        %v881 = vunpack.c.l.b16 %v570
        %v882 = vunpack.c.h.b16 %v570
        %v883 = vunpack.c.l.b16 %v571
        %v884 = vunpack.c.h.b16 %v571
        %v885 = vunpack.c.l.b16 %v572
        %v886 = vunpack.c.h.b16 %v572
        %v887 = vunpack.c.l.b16 %v573
        %v888 = vunpack.c.h.b16 %v573
        %v889 = vunpack.c.l.b16 %v574
        %v890 = vunpack.c.h.b16 %v574
        %v891 = vunpack.c.l.b16 %v575
        %v892 = vunpack.c.h.b16 %v575
        %v893 = vunpack.c.l.b16 %v576
        %v894 = vunpack.c.h.b16 %v576
        %v895 = vunpack.c.l.b16 %v577
        %v896 = vunpack.c.h.b16 %v577
        %v897 = vunpack.c.l.b16 %v578
        %v898 = vunpack.c.h.b16 %v578
        %v899 = vunpack.c.l.b16 %v579
        %v900 = vunpack.c.h.b16 %v579
        %v901 = vunpack.c.l.b16 %v580
        %v902 = vunpack.c.h.b16 %v580
        %v903 = vunpack.c.l.b16 %v581
        %v904 = vunpack.c.h.b16 %v581
        %v905 = vunpack.c.l.b16 %v582
        %v906 = vunpack.c.h.b16 %v582
        %v907 = vunpack.c.l.b16 %v583
        %v908 = vunpack.c.h.b16 %v583
        %v909 = vunpack.c.l.b16 %v584
        %v910 = vunpack.c.h.b16 %v584
        %v911 = vunpack.c.l.b16 %v585
        %v912 = vunpack.c.h.b16 %v585
        %v913 = vunpack.c.l.b16 %v586
        %v914 = vunpack.c.h.b16 %v586
        %v915 = vunpack.c.l.b16 %v587
        %v916 = vunpack.c.h.b16 %v587
        %v917 = vunpack.c.l.b16 %v588
        %v918 = vunpack.c.h.b16 %v588
        %v919 = vunpack.c.l.b16 %v589
        %v920 = vunpack.c.h.b16 %v589
        %v921 = vunpack.c.l.b16 %v590
        %v922 = vunpack.c.h.b16 %v590
        %v923 = vunpack.c.l.b16 %v591
        %v924 = vunpack.c.h.b16 %v591
        %v925 = vunpack.c.l.b16 %v592
        %v926 = vunpack.c.h.b16 %v592
        %v927 = vunpack.c.l.b16 %v593
        %v928 = vunpack.c.h.b16 %v593
        %v929 = vunpack.c.l.b16 %v594
        %v930 = vunpack.c.h.b16 %v594
        %v931 = vunpack.c.l.b16 %v595
        %v932 = vunpack.c.h.b16 %v595
        %v933 = vunpack.c.l.b16 %v596
        %v934 = vunpack.c.h.b16 %v596
        %v935 = vunpack.c.l.b16 %v597
        %v936 = vunpack.c.h.b16 %v597
        %v937 = vunpack.c.l.b16 %v598
        %v938 = vunpack.c.h.b16 %v598
        %v939 = vunpack.c.l.b16 %v599
        %v940 = vunpack.c.h.b16 %v599
        %v941 = vunpack.c.l.b16 %v600
        %v942 = vunpack.c.h.b16 %v600
        %v943 = vunpack.c.l.b16 %v601
        %v944 = vunpack.c.h.b16 %v601
        %v945 = vunpack.c.l.b16 %v602
        %v946 = vunpack.c.h.b16 %v602
        %v947 = vunpack.c.l.b16 %v603
        %v948 = vunpack.c.h.b16 %v603
        %v949 = vunpack.c.l.b16 %v604
        %v950 = vunpack.c.h.b16 %v604
        %v951 = vunpack.c.l.b16 %v605
        %v952 = vunpack.c.h.b16 %v605
        %v953 = vunpack.c.l.b16 %v606
        %v954 = vunpack.c.h.b16 %v606
        %v955 = vunpack.c.l.b16 %v607
        %v956 = vunpack.c.h.b16 %v607
        %v957 = vunpack.c.l.b16 %v608
        %v958 = vunpack.c.h.b16 %v608
        %v959 = vunpack.c.l.b16 %v609
        %v960 = vunpack.c.h.b16 %v609
        %v961 = vunpack.c.l.b16 %v610
        %v962 = vunpack.c.h.b16 %v610
        %v963 = vunpack.c.l.b16 %v611
        %v964 = vunpack.c.h.b16 %v611
        %v965 = vunpack.c.l.b16 %v612
        %v966 = vunpack.c.h.b16 %v612
        %v967 = vunpack.c.l.b16 %v613
        %v968 = vunpack.c.h.b16 %v613
        %v969 = vunpack.c.l.b16 %v614
        %v970 = vunpack.c.h.b16 %v614
        %v971 = vunpack.c.l.b16 %v615
        %v972 = vunpack.c.h.b16 %v615
        %v973 = vunpack.c.l.b16 %v616
        %v974 = vunpack.c.h.b16 %v616
        %v975 = vunpack.c.l.b16 %v617
        %v976 = vunpack.c.h.b16 %v617
        %v977 = vunpack.c.l.b16 %v618
        %v978 = vunpack.c.h.b16 %v618
        %v979 = vunpack.c.l.b16 %v619
        %v980 = vunpack.c.h.b16 %v619
        %v981 = vunpack.c.l.b16 %v620
        %v982 = vunpack.c.h.b16 %v620
        %v983 = vunpack.c.l.b16 %v621
        %v984 = vunpack.c.h.b16 %v621
        %v985 = vunpack.c.l.b16 %v622
        %v986 = vunpack.c.h.b16 %v622
        %v987 = vunpack.c.l.b16 %v623
        %v988 = vunpack.c.h.b16 %v623
        %v989 = vunpack.c.l.b16 %v624
        %v990 = vunpack.c.h.b16 %v624
        %v991 = vunpack.c.l.b16 %v625
        %v992 = vunpack.c.h.b16 %v625
        %v993 = vunpack.c.l.b16 %v626
        %v994 = vunpack.c.h.b16 %v626
        %v995 = vunpack.c.l.b16 %v627
        %v996 = vunpack.c.h.b16 %v627
        %v997 = vunpack.c.l.b16 %v628
        %v998 = vunpack.c.h.b16 %v628
        %v999 = vunpack.c.l.b16 %v629
        %v1000 = vunpack.c.h.b16 %v629
        %v1001 = vunpack.c.l.b16 %v630
        %v1002 = vunpack.c.h.b16 %v630
        %v1003 = vunpack.c.l.b16 %v631
        %v1004 = vunpack.c.h.b16 %v631
        %v1005 = vunpack.c.l.b16 %v632
        %v1006 = vunpack.c.h.b16 %v632
        %v1007 = vunpack.c.l.b16 %v633
        %v1008 = vunpack.c.h.b16 %v633
        %v1009 = vunpack.c.l.b16 %v634
        %v1010 = vunpack.c.h.b16 %v634
        %v1011 = vunpack.c.l.b16 %v635
        %v1012 = vunpack.c.h.b16 %v635
        %v1013 = vunpack.c.l.b16 %v636
        %v1014 = vunpack.c.h.b16 %v636
        %v1015 = vunpack.c.l.b16 %v637
        %v1016 = vunpack.c.h.b16 %v637
        %v1017 = vunpack.c.l.b16 %v638
        %v1018 = vunpack.c.h.b16 %v638
        %v1019 = vunpack.c.l.b16 %v639
        %v1020 = vunpack.c.h.b16 %v639
        %v1021 = vunpack.c.l.b16 %v640
        %v1022 = vunpack.c.h.b16 %v640
        %v1023 = vunpack.c.l.b16 %v641
        %v1024 = vunpack.c.h.b16 %v641
        %v1025 = vunpack.c.l.b16 %v642
        %v1026 = vunpack.c.h.b16 %v642
        %v1027 = vunpack.c.l.b16 %v643
        %v1028 = vunpack.c.h.b16 %v643
        %v1029 = vunpack.c.l.b16 %v644
        %v1030 = vunpack.c.h.b16 %v644
        %v1031 = vunpack.c.l.b16 %v645
        %v1032 = vunpack.c.h.b16 %v645
        %v1033 = vunpack.c.l.b16 %v646
        %v1034 = vunpack.c.h.b16 %v646
        %v1035 = vunpack.c.l.b16 %v647
        %v1036 = vunpack.c.h.b16 %v647
        %v1037 = vunpack.c.l.b16 %v648
        %v1038 = vunpack.c.h.b16 %v648
        %v1039 = vunpack.c.l.b16 %v649
        %v1040 = vunpack.c.h.b16 %v649
        %v1041 = vunpack.c.l.b16 %v650
        %v1042 = vunpack.c.h.b16 %v650
        %v1043 = vunpack.c.l.b16 %v651
        %v1044 = vunpack.c.h.b16 %v651
        %v1045 = vunpack.c.l.b16 %v652
        %v1046 = vunpack.c.h.b16 %v652
        %v1047 = vunpack.c.l.b16 %v653
        %v1048 = vunpack.c.h.b16 %v653
        %v1049 = vunpack.c.l.b16 %v654
        %v1050 = vunpack.c.h.b16 %v654
        %v1051 = vunpack.c.l.b16 %v655
        %v1052 = vunpack.c.h.b16 %v655
        %v1053 = vunpack.c.l.b16 %v656
        %v1054 = vunpack.c.h.b16 %v656
        %v1055 = vunpack.c.l.b16 %v657
        %v1056 = vunpack.c.h.b16 %v657
        %v1057 = vunpack.c.l.b16 %v658
        %v1058 = vunpack.c.h.b16 %v658
        %v1059 = vunpack.c.l.b16 %v659
        %v1060 = vunpack.c.h.b16 %v659
        %v1061 = vunpack.c.l.b16 %v660
        %v1062 = vunpack.c.h.b16 %v660
        %v1063 = vunpack.c.l.b16 %v661
        %v1064 = vunpack.c.h.b16 %v661
        %v1065 = vunpack.c.l.b16 %v662
        %v1066 = vunpack.c.h.b16 %v662
        %v1067 = vpack.c.b16 %v881, %v875
        %v1068 = vpack.c.b16 %v882, %v876
        %v1069 = vpack.c.b16 %v883, %v877
        %v1070 = vpack.c.b16 %v884, %v878
        %v1071 = vpack.c.b16 %v885, %v879
        %v1072 = vpack.c.b16 %v886, %v880
        %v1073 = vpack.c.b16 %v893, %v887
        %v1074 = vpack.c.b16 %v894, %v888
        %v1075 = vpack.c.b16 %v895, %v889
        %v1076 = vpack.c.b16 %v896, %v890
        %v1077 = vpack.c.b16 %v897, %v891
        %v1078 = vpack.c.b16 %v898, %v892
        %v1079 = vpack.c.b16 %v905, %v899
        %v1080 = vpack.c.b16 %v906, %v900
        %v1081 = vpack.c.b16 %v907, %v901
        %v1082 = vpack.c.b16 %v908, %v902
        %v1083 = vpack.c.b16 %v909, %v903
        %v1084 = vpack.c.b16 %v910, %v904
        %v1085 = vpack.c.b16 %v917, %v911
        %v1086 = vpack.c.b16 %v918, %v912
        %v1087 = vpack.c.b16 %v919, %v913
        %v1088 = vpack.c.b16 %v920, %v914
        %v1089 = vpack.c.b16 %v921, %v915
        %v1090 = vpack.c.b16 %v922, %v916
        %v1091 = vpack.c.b16 %v929, %v923
        %v1092 = vpack.c.b16 %v930, %v924
        %v1093 = vpack.c.b16 %v931, %v925
        %v1094 = vpack.c.b16 %v932, %v926
        %v1095 = vpack.c.b16 %v933, %v927
        %v1096 = vpack.c.b16 %v934, %v928
        %v1097 = vpack.c.b16 %v941, %v935
        %v1098 = vpack.c.b16 %v942, %v936
        %v1099 = vpack.c.b16 %v943, %v937
        %v1100 = vpack.c.b16 %v944, %v938
        %v1101 = vpack.c.b16 %v945, %v939
        %v1102 = vpack.c.b16 %v946, %v940
        %v1103 = vpack.c.b16 %v953, %v947
        %v1104 = vpack.c.b16 %v954, %v948
        %v1105 = vpack.c.b16 %v955, %v949
        %v1106 = vpack.c.b16 %v956, %v950
        %v1107 = vpack.c.b16 %v957, %v951
        %v1108 = vpack.c.b16 %v958, %v952
        %v1109 = vpack.c.b16 %v965, %v959
        %v1110 = vpack.c.b16 %v966, %v960
        %v1111 = vpack.c.b16 %v967, %v961
        %v1112 = vpack.c.b16 %v968, %v962
        %v1113 = vpack.c.b16 %v969, %v963
        %v1114 = vpack.c.b16 %v970, %v964
        %v1115 = vpack.c.b16 %v977, %v971
        %v1116 = vpack.c.b16 %v978, %v972
        %v1117 = vpack.c.b16 %v979, %v973
        %v1118 = vpack.c.b16 %v980, %v974
        %v1119 = vpack.c.b16 %v981, %v975
        %v1120 = vpack.c.b16 %v982, %v976
        %v1121 = vpack.c.b16 %v989, %v983
        %v1122 = vpack.c.b16 %v990, %v984
        %v1123 = vpack.c.b16 %v991, %v985
        %v1124 = vpack.c.b16 %v992, %v986
        %v1125 = vpack.c.b16 %v993, %v987
        %v1126 = vpack.c.b16 %v994, %v988
        %v1127 = vpack.c.b16 %v1001, %v995
        %v1128 = vpack.c.b16 %v1002, %v996
        %v1129 = vpack.c.b16 %v1003, %v997
        %v1130 = vpack.c.b16 %v1004, %v998
        %v1131 = vpack.c.b16 %v1005, %v999
        %v1132 = vpack.c.b16 %v1006, %v1000
        %v1133 = vpack.c.b16 %v1013, %v1007
        %v1134 = vpack.c.b16 %v1014, %v1008
        %v1135 = vpack.c.b16 %v1015, %v1009
        %v1136 = vpack.c.b16 %v1016, %v1010
        %v1137 = vpack.c.b16 %v1017, %v1011
        %v1138 = vpack.c.b16 %v1018, %v1012
        %v1139 = vpack.c.b16 %v1025, %v1019
        %v1140 = vpack.c.b16 %v1026, %v1020
        %v1141 = vpack.c.b16 %v1027, %v1021
        %v1142 = vpack.c.b16 %v1028, %v1022
        %v1143 = vpack.c.b16 %v1029, %v1023
        %v1144 = vpack.c.b16 %v1030, %v1024
        %v1145 = vpack.c.b16 %v1037, %v1031
        %v1146 = vpack.c.b16 %v1038, %v1032
        %v1147 = vpack.c.b16 %v1039, %v1033
        %v1148 = vpack.c.b16 %v1040, %v1034
        %v1149 = vpack.c.b16 %v1041, %v1035
        %v1150 = vpack.c.b16 %v1042, %v1036
        %v1151 = vpack.c.b16 %v1049, %v1043
        %v1152 = vpack.c.b16 %v1050, %v1044
        %v1153 = vpack.c.b16 %v1051, %v1045
        %v1154 = vpack.c.b16 %v1052, %v1046
        %v1155 = vpack.c.b16 %v1053, %v1047
        %v1156 = vpack.c.b16 %v1054, %v1048
        %v1157 = vpack.c.b16 %v1061, %v1055
        %v1158 = vpack.c.b16 %v1062, %v1056
        %v1159 = vpack.c.b16 %v1063, %v1057
        %v1160 = vpack.c.b16 %v1064, %v1058
        %v1161 = vpack.c.b16 %v1065, %v1059
        %v1162 = vpack.c.b16 %v1066, %v1060
        %1259 = vmatpush.bf16.msra.mxu0 %v1109
        %1260 = vmatpush.bf16.msra.mxu0 %v1103
        %1261 = vmatpush.bf16.msra.mxu0 %v1097
        %1262 = vmatpush.bf16.msra.mxu0 %v1091
        %1263 = vmatpush.bf16.msra.mxu0 %v1085
        %1264 = vmatpush.bf16.msra.mxu0 %v1079
        %1265 = vmatpush.bf16.msra.mxu0 %v1073
        %1266 = vmatpush.bf16.msra.mxu0 %v1067
        %1267 = vmatmul.bf16.gmra.mxu0 %v747
        %v1268 = vpop.f32.mrf.mxu0
        %v1269 = vadd.f32 0.0, %v1268
        %v1270 = vpop.f32.mrf.mxu0
        %v1271 = vadd.f32 0.0, %v1270
        %1272 = vmatmul.bf16.gmra.mxu0 %v748
        %v1273 = vpop.f32.mrf.mxu0
        %v1274 = vadd.f32 0.0, %v1273
        %v1275 = vpop.f32.mrf.mxu0
        %v1276 = vadd.f32 0.0, %v1275
        %1277 = vmatmul.bf16.gmra.mxu0 %v749
        %v1278 = vpop.f32.mrf.mxu0
        %v1279 = vadd.f32 0.0, %v1278
        %v1280 = vpop.f32.mrf.mxu0
        %v1281 = vadd.f32 0.0, %v1280
        %1282 = vmatmul.bf16.gmra.mxu0 %v750
        %v1283 = vpop.f32.mrf.mxu0
        %v1284 = vadd.f32 0.0, %v1283
        %v1285 = vpop.f32.mrf.mxu0
        %v1286 = vadd.f32 0.0, %v1285
        %1287 = vdwg.mxu0
        %1288 = vmatpush.bf16.msra.mxu0 %v1157
        %1289 = vmatpush.bf16.msra.mxu0 %v1151
        %1290 = vmatpush.bf16.msra.mxu0 %v1145
        %1291 = vmatpush.bf16.msra.mxu0 %v1139
        %1292 = vmatpush.bf16.msra.mxu0 %v1133
        %1293 = vmatpush.bf16.msra.mxu0 %v1127
        %1294 = vmatpush.bf16.msra.mxu0 %v1121
        %1295 = vmatpush.bf16.msra.mxu0 %v1115
        %1296 = vmatmul.bf16.gmra.mxu0 %v771
        %v1297 = vpop.f32.mrf.mxu0
        %v1298 = vadd.f32 %v1269, %v1297
        %v1299 = vpop.f32.mrf.mxu0
        %v1300 = vadd.f32 %v1271, %v1299
        %1301 = vmatmul.bf16.gmra.mxu0 %v772
        %v1302 = vpop.f32.mrf.mxu0
        %v1303 = vadd.f32 %v1274, %v1302
        %v1304 = vpop.f32.mrf.mxu0
        %v1305 = vadd.f32 %v1276, %v1304
        %1306 = vmatmul.bf16.gmra.mxu0 %v773
        %v1307 = vpop.f32.mrf.mxu0
        %v1308 = vadd.f32 %v1279, %v1307
        %v1309 = vpop.f32.mrf.mxu0
        %v1310 = vadd.f32 %v1281, %v1309
        %1311 = vmatmul.bf16.gmra.mxu0 %v774
        %v1312 = vpop.f32.mrf.mxu0
        %v1313 = vadd.f32 %v1284, %v1312
        %v1314 = vpop.f32.mrf.mxu0
        %v1315 = vadd.f32 %v1286, %v1314
        %1316 = vdwg.mxu0
        %1317 = vmatpush.bf16.msra.mxu0 %v1110
        %1318 = vmatpush.bf16.msra.mxu0 %v1104
        %1319 = vmatpush.bf16.msra.mxu0 %v1098
        %1320 = vmatpush.bf16.msra.mxu0 %v1092
        %1321 = vmatpush.bf16.msra.mxu0 %v1086
        %1322 = vmatpush.bf16.msra.mxu0 %v1080
        %1323 = vmatpush.bf16.msra.mxu0 %v1074
        %1324 = vmatpush.bf16.msra.mxu0 %v1068
        %1325 = vmatmul.bf16.gmra.mxu0 %v747
        %v1326 = vpop.f32.mrf.mxu0
        %v1327 = vadd.f32 0.0, %v1326
        %v1328 = vpop.f32.mrf.mxu0
        %v1329 = vadd.f32 0.0, %v1328
        %1330 = vmatmul.bf16.gmra.mxu0 %v748
        %v1331 = vpop.f32.mrf.mxu0
        %v1332 = vadd.f32 0.0, %v1331
        %v1333 = vpop.f32.mrf.mxu0
        %v1334 = vadd.f32 0.0, %v1333
        %1335 = vmatmul.bf16.gmra.mxu0 %v749
        %v1336 = vpop.f32.mrf.mxu0
        %v1337 = vadd.f32 0.0, %v1336
        %v1338 = vpop.f32.mrf.mxu0
        %v1339 = vadd.f32 0.0, %v1338
        %1340 = vmatmul.bf16.gmra.mxu0 %v750
        %v1341 = vpop.f32.mrf.mxu0
        %v1342 = vadd.f32 0.0, %v1341
        %v1343 = vpop.f32.mrf.mxu0
        %v1344 = vadd.f32 0.0, %v1343
        %1345 = vdwg.mxu0
        %1346 = vmatpush.bf16.msra.mxu0 %v1158
        %1347 = vmatpush.bf16.msra.mxu0 %v1152
        %1348 = vmatpush.bf16.msra.mxu0 %v1146
        %1349 = vmatpush.bf16.msra.mxu0 %v1140
        %1350 = vmatpush.bf16.msra.mxu0 %v1134
        %1351 = vmatpush.bf16.msra.mxu0 %v1128
        %1352 = vmatpush.bf16.msra.mxu0 %v1122
        %1353 = vmatpush.bf16.msra.mxu0 %v1116
        %1354 = vmatmul.bf16.gmra.mxu0 %v771
        %v1355 = vpop.f32.mrf.mxu0
        %v1356 = vadd.f32 %v1327, %v1355
        %v1357 = vpop.f32.mrf.mxu0
        %v1358 = vadd.f32 %v1329, %v1357
        %1359 = vmatmul.bf16.gmra.mxu0 %v772
        %v1360 = vpop.f32.mrf.mxu0
        %v1361 = vadd.f32 %v1332, %v1360
        %v1362 = vpop.f32.mrf.mxu0
        %v1363 = vadd.f32 %v1334, %v1362
        %1364 = vmatmul.bf16.gmra.mxu0 %v773
        %v1365 = vpop.f32.mrf.mxu0
        %v1366 = vadd.f32 %v1337, %v1365
        %v1367 = vpop.f32.mrf.mxu0
        %v1368 = vadd.f32 %v1339, %v1367
        %1369 = vmatmul.bf16.gmra.mxu0 %v774
        %v1370 = vpop.f32.mrf.mxu0
        %v1371 = vadd.f32 %v1342, %v1370
        %v1372 = vpop.f32.mrf.mxu0
        %v1373 = vadd.f32 %v1344, %v1372
        %1374 = vdwg.mxu0
        %1375 = vmatpush.bf16.msra.mxu0 %v1111
        %1376 = vmatpush.bf16.msra.mxu0 %v1105
        %1377 = vmatpush.bf16.msra.mxu0 %v1099
        %1378 = vmatpush.bf16.msra.mxu0 %v1093
        %1379 = vmatpush.bf16.msra.mxu0 %v1087
        %1380 = vmatpush.bf16.msra.mxu0 %v1081
        %1381 = vmatpush.bf16.msra.mxu0 %v1075
        %1382 = vmatpush.bf16.msra.mxu0 %v1069
        %1383 = vmatmul.bf16.gmra.mxu0 %v747
        %v1384 = vpop.f32.mrf.mxu0
        %v1385 = vadd.f32 0.0, %v1384
        %v1386 = vpop.f32.mrf.mxu0
        %v1387 = vadd.f32 0.0, %v1386
        %1388 = vmatmul.bf16.gmra.mxu0 %v748
        %v1389 = vpop.f32.mrf.mxu0
        %v1390 = vadd.f32 0.0, %v1389
        %v1391 = vpop.f32.mrf.mxu0
        %v1392 = vadd.f32 0.0, %v1391
        %1393 = vmatmul.bf16.gmra.mxu0 %v749
        %v1394 = vpop.f32.mrf.mxu0
        %v1395 = vadd.f32 0.0, %v1394
        %v1396 = vpop.f32.mrf.mxu0
        %v1397 = vadd.f32 0.0, %v1396
        %1398 = vmatmul.bf16.gmra.mxu0 %v750
        %v1399 = vpop.f32.mrf.mxu0
        %v1400 = vadd.f32 0.0, %v1399
        %v1401 = vpop.f32.mrf.mxu0
        %v1402 = vadd.f32 0.0, %v1401
        %1403 = vdwg.mxu0
        %1404 = vmatpush.bf16.msra.mxu0 %v1159
        %1405 = vmatpush.bf16.msra.mxu0 %v1153
        %1406 = vmatpush.bf16.msra.mxu0 %v1147
        %1407 = vmatpush.bf16.msra.mxu0 %v1141
        %1408 = vmatpush.bf16.msra.mxu0 %v1135
        %1409 = vmatpush.bf16.msra.mxu0 %v1129
        %1410 = vmatpush.bf16.msra.mxu0 %v1123
        %1411 = vmatpush.bf16.msra.mxu0 %v1117
        %1412 = vmatmul.bf16.gmra.mxu0 %v771
        %v1413 = vpop.f32.mrf.mxu0
        %v1414 = vadd.f32 %v1385, %v1413
        %v1415 = vpop.f32.mrf.mxu0
        %v1416 = vadd.f32 %v1387, %v1415
        %1417 = vmatmul.bf16.gmra.mxu0 %v772
        %v1418 = vpop.f32.mrf.mxu0
        %v1419 = vadd.f32 %v1390, %v1418
        %v1420 = vpop.f32.mrf.mxu0
        %v1421 = vadd.f32 %v1392, %v1420
        %1422 = vmatmul.bf16.gmra.mxu0 %v773
        %v1423 = vpop.f32.mrf.mxu0
        %v1424 = vadd.f32 %v1395, %v1423
        %v1425 = vpop.f32.mrf.mxu0
        %v1426 = vadd.f32 %v1397, %v1425
        %1427 = vmatmul.bf16.gmra.mxu0 %v774
        %v1428 = vpop.f32.mrf.mxu0
        %v1429 = vadd.f32 %v1400, %v1428
        %v1430 = vpop.f32.mrf.mxu0
        %v1431 = vadd.f32 %v1402, %v1430
        %1432 = vdwg.mxu0
        %1433 = vmatpush.bf16.msra.mxu0 %v1112
        %1434 = vmatpush.bf16.msra.mxu0 %v1106
        %1435 = vmatpush.bf16.msra.mxu0 %v1100
        %1436 = vmatpush.bf16.msra.mxu0 %v1094
        %1437 = vmatpush.bf16.msra.mxu0 %v1088
        %1438 = vmatpush.bf16.msra.mxu0 %v1082
        %1439 = vmatpush.bf16.msra.mxu0 %v1076
        %1440 = vmatpush.bf16.msra.mxu0 %v1070
        %1441 = vmatmul.bf16.gmra.mxu0 %v747
        %v1442 = vpop.f32.mrf.mxu0
        %v1443 = vadd.f32 0.0, %v1442
        %v1444 = vpop.f32.mrf.mxu0
        %v1445 = vadd.f32 0.0, %v1444
        %1446 = vmatmul.bf16.gmra.mxu0 %v748
        %v1447 = vpop.f32.mrf.mxu0
        %v1448 = vadd.f32 0.0, %v1447
        %v1449 = vpop.f32.mrf.mxu0
        %v1450 = vadd.f32 0.0, %v1449
        %1451 = vmatmul.bf16.gmra.mxu0 %v749
        %v1452 = vpop.f32.mrf.mxu0
        %v1453 = vadd.f32 0.0, %v1452
        %v1454 = vpop.f32.mrf.mxu0
        %v1455 = vadd.f32 0.0, %v1454
        %1456 = vmatmul.bf16.gmra.mxu0 %v750
        %v1457 = vpop.f32.mrf.mxu0
        %v1458 = vadd.f32 0.0, %v1457
        %v1459 = vpop.f32.mrf.mxu0
        %v1460 = vadd.f32 0.0, %v1459
        %1461 = vdwg.mxu0
        %1462 = vmatpush.bf16.msra.mxu0 %v1160
        %1463 = vmatpush.bf16.msra.mxu0 %v1154
        %1464 = vmatpush.bf16.msra.mxu0 %v1148
        %1465 = vmatpush.bf16.msra.mxu0 %v1142
        %1466 = vmatpush.bf16.msra.mxu0 %v1136
        %1467 = vmatpush.bf16.msra.mxu0 %v1130
        %1468 = vmatpush.bf16.msra.mxu0 %v1124
        %1469 = vmatpush.bf16.msra.mxu0 %v1118
        %1470 = vmatmul.bf16.gmra.mxu0 %v771
        %v1471 = vpop.f32.mrf.mxu0
        %v1472 = vadd.f32 %v1443, %v1471
        %v1473 = vpop.f32.mrf.mxu0
        %v1474 = vadd.f32 %v1445, %v1473
        %1475 = vmatmul.bf16.gmra.mxu0 %v772
        %v1476 = vpop.f32.mrf.mxu0
        %v1477 = vadd.f32 %v1448, %v1476
        %v1478 = vpop.f32.mrf.mxu0
        %v1479 = vadd.f32 %v1450, %v1478
        %1480 = vmatmul.bf16.gmra.mxu0 %v773
        %v1481 = vpop.f32.mrf.mxu0
        %v1482 = vadd.f32 %v1453, %v1481
        %v1483 = vpop.f32.mrf.mxu0
        %v1484 = vadd.f32 %v1455, %v1483
        %1485 = vmatmul.bf16.gmra.mxu0 %v774
        %v1486 = vpop.f32.mrf.mxu0
        %v1487 = vadd.f32 %v1458, %v1486
        %v1488 = vpop.f32.mrf.mxu0
        %v1489 = vadd.f32 %v1460, %v1488
        %1490 = vdwg.mxu0
        %1491 = vmatpush.bf16.msra.mxu0 %v1113
        %1492 = vmatpush.bf16.msra.mxu0 %v1107
        %1493 = vmatpush.bf16.msra.mxu0 %v1101
        %1494 = vmatpush.bf16.msra.mxu0 %v1095
        %1495 = vmatpush.bf16.msra.mxu0 %v1089
        %1496 = vmatpush.bf16.msra.mxu0 %v1083
        %1497 = vmatpush.bf16.msra.mxu0 %v1077
        %1498 = vmatpush.bf16.msra.mxu0 %v1071
        %1499 = vmatmul.bf16.gmra.mxu0 %v747
        %v1500 = vpop.f32.mrf.mxu0
        %v1501 = vadd.f32 0.0, %v1500
        %v1502 = vpop.f32.mrf.mxu0
        %v1503 = vadd.f32 0.0, %v1502
        %1504 = vmatmul.bf16.gmra.mxu0 %v748
        %v1505 = vpop.f32.mrf.mxu0
        %v1506 = vadd.f32 0.0, %v1505
        %v1507 = vpop.f32.mrf.mxu0
        %v1508 = vadd.f32 0.0, %v1507
        %1509 = vmatmul.bf16.gmra.mxu0 %v749
        %v1510 = vpop.f32.mrf.mxu0
        %v1511 = vadd.f32 0.0, %v1510
        %v1512 = vpop.f32.mrf.mxu0
        %v1513 = vadd.f32 0.0, %v1512
        %1514 = vmatmul.bf16.gmra.mxu0 %v750
        %v1515 = vpop.f32.mrf.mxu0
        %v1516 = vadd.f32 0.0, %v1515
        %v1517 = vpop.f32.mrf.mxu0
        %v1518 = vadd.f32 0.0, %v1517
        %1519 = vdwg.mxu0
        %1520 = vmatpush.bf16.msra.mxu0 %v1161
        %1521 = vmatpush.bf16.msra.mxu0 %v1155
        %1522 = vmatpush.bf16.msra.mxu0 %v1149
        %1523 = vmatpush.bf16.msra.mxu0 %v1143
        %1524 = vmatpush.bf16.msra.mxu0 %v1137
        %1525 = vmatpush.bf16.msra.mxu0 %v1131
        %1526 = vmatpush.bf16.msra.mxu0 %v1125
        %1527 = vmatpush.bf16.msra.mxu0 %v1119
        %1528 = vmatmul.bf16.gmra.mxu0 %v771
        %v1529 = vpop.f32.mrf.mxu0
        %v1530 = vadd.f32 %v1501, %v1529
        %v1531 = vpop.f32.mrf.mxu0
        %v1532 = vadd.f32 %v1503, %v1531
        %1533 = vmatmul.bf16.gmra.mxu0 %v772
        %v1534 = vpop.f32.mrf.mxu0
        %v1535 = vadd.f32 %v1506, %v1534
        %v1536 = vpop.f32.mrf.mxu0
        %v1537 = vadd.f32 %v1508, %v1536
        %1538 = vmatmul.bf16.gmra.mxu0 %v773
        %v1539 = vpop.f32.mrf.mxu0
        %v1540 = vadd.f32 %v1511, %v1539
        %v1541 = vpop.f32.mrf.mxu0
        %v1542 = vadd.f32 %v1513, %v1541
        %1543 = vmatmul.bf16.gmra.mxu0 %v774
        %v1544 = vpop.f32.mrf.mxu0
        %v1545 = vadd.f32 %v1516, %v1544
        %v1546 = vpop.f32.mrf.mxu0
        %v1547 = vadd.f32 %v1518, %v1546
        %1548 = vdwg.mxu0
        %1549 = vmatpush.bf16.msra.mxu0 %v1114
        %1550 = vmatpush.bf16.msra.mxu0 %v1108
        %1551 = vmatpush.bf16.msra.mxu0 %v1102
        %1552 = vmatpush.bf16.msra.mxu0 %v1096
        %1553 = vmatpush.bf16.msra.mxu0 %v1090
        %1554 = vmatpush.bf16.msra.mxu0 %v1084
        %1555 = vmatpush.bf16.msra.mxu0 %v1078
        %1556 = vmatpush.bf16.msra.mxu0 %v1072
        %1557 = vmatmul.bf16.gmra.mxu0 %v747
        %v1558 = vpop.f32.mrf.mxu0
        %v1559 = vadd.f32 0.0, %v1558
        %v1560 = vpop.f32.mrf.mxu0
        %v1561 = vadd.f32 0.0, %v1560
        %1562 = vmatmul.bf16.gmra.mxu0 %v748
        %v1563 = vpop.f32.mrf.mxu0
        %v1564 = vadd.f32 0.0, %v1563
        %v1565 = vpop.f32.mrf.mxu0
        %v1566 = vadd.f32 0.0, %v1565
        %1567 = vmatmul.bf16.gmra.mxu0 %v749
        %v1568 = vpop.f32.mrf.mxu0
        %v1569 = vadd.f32 0.0, %v1568
        %v1570 = vpop.f32.mrf.mxu0
        %v1571 = vadd.f32 0.0, %v1570
        %1572 = vmatmul.bf16.gmra.mxu0 %v750
        %v1573 = vpop.f32.mrf.mxu0
        %v1574 = vadd.f32 0.0, %v1573
        %v1575 = vpop.f32.mrf.mxu0
        %v1576 = vadd.f32 0.0, %v1575
        %1577 = vdwg.mxu0
        %1578 = vmatpush.bf16.msra.mxu0 %v1162
        %1579 = vmatpush.bf16.msra.mxu0 %v1156
        %1580 = vmatpush.bf16.msra.mxu0 %v1150
        %1581 = vmatpush.bf16.msra.mxu0 %v1144
        %1582 = vmatpush.bf16.msra.mxu0 %v1138
        %1583 = vmatpush.bf16.msra.mxu0 %v1132
        %1584 = vmatpush.bf16.msra.mxu0 %v1126
        %1585 = vmatpush.bf16.msra.mxu0 %v1120
        %1586 = vmatmul.bf16.gmra.mxu0 %v771
        %v1587 = vpop.f32.mrf.mxu0
        %v1588 = vadd.f32 %v1559, %v1587
        %v1589 = vpop.f32.mrf.mxu0
        %v1590 = vadd.f32 %v1561, %v1589
        %1591 = vmatmul.bf16.gmra.mxu0 %v772
        %v1592 = vpop.f32.mrf.mxu0
        %v1593 = vadd.f32 %v1564, %v1592
        %v1594 = vpop.f32.mrf.mxu0
        %v1595 = vadd.f32 %v1566, %v1594
        %1596 = vmatmul.bf16.gmra.mxu0 %v773
        %v1597 = vpop.f32.mrf.mxu0
        %v1598 = vadd.f32 %v1569, %v1597
        %v1599 = vpop.f32.mrf.mxu0
        %v1600 = vadd.f32 %v1571, %v1599
        %1601 = vmatmul.bf16.gmra.mxu0 %v774
        %v1602 = vpop.f32.mrf.mxu0
        %v1603 = vadd.f32 %v1574, %v1602
        %v1604 = vpop.f32.mrf.mxu0
        %v1605 = vadd.f32 %v1576, %v1604
        %1606 = vdwg.mxu0
        %v1607 = vrot.slane %v1298, 7
        %v1608 = vrot.slane %v1356, 7
        %v1609 = vrot.slane %v1300, 7
        %v1610 = vrot.slane %v1358, 7
        %v1611 = vrot.slane %v1303, 7
        %v1612 = vrot.slane %v1361, 7
        %v1613 = vrot.slane %v1305, 7
        %v1614 = vrot.slane %v1363, 7
        %v1615 = vrot.slane %v1308, 7
        %v1616 = vrot.slane %v1366, 7
        %v1617 = vrot.slane %v1310, 7
        %v1618 = vrot.slane %v1368, 7
        %v1619 = vrot.slane %v1313, 7
        %v1620 = vrot.slane %v1371, 7
        %v1621 = vrot.slane %v1315, 7
        %v1622 = vrot.slane %v1373, 7
        %vm1623 = vcmp.lt.s32.totalorder %v566, 1
        %v1624 = vsel %vm1623, %v1619, %v1621
        %v1625 = vsel %vm1623, %v1620, %v1622
        %v1626 = vsel %vm1623, %v1617, %v1619
        %v1627 = vsel %vm1623, %v1618, %v1620
        %v1628 = vsel %vm1623, %v1615, %v1617
        %v1629 = vsel %vm1623, %v1616, %v1618
        %v1630 = vsel %vm1623, %v1613, %v1615
        %v1631 = vsel %vm1623, %v1614, %v1616
        %v1632 = vsel %vm1623, %v1611, %v1613
        %v1633 = vsel %vm1623, %v1612, %v1614
        %v1634 = vsel %vm1623, %v1609, %v1611
        %v1635 = vsel %vm1623, %v1610, %v1612
        %v1636 = vsel %vm1623, %v1607, %v1609
        %v1637 = vsel %vm1623, %v1608, %v1610
        %v1638 = vsel %vm1623, %v1621, %v1607
        %v1639 = vsel %vm1623, %v1622, %v1608
        %v1640 = vrot.slane %v1530, 1
        %v1641 = vrot.slane %v1588, 1
        %v1642 = vrot.slane %v1532, 1
        %v1643 = vrot.slane %v1590, 1
        %v1644 = vrot.slane %v1535, 1
        %v1645 = vrot.slane %v1593, 1
        %v1646 = vrot.slane %v1537, 1
        %v1647 = vrot.slane %v1595, 1
        %v1648 = vrot.slane %v1540, 1
        %v1649 = vrot.slane %v1598, 1
        %v1650 = vrot.slane %v1542, 1
        %v1651 = vrot.slane %v1600, 1
        %v1652 = vrot.slane %v1545, 1
        %v1653 = vrot.slane %v1603, 1
        %v1654 = vrot.slane %v1547, 1
        %v1655 = vrot.slane %v1605, 1
        %vm1656 = vcmp.lt.s32.totalorder %v566, 7
        %v1657 = vsel %vm1656, %v1652, %v1654
        %v1658 = vsel %vm1656, %v1653, %v1655
        %v1659 = vsel %vm1656, %v1650, %v1652
        %v1660 = vsel %vm1656, %v1651, %v1653
        %v1661 = vsel %vm1656, %v1648, %v1650
        %v1662 = vsel %vm1656, %v1649, %v1651
        %v1663 = vsel %vm1656, %v1646, %v1648
        %v1664 = vsel %vm1656, %v1647, %v1649
        %v1665 = vsel %vm1656, %v1644, %v1646
        %v1666 = vsel %vm1656, %v1645, %v1647
        %v1667 = vsel %vm1656, %v1642, %v1644
        %v1668 = vsel %vm1656, %v1643, %v1645
        %v1669 = vsel %vm1656, %v1640, %v1642
        %v1670 = vsel %vm1656, %v1641, %v1643
        %v1671 = vsel %vm1656, %v1654, %v1640
        %v1672 = vsel %vm1656, %v1655, %v1641
        %v1673 = vsel %vm729, 1, 0
        %vm1674 = vcmp.eq.s32.totalorder %v1673, 1
        %v1675 = vsel %vm1674, 0.0, %v1638
        %v1676 = vsel %vm1674, 0.0, %v1639
        %v1677 = vsel %vm1674, 0.0, %v1636
        %v1678 = vsel %vm1674, 0.0, %v1637
        %v1679 = vsel %vm1674, 0.0, %v1634
        %v1680 = vsel %vm1674, 0.0, %v1635
        %v1681 = vsel %vm1674, 0.0, %v1632
        %v1682 = vsel %vm1674, 0.0, %v1633
        %v1683 = vsel %vm1674, 0.0, %v1630
        %v1684 = vsel %vm1674, 0.0, %v1631
        %v1685 = vsel %vm1674, 0.0, %v1628
        %v1686 = vsel %vm1674, 0.0, %v1629
        %v1687 = vsel %vm1674, 0.0, %v1626
        %v1688 = vsel %vm1674, 0.0, %v1627
        %v1689 = vsel %vm1674, 0.0, %v1624
        %v1690 = vsel %vm1674, 0.0, %v1625
        %v1691 = vsel %vm730, 1, 0
        %vm1692 = vcmp.eq.s32.totalorder %v1691, 1
        %v1693 = vsel %vm1692, 0.0, %v1669
        %v1694 = vsel %vm1692, 0.0, %v1670
        %v1695 = vsel %vm1692, 0.0, %v1667
        %v1696 = vsel %vm1692, 0.0, %v1668
        %v1697 = vsel %vm1692, 0.0, %v1665
        %v1698 = vsel %vm1692, 0.0, %v1666
        %v1699 = vsel %vm1692, 0.0, %v1663
        %v1700 = vsel %vm1692, 0.0, %v1664
        %v1701 = vsel %vm1692, 0.0, %v1661
        %v1702 = vsel %vm1692, 0.0, %v1662
        %v1703 = vsel %vm1692, 0.0, %v1659
        %v1704 = vsel %vm1692, 0.0, %v1660
        %v1705 = vsel %vm1692, 0.0, %v1657
        %v1706 = vsel %vm1692, 0.0, %v1658
        %v1707 = vsel %vm1692, 0.0, %v1671
        %v1708 = vsel %vm1692, 0.0, %v1672
        %v1709 = vadd.f32 %v1414, %v1675
        %v1710 = vadd.f32 %v1472, %v1676
        %v1711 = vadd.f32 %v1416, %v1677
        %v1712 = vadd.f32 %v1474, %v1678
        %v1713 = vadd.f32 %v1419, %v1679
        %v1714 = vadd.f32 %v1477, %v1680
        %v1715 = vadd.f32 %v1421, %v1681
        %v1716 = vadd.f32 %v1479, %v1682
        %v1717 = vadd.f32 %v1424, %v1683
        %v1718 = vadd.f32 %v1482, %v1684
        %v1719 = vadd.f32 %v1426, %v1685
        %v1720 = vadd.f32 %v1484, %v1686
        %v1721 = vadd.f32 %v1429, %v1687
        %v1722 = vadd.f32 %v1487, %v1688
        %v1723 = vadd.f32 %v1431, %v1689
        %v1724 = vadd.f32 %v1489, %v1690
        %v1725 = vadd.f32 %v1709, %v1693
        %v1726 = vadd.f32 %v1710, %v1694
        %v1727 = vadd.f32 %v1711, %v1695
        %v1728 = vadd.f32 %v1712, %v1696
        %v1729 = vadd.f32 %v1713, %v1697
        %v1730 = vadd.f32 %v1714, %v1698
        %v1731 = vadd.f32 %v1715, %v1699
        %v1732 = vadd.f32 %v1716, %v1700
        %v1733 = vadd.f32 %v1717, %v1701
        %v1734 = vadd.f32 %v1718, %v1702
        %v1735 = vadd.f32 %v1719, %v1703
        %v1736 = vadd.f32 %v1720, %v1704
        %v1737 = vadd.f32 %v1721, %v1705
        %v1738 = vadd.f32 %v1722, %v1706
        %v1739 = vadd.f32 %v1723, %v1707
        %v1740 = vadd.f32 %v1724, %v1708
        %v1742 = vperm.slane %v663, 0
        %v1743 = vperm.slane %v663, 1
        %v1746 = vadd.f32 %v1725, %v1742
        %v1747 = vadd.f32 %v1726, %v1743
        %v1748 = vadd.f32 %v1727, %v1742
        %v1749 = vadd.f32 %v1728, %v1743
        %v1750 = vadd.f32 %v1729, %v1742
        %v1751 = vadd.f32 %v1730, %v1743
        %v1752 = vadd.f32 %v1731, %v1742
        %v1753 = vadd.f32 %v1732, %v1743
        %v1754 = vadd.f32 %v1733, %v1742
        %v1755 = vadd.f32 %v1734, %v1743
        %v1756 = vadd.f32 %v1735, %v1742
        %v1757 = vadd.f32 %v1736, %v1743
        %v1758 = vadd.f32 %v1737, %v1742
        %v1759 = vadd.f32 %v1738, %v1743
        %v1760 = vadd.f32 %v1739, %v1742
        %v1761 = vadd.f32 %v1740, %v1743
        %v1762 = vmul.f32 %v1746, 0.5
        %v1763 = vmul.f32 %v1748, 0.5
        %v1764 = vmul.f32 %v1750, 0.5
        %v1765 = vmul.f32 %v1752, 0.5
        %v1766 = vmul.f32 %v1754, 0.5
        %v1767 = vmul.f32 %v1756, 0.5
        %v1768 = vmul.f32 %v1758, 0.5
        %v1769 = vmul.f32 %v1760, 0.5
        %v1770 = vtanh.pop %v1762
        %v1771 = vtanh.pop %v1763
        %v1772 = vtanh.pop %v1764
        %v1773 = vtanh.pop %v1765
        %v1774 = vtanh.pop %v1766
        %v1775 = vtanh.pop %v1767
        %v1776 = vtanh.pop %v1768
        %v1777 = vtanh.pop %v1769
        %v1778 = vadd.f32 %v1770, 1.0
        %v1779 = vadd.f32 %v1771, 1.0
        %v1780 = vadd.f32 %v1772, 1.0
        %v1781 = vadd.f32 %v1773, 1.0
        %v1782 = vadd.f32 %v1774, 1.0
        %v1783 = vadd.f32 %v1775, 1.0
        %v1784 = vadd.f32 %v1776, 1.0
        %v1785 = vadd.f32 %v1777, 1.0
        %v1786 = vmul.f32 %v1778, 0.5
        %v1787 = vmul.f32 %v1779, 0.5
        %v1788 = vmul.f32 %v1780, 0.5
        %v1789 = vmul.f32 %v1781, 0.5
        %v1790 = vmul.f32 %v1782, 0.5
        %v1791 = vmul.f32 %v1783, 0.5
        %v1792 = vmul.f32 %v1784, 0.5
        %v1793 = vmul.f32 %v1785, 0.5
        %v1794 = vmul.f32 %v1747, 0.5
        %v1795 = vmul.f32 %v1749, 0.5
        %v1796 = vmul.f32 %v1751, 0.5
        %v1797 = vmul.f32 %v1753, 0.5
        %v1798 = vmul.f32 %v1755, 0.5
        %v1799 = vmul.f32 %v1757, 0.5
        %v1800 = vmul.f32 %v1759, 0.5
        %v1801 = vmul.f32 %v1761, 0.5
        %v1802 = vtanh.pop %v1794
        %v1803 = vtanh.pop %v1795
        %v1804 = vtanh.pop %v1796
        %v1805 = vtanh.pop %v1797
        %v1806 = vtanh.pop %v1798
        %v1807 = vtanh.pop %v1799
        %v1808 = vtanh.pop %v1800
        %v1809 = vtanh.pop %v1801
        %v1810 = vadd.f32 %v1802, 1.0
        %v1811 = vadd.f32 %v1803, 1.0
        %v1812 = vadd.f32 %v1804, 1.0
        %v1813 = vadd.f32 %v1805, 1.0
        %v1814 = vadd.f32 %v1806, 1.0
        %v1815 = vadd.f32 %v1807, 1.0
        %v1816 = vadd.f32 %v1808, 1.0
        %v1817 = vadd.f32 %v1809, 1.0
        %v1818 = vmul.f32 %v1810, 0.5
        %v1819 = vmul.f32 %v1811, 0.5
        %v1820 = vmul.f32 %v1812, 0.5
        %v1821 = vmul.f32 %v1813, 0.5
        %v1822 = vmul.f32 %v1814, 0.5
        %v1823 = vmul.f32 %v1815, 0.5
        %v1824 = vmul.f32 %v1816, 0.5
        %v1825 = vmul.f32 %v1817, 0.5
        %v1826 = vunpack.c.l.bf16 %v533
        %v1827 = vunpack.c.l.bf16 %v534
        %v1828 = vunpack.c.l.bf16 %v535
        %v1829 = vunpack.c.l.bf16 %v536
        %v1830 = vunpack.c.l.bf16 %v537
        %v1831 = vunpack.c.l.bf16 %v538
        %v1832 = vunpack.c.l.bf16 %v539
        %v1833 = vunpack.c.l.bf16 %v540
        %v1834 = vmul.f32 %v1818, %v1826
        %v1835 = vmul.f32 %v1819, %v1827
        %v1836 = vmul.f32 %v1820, %v1828
        %v1837 = vmul.f32 %v1821, %v1829
        %v1838 = vmul.f32 %v1822, %v1830
        %v1839 = vmul.f32 %v1823, %v1831
        %v1840 = vmul.f32 %v1824, %v1832
        %v1841 = vmul.f32 %v1825, %v1833
        %v1842 = vpack.c.bf16 %v1835, %v1834
        %v1843 = vpack.c.bf16 %v1837, %v1836
        %v1844 = vpack.c.bf16 %v1839, %v1838
        %v1845 = vpack.c.bf16 %v1841, %v1840
        %v1878 = vunpack.c.l.b16 %v664
        %v1879 = vunpack.c.h.b16 %v664
        %v1880 = vunpack.c.l.b16 %v665
        %v1881 = vunpack.c.l.b16 %v666
        %v1882 = vunpack.c.h.b16 %v666
        %v1883 = vunpack.c.l.b16 %v667
        %v1884 = vunpack.c.l.b16 %v668
        %v1885 = vunpack.c.h.b16 %v668
        %v1886 = vunpack.c.l.b16 %v669
        %v1887 = vunpack.c.l.b16 %v670
        %v1888 = vunpack.c.h.b16 %v670
        %v1889 = vunpack.c.l.b16 %v671
        %v1890 = vunpack.c.l.b16 %v672
        %v1891 = vunpack.c.h.b16 %v672
        %v1892 = vunpack.c.l.b16 %v673
        %v1893 = vunpack.c.l.b16 %v674
        %v1894 = vunpack.c.h.b16 %v674
        %v1895 = vunpack.c.l.b16 %v675
        %v1896 = vunpack.c.l.b16 %v676
        %v1897 = vunpack.c.h.b16 %v676
        %v1898 = vunpack.c.l.b16 %v677
        %v1899 = vunpack.c.l.b16 %v678
        %v1900 = vunpack.c.h.b16 %v678
        %v1901 = vunpack.c.l.b16 %v679
        %v1902 = vunpack.c.l.b16 %v680
        %v1903 = vunpack.c.h.b16 %v680
        %v1904 = vunpack.c.l.b16 %v681
        %v1905 = vunpack.c.l.b16 %v682
        %v1906 = vunpack.c.h.b16 %v682
        %v1907 = vunpack.c.l.b16 %v683
        %v1908 = vunpack.c.l.b16 %v684
        %v1909 = vunpack.c.h.b16 %v684
        %v1910 = vunpack.c.l.b16 %v685
        %v1911 = vunpack.c.l.b16 %v686
        %v1912 = vunpack.c.h.b16 %v686
        %v1913 = vunpack.c.l.b16 %v687
        %v1914 = vunpack.c.l.b16 %v688
        %v1915 = vunpack.c.h.b16 %v688
        %v1916 = vunpack.c.l.b16 %v689
        %v1917 = vunpack.c.l.b16 %v690
        %v1918 = vunpack.c.h.b16 %v690
        %v1919 = vunpack.c.l.b16 %v691
        %v1920 = vunpack.c.l.b16 %v692
        %v1921 = vunpack.c.h.b16 %v692
        %v1922 = vunpack.c.l.b16 %v693
        %v1923 = vunpack.c.l.b16 %v694
        %v1924 = vunpack.c.h.b16 %v694
        %v1925 = vunpack.c.l.b16 %v695
        %v1926 = vpack.c.b16 %v1881, %v1878
        %v1927 = vpack.c.b16 %v1882, %v1879
        %v1928 = vpack.c.b16 %v1883, %v1880
        %v1929 = vpack.c.b16 %v1887, %v1884
        %v1930 = vpack.c.b16 %v1888, %v1885
        %v1931 = vpack.c.b16 %v1889, %v1886
        %v1932 = vpack.c.b16 %v1893, %v1890
        %v1933 = vpack.c.b16 %v1894, %v1891
        %v1934 = vpack.c.b16 %v1895, %v1892
        %v1935 = vpack.c.b16 %v1899, %v1896
        %v1936 = vpack.c.b16 %v1900, %v1897
        %v1937 = vpack.c.b16 %v1901, %v1898
        %v1938 = vpack.c.b16 %v1905, %v1902
        %v1939 = vpack.c.b16 %v1906, %v1903
        %v1940 = vpack.c.b16 %v1907, %v1904
        %v1941 = vpack.c.b16 %v1911, %v1908
        %v1942 = vpack.c.b16 %v1912, %v1909
        %v1943 = vpack.c.b16 %v1913, %v1910
        %v1944 = vpack.c.b16 %v1917, %v1914
        %v1945 = vpack.c.b16 %v1918, %v1915
        %v1946 = vpack.c.b16 %v1919, %v1916
        %v1947 = vpack.c.b16 %v1923, %v1920
        %v1948 = vpack.c.b16 %v1924, %v1921
        %v1949 = vpack.c.b16 %v1925, %v1922
        %1974 = vmatpush.bf16.msra.mxu0 %v1947
        %1975 = vmatpush.bf16.msra.mxu0 %v1944
        %1976 = vmatpush.bf16.msra.mxu0 %v1941
        %1977 = vmatpush.bf16.msra.mxu0 %v1938
        %1978 = vmatpush.bf16.msra.mxu0 %v1935
        %1979 = vmatpush.bf16.msra.mxu0 %v1932
        %1980 = vmatpush.bf16.msra.mxu0 %v1929
        %1981 = vmatpush.bf16.msra.mxu0 %v1926
        %1982 = vmatmul.bf16.gmra.mxu0 %v1842
        %v1983 = vpop.f32.mrf.mxu0
        %v1984 = vadd.f32 0.0, %v1983
        %v1985 = vpop.f32.mrf.mxu0
        %v1986 = vadd.f32 0.0, %v1985
        %1987 = vmatmul.bf16.gmra.mxu0 %v1843
        %v1988 = vpop.f32.mrf.mxu0
        %v1989 = vadd.f32 0.0, %v1988
        %v1990 = vpop.f32.mrf.mxu0
        %v1991 = vadd.f32 0.0, %v1990
        %1992 = vmatmul.bf16.gmra.mxu0 %v1844
        %v1993 = vpop.f32.mrf.mxu0
        %v1994 = vadd.f32 0.0, %v1993
        %v1995 = vpop.f32.mrf.mxu0
        %v1996 = vadd.f32 0.0, %v1995
        %1997 = vmatmul.bf16.gmra.mxu0 %v1845
        %v1998 = vpop.f32.mrf.mxu0
        %v1999 = vadd.f32 0.0, %v1998
        %v2000 = vpop.f32.mrf.mxu0
        %v2001 = vadd.f32 0.0, %v2000
        %2002 = vdwg.mxu0
        %2003 = vmatpush.bf16.msra.mxu0 %v1948
        %2004 = vmatpush.bf16.msra.mxu0 %v1945
        %2005 = vmatpush.bf16.msra.mxu0 %v1942
        %2006 = vmatpush.bf16.msra.mxu0 %v1939
        %2007 = vmatpush.bf16.msra.mxu0 %v1936
        %2008 = vmatpush.bf16.msra.mxu0 %v1933
        %2009 = vmatpush.bf16.msra.mxu0 %v1930
        %2010 = vmatpush.bf16.msra.mxu0 %v1927
        %2011 = vmatmul.bf16.gmra.mxu0 %v1842
        %v2012 = vpop.f32.mrf.mxu0
        %v2013 = vadd.f32 0.0, %v2012
        %v2014 = vpop.f32.mrf.mxu0
        %v2015 = vadd.f32 0.0, %v2014
        %2016 = vmatmul.bf16.gmra.mxu0 %v1843
        %v2017 = vpop.f32.mrf.mxu0
        %v2018 = vadd.f32 0.0, %v2017
        %v2019 = vpop.f32.mrf.mxu0
        %v2020 = vadd.f32 0.0, %v2019
        %2021 = vmatmul.bf16.gmra.mxu0 %v1844
        %v2022 = vpop.f32.mrf.mxu0
        %v2023 = vadd.f32 0.0, %v2022
        %v2024 = vpop.f32.mrf.mxu0
        %v2025 = vadd.f32 0.0, %v2024
        %2026 = vmatmul.bf16.gmra.mxu0 %v1845
        %v2027 = vpop.f32.mrf.mxu0
        %v2028 = vadd.f32 0.0, %v2027
        %v2029 = vpop.f32.mrf.mxu0
        %v2030 = vadd.f32 0.0, %v2029
        %2031 = vdwg.mxu0
        %2032 = vmatpush.bf16.msra.mxu0 %v1949
        %2033 = vmatpush.bf16.msra.mxu0 %v1946
        %2034 = vmatpush.bf16.msra.mxu0 %v1943
        %2035 = vmatpush.bf16.msra.mxu0 %v1940
        %2036 = vmatpush.bf16.msra.mxu0 %v1937
        %2037 = vmatpush.bf16.msra.mxu0 %v1934
        %2038 = vmatpush.bf16.msra.mxu0 %v1931
        %2039 = vmatpush.bf16.msra.mxu0 %v1928
        %2040 = vmatmul.bf16.gmra.mxu0 %v1842
        %v2041 = vpop.f32.mrf.mxu0
        %v2042 = vadd.f32 0.0, %v2041
        %v2043 = vpop.f32.mrf.mxu0
        %v2044 = vadd.f32 0.0, %v2043
        %2045 = vmatmul.bf16.gmra.mxu0 %v1843
        %v2046 = vpop.f32.mrf.mxu0
        %v2047 = vadd.f32 0.0, %v2046
        %v2048 = vpop.f32.mrf.mxu0
        %v2049 = vadd.f32 0.0, %v2048
        %2050 = vmatmul.bf16.gmra.mxu0 %v1844
        %v2051 = vpop.f32.mrf.mxu0
        %v2052 = vadd.f32 0.0, %v2051
        %v2053 = vpop.f32.mrf.mxu0
        %v2054 = vadd.f32 0.0, %v2053
        %2055 = vmatmul.bf16.gmra.mxu0 %v1845
        %v2056 = vpop.f32.mrf.mxu0
        %v2057 = vadd.f32 0.0, %v2056
        %v2058 = vpop.f32.mrf.mxu0
        %v2059 = vadd.f32 0.0, %v2058
        %2060 = vdwg.mxu0
        %v2093 = vunpack.c.l.b16 %v696
        %v2094 = vunpack.c.h.b16 %v696
        %v2095 = vunpack.c.l.b16 %v697
        %v2096 = vunpack.c.l.b16 %v698
        %v2097 = vunpack.c.h.b16 %v698
        %v2098 = vunpack.c.l.b16 %v699
        %v2099 = vunpack.c.l.b16 %v700
        %v2100 = vunpack.c.h.b16 %v700
        %v2101 = vunpack.c.l.b16 %v701
        %v2102 = vunpack.c.l.b16 %v702
        %v2103 = vunpack.c.h.b16 %v702
        %v2104 = vunpack.c.l.b16 %v703
        %v2105 = vunpack.c.l.b16 %v704
        %v2106 = vunpack.c.h.b16 %v704
        %v2107 = vunpack.c.l.b16 %v705
        %v2108 = vunpack.c.l.b16 %v706
        %v2109 = vunpack.c.h.b16 %v706
        %v2110 = vunpack.c.l.b16 %v707
        %v2111 = vunpack.c.l.b16 %v708
        %v2112 = vunpack.c.h.b16 %v708
        %v2113 = vunpack.c.l.b16 %v709
        %v2114 = vunpack.c.l.b16 %v710
        %v2115 = vunpack.c.h.b16 %v710
        %v2116 = vunpack.c.l.b16 %v711
        %v2117 = vunpack.c.l.b16 %v712
        %v2118 = vunpack.c.h.b16 %v712
        %v2119 = vunpack.c.l.b16 %v713
        %v2120 = vunpack.c.l.b16 %v714
        %v2121 = vunpack.c.h.b16 %v714
        %v2122 = vunpack.c.l.b16 %v715
        %v2123 = vunpack.c.l.b16 %v716
        %v2124 = vunpack.c.h.b16 %v716
        %v2125 = vunpack.c.l.b16 %v717
        %v2126 = vunpack.c.l.b16 %v718
        %v2127 = vunpack.c.h.b16 %v718
        %v2128 = vunpack.c.l.b16 %v719
        %v2129 = vunpack.c.l.b16 %v720
        %v2130 = vunpack.c.h.b16 %v720
        %v2131 = vunpack.c.l.b16 %v721
        %v2132 = vunpack.c.l.b16 %v722
        %v2133 = vunpack.c.h.b16 %v722
        %v2134 = vunpack.c.l.b16 %v723
        %v2135 = vunpack.c.l.b16 %v724
        %v2136 = vunpack.c.h.b16 %v724
        %v2137 = vunpack.c.l.b16 %v725
        %v2138 = vunpack.c.l.b16 %v726
        %v2139 = vunpack.c.h.b16 %v726
        %v2140 = vunpack.c.l.b16 %v727
        %v2141 = vpack.c.b16 %v2096, %v2093
        %v2142 = vpack.c.b16 %v2097, %v2094
        %v2143 = vpack.c.b16 %v2098, %v2095
        %v2144 = vpack.c.b16 %v2102, %v2099
        %v2145 = vpack.c.b16 %v2103, %v2100
        %v2146 = vpack.c.b16 %v2104, %v2101
        %v2147 = vpack.c.b16 %v2108, %v2105
        %v2148 = vpack.c.b16 %v2109, %v2106
        %v2149 = vpack.c.b16 %v2110, %v2107
        %v2150 = vpack.c.b16 %v2114, %v2111
        %v2151 = vpack.c.b16 %v2115, %v2112
        %v2152 = vpack.c.b16 %v2116, %v2113
        %v2153 = vpack.c.b16 %v2120, %v2117
        %v2154 = vpack.c.b16 %v2121, %v2118
        %v2155 = vpack.c.b16 %v2122, %v2119
        %v2156 = vpack.c.b16 %v2126, %v2123
        %v2157 = vpack.c.b16 %v2127, %v2124
        %v2158 = vpack.c.b16 %v2128, %v2125
        %v2159 = vpack.c.b16 %v2132, %v2129
        %v2160 = vpack.c.b16 %v2133, %v2130
        %v2161 = vpack.c.b16 %v2134, %v2131
        %v2162 = vpack.c.b16 %v2138, %v2135
        %v2163 = vpack.c.b16 %v2139, %v2136
        %v2164 = vpack.c.b16 %v2140, %v2137
        %2189 = vmatpush.bf16.msra.mxu0 %v2162
        %2190 = vmatpush.bf16.msra.mxu0 %v2159
        %2191 = vmatpush.bf16.msra.mxu0 %v2156
        %2192 = vmatpush.bf16.msra.mxu0 %v2153
        %2193 = vmatpush.bf16.msra.mxu0 %v2150
        %2194 = vmatpush.bf16.msra.mxu0 %v2147
        %2195 = vmatpush.bf16.msra.mxu0 %v2144
        %2196 = vmatpush.bf16.msra.mxu0 %v2141
        %2197 = vmatmul.bf16.gmra.mxu0 %v771
        %v2198 = vpop.f32.mrf.mxu0
        %v2199 = vadd.f32 %v1984, %v2198
        %v2200 = vpop.f32.mrf.mxu0
        %v2201 = vadd.f32 %v1986, %v2200
        %2202 = vmatmul.bf16.gmra.mxu0 %v772
        %v2203 = vpop.f32.mrf.mxu0
        %v2204 = vadd.f32 %v1989, %v2203
        %v2205 = vpop.f32.mrf.mxu0
        %v2206 = vadd.f32 %v1991, %v2205
        %2207 = vmatmul.bf16.gmra.mxu0 %v773
        %v2208 = vpop.f32.mrf.mxu0
        %v2209 = vadd.f32 %v1994, %v2208
        %v2210 = vpop.f32.mrf.mxu0
        %v2211 = vadd.f32 %v1996, %v2210
        %2212 = vmatmul.bf16.gmra.mxu0 %v774
        %v2213 = vpop.f32.mrf.mxu0
        %v2214 = vadd.f32 %v1999, %v2213
        %v2215 = vpop.f32.mrf.mxu0
        %v2216 = vadd.f32 %v2001, %v2215
        %2217 = vdwg.mxu0
        %2218 = vmatpush.bf16.msra.mxu0 %v2163
        %2219 = vmatpush.bf16.msra.mxu0 %v2160
        %2220 = vmatpush.bf16.msra.mxu0 %v2157
        %2221 = vmatpush.bf16.msra.mxu0 %v2154
        %2222 = vmatpush.bf16.msra.mxu0 %v2151
        %2223 = vmatpush.bf16.msra.mxu0 %v2148
        %2224 = vmatpush.bf16.msra.mxu0 %v2145
        %2225 = vmatpush.bf16.msra.mxu0 %v2142
        %2226 = vmatmul.bf16.gmra.mxu0 %v771
        %v2227 = vpop.f32.mrf.mxu0
        %v2228 = vadd.f32 %v2013, %v2227
        %v2229 = vpop.f32.mrf.mxu0
        %v2230 = vadd.f32 %v2015, %v2229
        %2231 = vmatmul.bf16.gmra.mxu0 %v772
        %v2232 = vpop.f32.mrf.mxu0
        %v2233 = vadd.f32 %v2018, %v2232
        %v2234 = vpop.f32.mrf.mxu0
        %v2235 = vadd.f32 %v2020, %v2234
        %2236 = vmatmul.bf16.gmra.mxu0 %v773
        %v2237 = vpop.f32.mrf.mxu0
        %v2238 = vadd.f32 %v2023, %v2237
        %v2239 = vpop.f32.mrf.mxu0
        %v2240 = vadd.f32 %v2025, %v2239
        %2241 = vmatmul.bf16.gmra.mxu0 %v774
        %v2242 = vpop.f32.mrf.mxu0
        %v2243 = vadd.f32 %v2028, %v2242
        %v2244 = vpop.f32.mrf.mxu0
        %v2245 = vadd.f32 %v2030, %v2244
        %2246 = vdwg.mxu0
        %2247 = vmatpush.bf16.msra.mxu0 %v2164
        %2248 = vmatpush.bf16.msra.mxu0 %v2161
        %2249 = vmatpush.bf16.msra.mxu0 %v2158
        %2250 = vmatpush.bf16.msra.mxu0 %v2155
        %2251 = vmatpush.bf16.msra.mxu0 %v2152
        %2252 = vmatpush.bf16.msra.mxu0 %v2149
        %2253 = vmatpush.bf16.msra.mxu0 %v2146
        %2254 = vmatpush.bf16.msra.mxu0 %v2143
        %2255 = vmatmul.bf16.gmra.mxu0 %v771
        %v2256 = vpop.f32.mrf.mxu0
        %v2257 = vadd.f32 %v2042, %v2256
        %v2258 = vpop.f32.mrf.mxu0
        %v2259 = vadd.f32 %v2044, %v2258
        %2260 = vmatmul.bf16.gmra.mxu0 %v772
        %v2261 = vpop.f32.mrf.mxu0
        %v2262 = vadd.f32 %v2047, %v2261
        %v2263 = vpop.f32.mrf.mxu0
        %v2264 = vadd.f32 %v2049, %v2263
        %2265 = vmatmul.bf16.gmra.mxu0 %v773
        %v2266 = vpop.f32.mrf.mxu0
        %v2267 = vadd.f32 %v2052, %v2266
        %v2268 = vpop.f32.mrf.mxu0
        %v2269 = vadd.f32 %v2054, %v2268
        %2270 = vmatmul.bf16.gmra.mxu0 %v774
        %v2271 = vpop.f32.mrf.mxu0
        %v2272 = vadd.f32 %v2057, %v2271
        %v2273 = vpop.f32.mrf.mxu0
        %v2274 = vadd.f32 %v2059, %v2273
        %2275 = vdwg.mxu0
        %v2276 = vrot.slane %v2199, 7
        %v2277 = vrot.slane %v2201, 7
        %v2278 = vrot.slane %v2204, 7
        %v2279 = vrot.slane %v2206, 7
        %v2280 = vrot.slane %v2209, 7
        %v2281 = vrot.slane %v2211, 7
        %v2282 = vrot.slane %v2214, 7
        %v2283 = vrot.slane %v2216, 7
        %v2284 = vsel %vm1623, %v2282, %v2283
        %v2285 = vsel %vm1623, %v2281, %v2282
        %v2286 = vsel %vm1623, %v2280, %v2281
        %v2287 = vsel %vm1623, %v2279, %v2280
        %v2288 = vsel %vm1623, %v2278, %v2279
        %v2289 = vsel %vm1623, %v2277, %v2278
        %v2290 = vsel %vm1623, %v2276, %v2277
        %v2291 = vsel %vm1623, %v2283, %v2276
        %v2292 = vrot.slane %v2257, 1
        %v2293 = vrot.slane %v2259, 1
        %v2294 = vrot.slane %v2262, 1
        %v2295 = vrot.slane %v2264, 1
        %v2296 = vrot.slane %v2267, 1
        %v2297 = vrot.slane %v2269, 1
        %v2298 = vrot.slane %v2272, 1
        %v2299 = vrot.slane %v2274, 1
        %v2300 = vsel %vm1656, %v2298, %v2299
        %v2301 = vsel %vm1656, %v2297, %v2298
        %v2302 = vsel %vm1656, %v2296, %v2297
        %v2303 = vsel %vm1656, %v2295, %v2296
        %v2304 = vsel %vm1656, %v2294, %v2295
        %v2305 = vsel %vm1656, %v2293, %v2294
        %v2306 = vsel %vm1656, %v2292, %v2293
        %v2307 = vsel %vm1656, %v2299, %v2292
        %v2308 = vsel %vm1674, 0.0, %v2291
        %v2309 = vsel %vm1674, 0.0, %v2290
        %v2310 = vsel %vm1674, 0.0, %v2289
        %v2311 = vsel %vm1674, 0.0, %v2288
        %v2312 = vsel %vm1674, 0.0, %v2287
        %v2313 = vsel %vm1674, 0.0, %v2286
        %v2314 = vsel %vm1674, 0.0, %v2285
        %v2315 = vsel %vm1674, 0.0, %v2284
        %v2316 = vsel %vm1692, 0.0, %v2306
        %v2317 = vsel %vm1692, 0.0, %v2305
        %v2318 = vsel %vm1692, 0.0, %v2304
        %v2319 = vsel %vm1692, 0.0, %v2303
        %v2320 = vsel %vm1692, 0.0, %v2302
        %v2321 = vsel %vm1692, 0.0, %v2301
        %v2322 = vsel %vm1692, 0.0, %v2300
        %v2323 = vsel %vm1692, 0.0, %v2307
        %v2324 = vadd.f32 %v2228, %v2308
        %v2325 = vadd.f32 %v2230, %v2309
        %v2326 = vadd.f32 %v2233, %v2310
        %v2327 = vadd.f32 %v2235, %v2311
        %v2328 = vadd.f32 %v2238, %v2312
        %v2329 = vadd.f32 %v2240, %v2313
        %v2330 = vadd.f32 %v2243, %v2314
        %v2331 = vadd.f32 %v2245, %v2315
        %v2332 = vadd.f32 %v2324, %v2316
        %v2333 = vadd.f32 %v2325, %v2317
        %v2334 = vadd.f32 %v2326, %v2318
        %v2335 = vadd.f32 %v2327, %v2319
        %v2336 = vadd.f32 %v2328, %v2320
        %v2337 = vadd.f32 %v2329, %v2321
        %v2338 = vadd.f32 %v2330, %v2322
        %v2339 = vadd.f32 %v2331, %v2323
        %v2341 = vperm.slane %v728, 0
        %v2343 = vadd.f32 %v2332, %v2341
        %v2344 = vadd.f32 %v2333, %v2341
        %v2345 = vadd.f32 %v2334, %v2341
        %v2346 = vadd.f32 %v2335, %v2341
        %v2347 = vadd.f32 %v2336, %v2341
        %v2348 = vadd.f32 %v2337, %v2341
        %v2349 = vadd.f32 %v2338, %v2341
        %v2350 = vadd.f32 %v2339, %v2341
        %v2351 = vtanh.pop %v2343
        %v2352 = vtanh.pop %v2344
        %v2353 = vtanh.pop %v2345
        %v2354 = vtanh.pop %v2346
        %v2355 = vtanh.pop %v2347
        %v2356 = vtanh.pop %v2348
        %v2357 = vtanh.pop %v2349
        %v2358 = vtanh.pop %v2350
        %v2359 = vsub.f32 %v2351, %v1826
        %v2360 = vsub.f32 %v2352, %v1827
        %v2361 = vsub.f32 %v2353, %v1828
        %v2362 = vsub.f32 %v2354, %v1829
        %v2363 = vsub.f32 %v2355, %v1830
        %v2364 = vsub.f32 %v2356, %v1831
        %v2365 = vsub.f32 %v2357, %v1832
        %v2366 = vsub.f32 %v2358, %v1833
        %v2367 = vmul.f32 %v1786, %v2359
        %v2368 = vmul.f32 %v1787, %v2360
        %v2369 = vmul.f32 %v1788, %v2361
        %v2370 = vmul.f32 %v1789, %v2362
        %v2371 = vmul.f32 %v1790, %v2363
        %v2372 = vmul.f32 %v1791, %v2364
        %v2373 = vmul.f32 %v1792, %v2365
        %v2374 = vmul.f32 %v1793, %v2366
        %v2375 = vadd.f32 %v1826, %v2367
        %v2376 = vadd.f32 %v1827, %v2368
        %v2377 = vadd.f32 %v1828, %v2369
        %v2378 = vadd.f32 %v1829, %v2370
        %v2379 = vadd.f32 %v1830, %v2371
        %v2380 = vadd.f32 %v1831, %v2372
        %v2381 = vadd.f32 %v1832, %v2373
        %v2382 = vadd.f32 %v1833, %v2374
        %v2383 = vpack.c.bf16 %v2375, %v2375
        %v2384 = vpack.c.bf16 %v2376, %v2376
        %v2385 = vpack.c.bf16 %v2377, %v2377
        %v2386 = vpack.c.bf16 %v2378, %v2378
        %v2387 = vpack.c.bf16 %v2379, %v2379
        %v2388 = vpack.c.bf16 %v2380, %v2380
        %v2389 = vpack.c.bf16 %v2381, %v2381
        %v2390 = vpack.c.bf16 %v2382, %v2382
        %v2391 = vadd.s32 %v566, 8
        %v2392 = vadd.s32 %v566, 16
        %v2393 = vadd.s32 %v566, 24
        %v2394 = vadd.s32 %v566, 32
        %v2395 = vadd.s32 %v566, 40
        %v2396 = vadd.s32 %v566, 48
        %v2397 = vadd.s32 %v566, 56
        %v2398 = vld [vmem:[#allocation6] sm:$0xff]
        %v2399 = vld [vmem:[#allocation6 + $0x8] sm:$0xff]
        %v2400 = vld [vmem:[#allocation6 + $0x10] sm:$0xff]
        %v2401 = vld [vmem:[#allocation6 + $0x18] sm:$0xff]
        %v2402 = vld [vmem:[#allocation6 + $0x20] sm:$0xff]
        %v2403 = vld [vmem:[#allocation6 + $0x28] sm:$0xff]
        %v2404 = vld [vmem:[#allocation6 + $0x30] sm:$0xff]
        %v2405 = vld [vmem:[#allocation6 + $0x38] sm:$0xff]
        %v2406 = vld [vmem:[#allocation6 + $0x40] sm:$0xff]
        %v2407 = vld [vmem:[#allocation6 + $0x48] sm:$0xff]
        %v2408 = vld [vmem:[#allocation6 + $0x50] sm:$0xff]
        %v2409 = vld [vmem:[#allocation6 + $0x58] sm:$0xff]
        %v2410 = vld [vmem:[#allocation6 + $0x60] sm:$0xff]
        %v2411 = vld [vmem:[#allocation6 + $0x68] sm:$0xff]
        %v2412 = vld [vmem:[#allocation6 + $0x70] sm:$0xff]
        %v2413 = vld [vmem:[#allocation6 + $0x78] sm:$0xff]
        %v2414 = vld [vmem:[#allocation6 + $0x80] sm:$0xff]
        %v2415 = vld [vmem:[#allocation6 + $0x88] sm:$0xff]
        %v2416 = vld [vmem:[#allocation6 + $0x90] sm:$0xff]
        %v2417 = vld [vmem:[#allocation6 + $0x98] sm:$0xff]
        %v2418 = vld [vmem:[#allocation6 + $0xa0] sm:$0xff]
        %v2419 = vld [vmem:[#allocation6 + $0xa8] sm:$0xff]
        %v2420 = vld [vmem:[#allocation6 + $0xb0] sm:$0xff]
        %v2421 = vld [vmem:[#allocation6 + $0xb8] sm:$0xff]
        %v2422 = vld [vmem:[#allocation6 + $0xc0] sm:$0xff]
        %v2423 = vld [vmem:[#allocation6 + $0xc8] sm:$0xff]
        %v2424 = vld [vmem:[#allocation6 + $0xd0] sm:$0xff]
        %v2425 = vld [vmem:[#allocation6 + $0xd8] sm:$0xff]
        %v2426 = vld [vmem:[#allocation6 + $0xe0] sm:$0xff]
        %v2427 = vld [vmem:[#allocation6 + $0xe8] sm:$0xff]
        %v2428 = vld [vmem:[#allocation6 + $0xf0] sm:$0xff]
        %v2429 = vld [vmem:[#allocation6 + $0xf8] sm:$0xff]
        %v2430 = vld [vmem:[#allocation6 + $0x100] sm:$0xff]
        %v2431 = vld [vmem:[#allocation6 + $0x108] sm:$0xff]
        %v2432 = vld [vmem:[#allocation6 + $0x110] sm:$0xff]
        %v2433 = vld [vmem:[#allocation6 + $0x118] sm:$0xff]
        %v2434 = vld [vmem:[#allocation6 + $0x120] sm:$0xff]
        %v2435 = vld [vmem:[#allocation6 + $0x128] sm:$0xff]
        %v2436 = vld [vmem:[#allocation6 + $0x130] sm:$0xff]
        %v2437 = vld [vmem:[#allocation6 + $0x138] sm:$0xff]
        %v2438 = vld [vmem:[#allocation6 + $0x140] sm:$0xff]
        %v2439 = vld [vmem:[#allocation6 + $0x148] sm:$0xff]
        %v2440 = vld [vmem:[#allocation6 + $0x150] sm:$0xff]
        %v2441 = vld [vmem:[#allocation6 + $0x158] sm:$0xff]
        %v2442 = vld [vmem:[#allocation6 + $0x160] sm:$0xff]
        %v2443 = vld [vmem:[#allocation6 + $0x168] sm:$0xff]
        %v2444 = vld [vmem:[#allocation6 + $0x170] sm:$0xff]
        %v2445 = vld [vmem:[#allocation6 + $0x178] sm:$0xff]
        %v2446 = vld [vmem:[#allocation6 + $0x180] sm:$0xff]
        %v2447 = vld [vmem:[#allocation6 + $0x188] sm:$0xff]
        %v2448 = vld [vmem:[#allocation6 + $0x190] sm:$0xff]
        %v2449 = vld [vmem:[#allocation6 + $0x198] sm:$0xff]
        %v2450 = vld [vmem:[#allocation6 + $0x1a0] sm:$0xff]
        %v2451 = vld [vmem:[#allocation6 + $0x1a8] sm:$0xff]
        %v2452 = vld [vmem:[#allocation6 + $0x1b0] sm:$0xff]
        %v2453 = vld [vmem:[#allocation6 + $0x1b8] sm:$0xff]
        %v2454 = vld [vmem:[#allocation6 + $0x1c0] sm:$0xff]
        %v2455 = vld [vmem:[#allocation6 + $0x1c8] sm:$0xff]
        %v2456 = vld [vmem:[#allocation6 + $0x1d0] sm:$0xff]
        %v2457 = vld [vmem:[#allocation6 + $0x1d8] sm:$0xff]
        %v2458 = vld [vmem:[#allocation6 + $0x1e0] sm:$0xff]
        %v2459 = vld [vmem:[#allocation6 + $0x1e8] sm:$0xff]
        %v2460 = vld [vmem:[#allocation6 + $0x1f0] sm:$0xff]
        %v2461 = vld [vmem:[#allocation6 + $0x1f8] sm:$0xff]
        %v2462 = vld [vmem:[#allocation6 + $0x200] sm:$0xff]
        %v2463 = vld [vmem:[#allocation6 + $0x208] sm:$0xff]
        %v2464 = vld [vmem:[#allocation6 + $0x210] sm:$0xff]
        %v2465 = vld [vmem:[#allocation6 + $0x218] sm:$0xff]
        %v2466 = vld [vmem:[#allocation6 + $0x220] sm:$0xff]
        %v2467 = vld [vmem:[#allocation6 + $0x228] sm:$0xff]
        %v2468 = vld [vmem:[#allocation6 + $0x230] sm:$0xff]
        %v2469 = vld [vmem:[#allocation6 + $0x238] sm:$0xff]
        %v2470 = vld [vmem:[#allocation6 + $0x240] sm:$0xff]
        %v2471 = vld [vmem:[#allocation6 + $0x248] sm:$0xff]
        %v2472 = vld [vmem:[#allocation6 + $0x250] sm:$0xff]
        %v2473 = vld [vmem:[#allocation6 + $0x258] sm:$0xff]
        %v2474 = vld [vmem:[#allocation6 + $0x260] sm:$0xff]
        %v2475 = vld [vmem:[#allocation6 + $0x268] sm:$0xff]
        %v2476 = vld [vmem:[#allocation6 + $0x270] sm:$0xff]
        %v2477 = vld [vmem:[#allocation6 + $0x278] sm:$0xff]
        %v2478 = vld [vmem:[#allocation6 + $0x280] sm:$0xff]
        %v2479 = vld [vmem:[#allocation6 + $0x288] sm:$0xff]
        %v2480 = vld [vmem:[#allocation6 + $0x290] sm:$0xff]
        %v2481 = vld [vmem:[#allocation6 + $0x298] sm:$0xff]
        %v2482 = vld [vmem:[#allocation6 + $0x2a0] sm:$0xff]
        %v2483 = vld [vmem:[#allocation6 + $0x2a8] sm:$0xff]
        %v2484 = vld [vmem:[#allocation6 + $0x2b0] sm:$0xff]
        %v2485 = vld [vmem:[#allocation6 + $0x2b8] sm:$0xff]
        %v2486 = vld [vmem:[#allocation6 + $0x2c0] sm:$0xff]
        %v2487 = vld [vmem:[#allocation6 + $0x2c8] sm:$0xff]
        %v2488 = vld [vmem:[#allocation6 + $0x2d0] sm:$0xff]
        %v2489 = vld [vmem:[#allocation6 + $0x2d8] sm:$0xff]
        %v2490 = vld [vmem:[#allocation6 + $0x2e0] sm:$0xff]
        %v2491 = vld [vmem:[#allocation6 + $0x2e8] sm:$0xff]
        %v2492 = vld [vmem:[#allocation6 + $0x2f0] sm:$0xff]
        %v2493 = vld [vmem:[#allocation6 + $0x2f8] sm:$0xff]
        %v2494 = vld [vmem:[%s8] sm:$0x3]
        %v2495 = vld [vmem:[#allocation7] sm:$0xff]
        %v2496 = vld [vmem:[#allocation7 + $0x8] sm:$0xf]
        %v2497 = vld [vmem:[#allocation7 + $0xc] sm:$0xff]
        %v2498 = vld [vmem:[#allocation7 + $0x14] sm:$0xf]
        %v2499 = vld [vmem:[#allocation7 + $0x18] sm:$0xff]
        %v2500 = vld [vmem:[#allocation7 + $0x20] sm:$0xf]
        %v2501 = vld [vmem:[#allocation7 + $0x24] sm:$0xff]
        %v2502 = vld [vmem:[#allocation7 + $0x2c] sm:$0xf]
        %v2503 = vld [vmem:[#allocation7 + $0x30] sm:$0xff]
        %v2504 = vld [vmem:[#allocation7 + $0x38] sm:$0xf]
        %v2505 = vld [vmem:[#allocation7 + $0x3c] sm:$0xff]
        %v2506 = vld [vmem:[#allocation7 + $0x44] sm:$0xf]
        %v2507 = vld [vmem:[#allocation7 + $0x48] sm:$0xff]
        %v2508 = vld [vmem:[#allocation7 + $0x50] sm:$0xf]
        %v2509 = vld [vmem:[#allocation7 + $0x54] sm:$0xff]
        %v2510 = vld [vmem:[#allocation7 + $0x5c] sm:$0xf]
        %v2511 = vld [vmem:[#allocation7 + $0x60] sm:$0xff]
        %v2512 = vld [vmem:[#allocation7 + $0x68] sm:$0xf]
        %v2513 = vld [vmem:[#allocation7 + $0x6c] sm:$0xff]
        %v2514 = vld [vmem:[#allocation7 + $0x74] sm:$0xf]
        %v2515 = vld [vmem:[#allocation7 + $0x78] sm:$0xff]
        %v2516 = vld [vmem:[#allocation7 + $0x80] sm:$0xf]
        %v2517 = vld [vmem:[#allocation7 + $0x84] sm:$0xff]
        %v2518 = vld [vmem:[#allocation7 + $0x8c] sm:$0xf]
        %v2519 = vld [vmem:[#allocation7 + $0x90] sm:$0xff]
        %v2520 = vld [vmem:[#allocation7 + $0x98] sm:$0xf]
        %v2521 = vld [vmem:[#allocation7 + $0x9c] sm:$0xff]
        %v2522 = vld [vmem:[#allocation7 + $0xa4] sm:$0xf]
        %v2523 = vld [vmem:[#allocation7 + $0xa8] sm:$0xff]
        %v2524 = vld [vmem:[#allocation7 + $0xb0] sm:$0xf]
        %v2525 = vld [vmem:[#allocation7 + $0xb4] sm:$0xff]
        %v2526 = vld [vmem:[#allocation7 + $0xbc] sm:$0xf]
        %v2527 = vld [vmem:[#allocation9] sm:$0xff]
        %v2528 = vld [vmem:[#allocation9 + $0x8] sm:$0xf]
        %v2529 = vld [vmem:[#allocation9 + $0xc] sm:$0xff]
        %v2530 = vld [vmem:[#allocation9 + $0x14] sm:$0xf]
        %v2531 = vld [vmem:[#allocation9 + $0x18] sm:$0xff]
        %v2532 = vld [vmem:[#allocation9 + $0x20] sm:$0xf]
        %v2533 = vld [vmem:[#allocation9 + $0x24] sm:$0xff]
        %v2534 = vld [vmem:[#allocation9 + $0x2c] sm:$0xf]
        %v2535 = vld [vmem:[#allocation9 + $0x30] sm:$0xff]
        %v2536 = vld [vmem:[#allocation9 + $0x38] sm:$0xf]
        %v2537 = vld [vmem:[#allocation9 + $0x3c] sm:$0xff]
        %v2538 = vld [vmem:[#allocation9 + $0x44] sm:$0xf]
        %v2539 = vld [vmem:[#allocation9 + $0x48] sm:$0xff]
        %v2540 = vld [vmem:[#allocation9 + $0x50] sm:$0xf]
        %v2541 = vld [vmem:[#allocation9 + $0x54] sm:$0xff]
        %v2542 = vld [vmem:[#allocation9 + $0x5c] sm:$0xf]
        %v2543 = vld [vmem:[#allocation9 + $0x60] sm:$0xff]
        %v2544 = vld [vmem:[#allocation9 + $0x68] sm:$0xf]
        %v2545 = vld [vmem:[#allocation9 + $0x6c] sm:$0xff]
        %v2546 = vld [vmem:[#allocation9 + $0x74] sm:$0xf]
        %v2547 = vld [vmem:[#allocation9 + $0x78] sm:$0xff]
        %v2548 = vld [vmem:[#allocation9 + $0x80] sm:$0xf]
        %v2549 = vld [vmem:[#allocation9 + $0x84] sm:$0xff]
        %v2550 = vld [vmem:[#allocation9 + $0x8c] sm:$0xf]
        %v2551 = vld [vmem:[#allocation9 + $0x90] sm:$0xff]
        %v2552 = vld [vmem:[#allocation9 + $0x98] sm:$0xf]
        %v2553 = vld [vmem:[#allocation9 + $0x9c] sm:$0xff]
        %v2554 = vld [vmem:[#allocation9 + $0xa4] sm:$0xf]
        %v2555 = vld [vmem:[#allocation9 + $0xa8] sm:$0xff]
        %v2556 = vld [vmem:[#allocation9 + $0xb0] sm:$0xf]
        %v2557 = vld [vmem:[#allocation9 + $0xb4] sm:$0xff]
        %v2558 = vld [vmem:[#allocation9 + $0xbc] sm:$0xf]
        %v2559 = vld [vmem:[%s11] sm:$0x1]
        %vm2560 = vcmp.lt.s32.totalorder %v566, 8
        %vm2561 = vcmp.lt.s32.totalorder %v2391, 8
        %vm2562 = vcmp.lt.s32.totalorder %v2392, 8
        %vm2563 = vcmp.lt.s32.totalorder %v2393, 8
        %vm2564 = vcmp.lt.s32.totalorder %v2394, 8
        %vm2565 = vcmp.lt.s32.totalorder %v2395, 8
        %vm2566 = vcmp.lt.s32.totalorder %v2396, 8
        %vm2567 = vcmp.lt.s32.totalorder %v2397, 8
        %vm2568 = vcmp.ge.s32.totalorder %v566, 56
        %vm2569 = vcmp.ge.s32.totalorder %v2391, 56
        %vm2570 = vcmp.ge.s32.totalorder %v2392, 56
        %vm2571 = vcmp.ge.s32.totalorder %v2393, 56
        %vm2572 = vcmp.ge.s32.totalorder %v2394, 56
        %vm2573 = vcmp.ge.s32.totalorder %v2395, 56
        %vm2574 = vcmp.ge.s32.totalorder %v2396, 56
        %vm2575 = vcmp.ge.s32.totalorder %v2397, 56
        %v2584 = vunpack.c.l.b16 %v2383
        %v2585 = vunpack.c.l.b16 %v2384
        %v2586 = vunpack.c.l.b16 %v2385
        %v2587 = vunpack.c.l.b16 %v2386
        %v2588 = vunpack.c.l.b16 %v2387
        %v2589 = vunpack.c.l.b16 %v2388
        %v2590 = vunpack.c.l.b16 %v2389
        %v2591 = vunpack.c.l.b16 %v2390
        %v2592 = vpack.c.b16 %v2585, %v2584
        %v2593 = vpack.c.b16 %v2587, %v2586
        %v2594 = vpack.c.b16 %v2589, %v2588
        %v2595 = vpack.c.b16 %v2591, %v2590
        %v2696 = vunpack.c.l.b16 %v2398
        %v2697 = vunpack.c.h.b16 %v2398
        %v2698 = vunpack.c.l.b16 %v2399
        %v2699 = vunpack.c.h.b16 %v2399
        %v2700 = vunpack.c.l.b16 %v2400
        %v2701 = vunpack.c.h.b16 %v2400
        %v2702 = vunpack.c.l.b16 %v2401
        %v2703 = vunpack.c.h.b16 %v2401
        %v2704 = vunpack.c.l.b16 %v2402
        %v2705 = vunpack.c.h.b16 %v2402
        %v2706 = vunpack.c.l.b16 %v2403
        %v2707 = vunpack.c.h.b16 %v2403
        %v2708 = vunpack.c.l.b16 %v2404
        %v2709 = vunpack.c.h.b16 %v2404
        %v2710 = vunpack.c.l.b16 %v2405
        %v2711 = vunpack.c.h.b16 %v2405
        %v2712 = vunpack.c.l.b16 %v2406
        %v2713 = vunpack.c.h.b16 %v2406
        %v2714 = vunpack.c.l.b16 %v2407
        %v2715 = vunpack.c.h.b16 %v2407
        %v2716 = vunpack.c.l.b16 %v2408
        %v2717 = vunpack.c.h.b16 %v2408
        %v2718 = vunpack.c.l.b16 %v2409
        %v2719 = vunpack.c.h.b16 %v2409
        %v2720 = vunpack.c.l.b16 %v2410
        %v2721 = vunpack.c.h.b16 %v2410
        %v2722 = vunpack.c.l.b16 %v2411
        %v2723 = vunpack.c.h.b16 %v2411
        %v2724 = vunpack.c.l.b16 %v2412
        %v2725 = vunpack.c.h.b16 %v2412
        %v2726 = vunpack.c.l.b16 %v2413
        %v2727 = vunpack.c.h.b16 %v2413
        %v2728 = vunpack.c.l.b16 %v2414
        %v2729 = vunpack.c.h.b16 %v2414
        %v2730 = vunpack.c.l.b16 %v2415
        %v2731 = vunpack.c.h.b16 %v2415
        %v2732 = vunpack.c.l.b16 %v2416
        %v2733 = vunpack.c.h.b16 %v2416
        %v2734 = vunpack.c.l.b16 %v2417
        %v2735 = vunpack.c.h.b16 %v2417
        %v2736 = vunpack.c.l.b16 %v2418
        %v2737 = vunpack.c.h.b16 %v2418
        %v2738 = vunpack.c.l.b16 %v2419
        %v2739 = vunpack.c.h.b16 %v2419
        %v2740 = vunpack.c.l.b16 %v2420
        %v2741 = vunpack.c.h.b16 %v2420
        %v2742 = vunpack.c.l.b16 %v2421
        %v2743 = vunpack.c.h.b16 %v2421
        %v2744 = vunpack.c.l.b16 %v2422
        %v2745 = vunpack.c.h.b16 %v2422
        %v2746 = vunpack.c.l.b16 %v2423
        %v2747 = vunpack.c.h.b16 %v2423
        %v2748 = vunpack.c.l.b16 %v2424
        %v2749 = vunpack.c.h.b16 %v2424
        %v2750 = vunpack.c.l.b16 %v2425
        %v2751 = vunpack.c.h.b16 %v2425
        %v2752 = vunpack.c.l.b16 %v2426
        %v2753 = vunpack.c.h.b16 %v2426
        %v2754 = vunpack.c.l.b16 %v2427
        %v2755 = vunpack.c.h.b16 %v2427
        %v2756 = vunpack.c.l.b16 %v2428
        %v2757 = vunpack.c.h.b16 %v2428
        %v2758 = vunpack.c.l.b16 %v2429
        %v2759 = vunpack.c.h.b16 %v2429
        %v2760 = vunpack.c.l.b16 %v2430
        %v2761 = vunpack.c.h.b16 %v2430
        %v2762 = vunpack.c.l.b16 %v2431
        %v2763 = vunpack.c.h.b16 %v2431
        %v2764 = vunpack.c.l.b16 %v2432
        %v2765 = vunpack.c.h.b16 %v2432
        %v2766 = vunpack.c.l.b16 %v2433
        %v2767 = vunpack.c.h.b16 %v2433
        %v2768 = vunpack.c.l.b16 %v2434
        %v2769 = vunpack.c.h.b16 %v2434
        %v2770 = vunpack.c.l.b16 %v2435
        %v2771 = vunpack.c.h.b16 %v2435
        %v2772 = vunpack.c.l.b16 %v2436
        %v2773 = vunpack.c.h.b16 %v2436
        %v2774 = vunpack.c.l.b16 %v2437
        %v2775 = vunpack.c.h.b16 %v2437
        %v2776 = vunpack.c.l.b16 %v2438
        %v2777 = vunpack.c.h.b16 %v2438
        %v2778 = vunpack.c.l.b16 %v2439
        %v2779 = vunpack.c.h.b16 %v2439
        %v2780 = vunpack.c.l.b16 %v2440
        %v2781 = vunpack.c.h.b16 %v2440
        %v2782 = vunpack.c.l.b16 %v2441
        %v2783 = vunpack.c.h.b16 %v2441
        %v2784 = vunpack.c.l.b16 %v2442
        %v2785 = vunpack.c.h.b16 %v2442
        %v2786 = vunpack.c.l.b16 %v2443
        %v2787 = vunpack.c.h.b16 %v2443
        %v2788 = vunpack.c.l.b16 %v2444
        %v2789 = vunpack.c.h.b16 %v2444
        %v2790 = vunpack.c.l.b16 %v2445
        %v2791 = vunpack.c.h.b16 %v2445
        %v2792 = vunpack.c.l.b16 %v2446
        %v2793 = vunpack.c.h.b16 %v2446
        %v2794 = vunpack.c.l.b16 %v2447
        %v2795 = vunpack.c.h.b16 %v2447
        %v2796 = vunpack.c.l.b16 %v2448
        %v2797 = vunpack.c.h.b16 %v2448
        %v2798 = vunpack.c.l.b16 %v2449
        %v2799 = vunpack.c.h.b16 %v2449
        %v2800 = vunpack.c.l.b16 %v2450
        %v2801 = vunpack.c.h.b16 %v2450
        %v2802 = vunpack.c.l.b16 %v2451
        %v2803 = vunpack.c.h.b16 %v2451
        %v2804 = vunpack.c.l.b16 %v2452
        %v2805 = vunpack.c.h.b16 %v2452
        %v2806 = vunpack.c.l.b16 %v2453
        %v2807 = vunpack.c.h.b16 %v2453
        %v2808 = vunpack.c.l.b16 %v2454
        %v2809 = vunpack.c.h.b16 %v2454
        %v2810 = vunpack.c.l.b16 %v2455
        %v2811 = vunpack.c.h.b16 %v2455
        %v2812 = vunpack.c.l.b16 %v2456
        %v2813 = vunpack.c.h.b16 %v2456
        %v2814 = vunpack.c.l.b16 %v2457
        %v2815 = vunpack.c.h.b16 %v2457
        %v2816 = vunpack.c.l.b16 %v2458
        %v2817 = vunpack.c.h.b16 %v2458
        %v2818 = vunpack.c.l.b16 %v2459
        %v2819 = vunpack.c.h.b16 %v2459
        %v2820 = vunpack.c.l.b16 %v2460
        %v2821 = vunpack.c.h.b16 %v2460
        %v2822 = vunpack.c.l.b16 %v2461
        %v2823 = vunpack.c.h.b16 %v2461
        %v2824 = vunpack.c.l.b16 %v2462
        %v2825 = vunpack.c.h.b16 %v2462
        %v2826 = vunpack.c.l.b16 %v2463
        %v2827 = vunpack.c.h.b16 %v2463
        %v2828 = vunpack.c.l.b16 %v2464
        %v2829 = vunpack.c.h.b16 %v2464
        %v2830 = vunpack.c.l.b16 %v2465
        %v2831 = vunpack.c.h.b16 %v2465
        %v2832 = vunpack.c.l.b16 %v2466
        %v2833 = vunpack.c.h.b16 %v2466
        %v2834 = vunpack.c.l.b16 %v2467
        %v2835 = vunpack.c.h.b16 %v2467
        %v2836 = vunpack.c.l.b16 %v2468
        %v2837 = vunpack.c.h.b16 %v2468
        %v2838 = vunpack.c.l.b16 %v2469
        %v2839 = vunpack.c.h.b16 %v2469
        %v2840 = vunpack.c.l.b16 %v2470
        %v2841 = vunpack.c.h.b16 %v2470
        %v2842 = vunpack.c.l.b16 %v2471
        %v2843 = vunpack.c.h.b16 %v2471
        %v2844 = vunpack.c.l.b16 %v2472
        %v2845 = vunpack.c.h.b16 %v2472
        %v2846 = vunpack.c.l.b16 %v2473
        %v2847 = vunpack.c.h.b16 %v2473
        %v2848 = vunpack.c.l.b16 %v2474
        %v2849 = vunpack.c.h.b16 %v2474
        %v2850 = vunpack.c.l.b16 %v2475
        %v2851 = vunpack.c.h.b16 %v2475
        %v2852 = vunpack.c.l.b16 %v2476
        %v2853 = vunpack.c.h.b16 %v2476
        %v2854 = vunpack.c.l.b16 %v2477
        %v2855 = vunpack.c.h.b16 %v2477
        %v2856 = vunpack.c.l.b16 %v2478
        %v2857 = vunpack.c.h.b16 %v2478
        %v2858 = vunpack.c.l.b16 %v2479
        %v2859 = vunpack.c.h.b16 %v2479
        %v2860 = vunpack.c.l.b16 %v2480
        %v2861 = vunpack.c.h.b16 %v2480
        %v2862 = vunpack.c.l.b16 %v2481
        %v2863 = vunpack.c.h.b16 %v2481
        %v2864 = vunpack.c.l.b16 %v2482
        %v2865 = vunpack.c.h.b16 %v2482
        %v2866 = vunpack.c.l.b16 %v2483
        %v2867 = vunpack.c.h.b16 %v2483
        %v2868 = vunpack.c.l.b16 %v2484
        %v2869 = vunpack.c.h.b16 %v2484
        %v2870 = vunpack.c.l.b16 %v2485
        %v2871 = vunpack.c.h.b16 %v2485
        %v2872 = vunpack.c.l.b16 %v2486
        %v2873 = vunpack.c.h.b16 %v2486
        %v2874 = vunpack.c.l.b16 %v2487
        %v2875 = vunpack.c.h.b16 %v2487
        %v2876 = vunpack.c.l.b16 %v2488
        %v2877 = vunpack.c.h.b16 %v2488
        %v2878 = vunpack.c.l.b16 %v2489
        %v2879 = vunpack.c.h.b16 %v2489
        %v2880 = vunpack.c.l.b16 %v2490
        %v2881 = vunpack.c.h.b16 %v2490
        %v2882 = vunpack.c.l.b16 %v2491
        %v2883 = vunpack.c.h.b16 %v2491
        %v2884 = vunpack.c.l.b16 %v2492
        %v2885 = vunpack.c.h.b16 %v2492
        %v2886 = vunpack.c.l.b16 %v2493
        %v2887 = vunpack.c.h.b16 %v2493
        %v2888 = vpack.c.b16 %v2702, %v2696
        %v2889 = vpack.c.b16 %v2703, %v2697
        %v2890 = vpack.c.b16 %v2704, %v2698
        %v2891 = vpack.c.b16 %v2705, %v2699
        %v2892 = vpack.c.b16 %v2706, %v2700
        %v2893 = vpack.c.b16 %v2707, %v2701
        %v2894 = vpack.c.b16 %v2714, %v2708
        %v2895 = vpack.c.b16 %v2715, %v2709
        %v2896 = vpack.c.b16 %v2716, %v2710
        %v2897 = vpack.c.b16 %v2717, %v2711
        %v2898 = vpack.c.b16 %v2718, %v2712
        %v2899 = vpack.c.b16 %v2719, %v2713
        %v2900 = vpack.c.b16 %v2726, %v2720
        %v2901 = vpack.c.b16 %v2727, %v2721
        %v2902 = vpack.c.b16 %v2728, %v2722
        %v2903 = vpack.c.b16 %v2729, %v2723
        %v2904 = vpack.c.b16 %v2730, %v2724
        %v2905 = vpack.c.b16 %v2731, %v2725
        %v2906 = vpack.c.b16 %v2738, %v2732
        %v2907 = vpack.c.b16 %v2739, %v2733
        %v2908 = vpack.c.b16 %v2740, %v2734
        %v2909 = vpack.c.b16 %v2741, %v2735
        %v2910 = vpack.c.b16 %v2742, %v2736
        %v2911 = vpack.c.b16 %v2743, %v2737
        %v2912 = vpack.c.b16 %v2750, %v2744
        %v2913 = vpack.c.b16 %v2751, %v2745
        %v2914 = vpack.c.b16 %v2752, %v2746
        %v2915 = vpack.c.b16 %v2753, %v2747
        %v2916 = vpack.c.b16 %v2754, %v2748
        %v2917 = vpack.c.b16 %v2755, %v2749
        %v2918 = vpack.c.b16 %v2762, %v2756
        %v2919 = vpack.c.b16 %v2763, %v2757
        %v2920 = vpack.c.b16 %v2764, %v2758
        %v2921 = vpack.c.b16 %v2765, %v2759
        %v2922 = vpack.c.b16 %v2766, %v2760
        %v2923 = vpack.c.b16 %v2767, %v2761
        %v2924 = vpack.c.b16 %v2774, %v2768
        %v2925 = vpack.c.b16 %v2775, %v2769
        %v2926 = vpack.c.b16 %v2776, %v2770
        %v2927 = vpack.c.b16 %v2777, %v2771
        %v2928 = vpack.c.b16 %v2778, %v2772
        %v2929 = vpack.c.b16 %v2779, %v2773
        %v2930 = vpack.c.b16 %v2786, %v2780
        %v2931 = vpack.c.b16 %v2787, %v2781
        %v2932 = vpack.c.b16 %v2788, %v2782
        %v2933 = vpack.c.b16 %v2789, %v2783
        %v2934 = vpack.c.b16 %v2790, %v2784
        %v2935 = vpack.c.b16 %v2791, %v2785
        %v2936 = vpack.c.b16 %v2798, %v2792
        %v2937 = vpack.c.b16 %v2799, %v2793
        %v2938 = vpack.c.b16 %v2800, %v2794
        %v2939 = vpack.c.b16 %v2801, %v2795
        %v2940 = vpack.c.b16 %v2802, %v2796
        %v2941 = vpack.c.b16 %v2803, %v2797
        %v2942 = vpack.c.b16 %v2810, %v2804
        %v2943 = vpack.c.b16 %v2811, %v2805
        %v2944 = vpack.c.b16 %v2812, %v2806
        %v2945 = vpack.c.b16 %v2813, %v2807
        %v2946 = vpack.c.b16 %v2814, %v2808
        %v2947 = vpack.c.b16 %v2815, %v2809
        %v2948 = vpack.c.b16 %v2822, %v2816
        %v2949 = vpack.c.b16 %v2823, %v2817
        %v2950 = vpack.c.b16 %v2824, %v2818
        %v2951 = vpack.c.b16 %v2825, %v2819
        %v2952 = vpack.c.b16 %v2826, %v2820
        %v2953 = vpack.c.b16 %v2827, %v2821
        %v2954 = vpack.c.b16 %v2834, %v2828
        %v2955 = vpack.c.b16 %v2835, %v2829
        %v2956 = vpack.c.b16 %v2836, %v2830
        %v2957 = vpack.c.b16 %v2837, %v2831
        %v2958 = vpack.c.b16 %v2838, %v2832
        %v2959 = vpack.c.b16 %v2839, %v2833
        %v2960 = vpack.c.b16 %v2846, %v2840
        %v2961 = vpack.c.b16 %v2847, %v2841
        %v2962 = vpack.c.b16 %v2848, %v2842
        %v2963 = vpack.c.b16 %v2849, %v2843
        %v2964 = vpack.c.b16 %v2850, %v2844
        %v2965 = vpack.c.b16 %v2851, %v2845
        %v2966 = vpack.c.b16 %v2858, %v2852
        %v2967 = vpack.c.b16 %v2859, %v2853
        %v2968 = vpack.c.b16 %v2860, %v2854
        %v2969 = vpack.c.b16 %v2861, %v2855
        %v2970 = vpack.c.b16 %v2862, %v2856
        %v2971 = vpack.c.b16 %v2863, %v2857
        %v2972 = vpack.c.b16 %v2870, %v2864
        %v2973 = vpack.c.b16 %v2871, %v2865
        %v2974 = vpack.c.b16 %v2872, %v2866
        %v2975 = vpack.c.b16 %v2873, %v2867
        %v2976 = vpack.c.b16 %v2874, %v2868
        %v2977 = vpack.c.b16 %v2875, %v2869
        %v2978 = vpack.c.b16 %v2882, %v2876
        %v2979 = vpack.c.b16 %v2883, %v2877
        %v2980 = vpack.c.b16 %v2884, %v2878
        %v2981 = vpack.c.b16 %v2885, %v2879
        %v2982 = vpack.c.b16 %v2886, %v2880
        %v2983 = vpack.c.b16 %v2887, %v2881
        %3080 = vmatpush.bf16.msra.mxu0 %v2930
        %3081 = vmatpush.bf16.msra.mxu0 %v2924
        %3082 = vmatpush.bf16.msra.mxu0 %v2918
        %3083 = vmatpush.bf16.msra.mxu0 %v2912
        %3084 = vmatpush.bf16.msra.mxu0 %v2906
        %3085 = vmatpush.bf16.msra.mxu0 %v2900
        %3086 = vmatpush.bf16.msra.mxu0 %v2894
        %3087 = vmatpush.bf16.msra.mxu0 %v2888
        %3088 = vmatmul.bf16.gmra.mxu0 %v2592
        %v3089 = vpop.f32.mrf.mxu0
        %v3090 = vadd.f32 0.0, %v3089
        %v3091 = vpop.f32.mrf.mxu0
        %v3092 = vadd.f32 0.0, %v3091
        %3093 = vmatmul.bf16.gmra.mxu0 %v2593
        %v3094 = vpop.f32.mrf.mxu0
        %v3095 = vadd.f32 0.0, %v3094
        %v3096 = vpop.f32.mrf.mxu0
        %v3097 = vadd.f32 0.0, %v3096
        %3098 = vmatmul.bf16.gmra.mxu0 %v2594
        %v3099 = vpop.f32.mrf.mxu0
        %v3100 = vadd.f32 0.0, %v3099
        %v3101 = vpop.f32.mrf.mxu0
        %v3102 = vadd.f32 0.0, %v3101
        %3103 = vmatmul.bf16.gmra.mxu0 %v2595
        %v3104 = vpop.f32.mrf.mxu0
        %v3105 = vadd.f32 0.0, %v3104
        %v3106 = vpop.f32.mrf.mxu0
        %v3107 = vadd.f32 0.0, %v3106
        %3108 = vdwg.mxu0
        %3109 = vmatpush.bf16.msra.mxu0 %v2978
        %3110 = vmatpush.bf16.msra.mxu0 %v2972
        %3111 = vmatpush.bf16.msra.mxu0 %v2966
        %3112 = vmatpush.bf16.msra.mxu0 %v2960
        %3113 = vmatpush.bf16.msra.mxu0 %v2954
        %3114 = vmatpush.bf16.msra.mxu0 %v2948
        %3115 = vmatpush.bf16.msra.mxu0 %v2942
        %3116 = vmatpush.bf16.msra.mxu0 %v2936
        %3117 = vmatmul.bf16.gmra.mxu0 %v771
        %v3118 = vpop.f32.mrf.mxu0
        %v3119 = vadd.f32 %v3090, %v3118
        %v3120 = vpop.f32.mrf.mxu0
        %v3121 = vadd.f32 %v3092, %v3120
        %3122 = vmatmul.bf16.gmra.mxu0 %v772
        %v3123 = vpop.f32.mrf.mxu0
        %v3124 = vadd.f32 %v3095, %v3123
        %v3125 = vpop.f32.mrf.mxu0
        %v3126 = vadd.f32 %v3097, %v3125
        %3127 = vmatmul.bf16.gmra.mxu0 %v773
        %v3128 = vpop.f32.mrf.mxu0
        %v3129 = vadd.f32 %v3100, %v3128
        %v3130 = vpop.f32.mrf.mxu0
        %v3131 = vadd.f32 %v3102, %v3130
        %3132 = vmatmul.bf16.gmra.mxu0 %v774
        %v3133 = vpop.f32.mrf.mxu0
        %v3134 = vadd.f32 %v3105, %v3133
        %v3135 = vpop.f32.mrf.mxu0
        %v3136 = vadd.f32 %v3107, %v3135
        %3137 = vdwg.mxu0
        %3138 = vmatpush.bf16.msra.mxu0 %v2931
        %3139 = vmatpush.bf16.msra.mxu0 %v2925
        %3140 = vmatpush.bf16.msra.mxu0 %v2919
        %3141 = vmatpush.bf16.msra.mxu0 %v2913
        %3142 = vmatpush.bf16.msra.mxu0 %v2907
        %3143 = vmatpush.bf16.msra.mxu0 %v2901
        %3144 = vmatpush.bf16.msra.mxu0 %v2895
        %3145 = vmatpush.bf16.msra.mxu0 %v2889
        %3146 = vmatmul.bf16.gmra.mxu0 %v2592
        %v3147 = vpop.f32.mrf.mxu0
        %v3148 = vadd.f32 0.0, %v3147
        %v3149 = vpop.f32.mrf.mxu0
        %v3150 = vadd.f32 0.0, %v3149
        %3151 = vmatmul.bf16.gmra.mxu0 %v2593
        %v3152 = vpop.f32.mrf.mxu0
        %v3153 = vadd.f32 0.0, %v3152
        %v3154 = vpop.f32.mrf.mxu0
        %v3155 = vadd.f32 0.0, %v3154
        %3156 = vmatmul.bf16.gmra.mxu0 %v2594
        %v3157 = vpop.f32.mrf.mxu0
        %v3158 = vadd.f32 0.0, %v3157
        %v3159 = vpop.f32.mrf.mxu0
        %v3160 = vadd.f32 0.0, %v3159
        %3161 = vmatmul.bf16.gmra.mxu0 %v2595
        %v3162 = vpop.f32.mrf.mxu0
        %v3163 = vadd.f32 0.0, %v3162
        %v3164 = vpop.f32.mrf.mxu0
        %v3165 = vadd.f32 0.0, %v3164
        %3166 = vdwg.mxu0
        %3167 = vmatpush.bf16.msra.mxu0 %v2979
        %3168 = vmatpush.bf16.msra.mxu0 %v2973
        %3169 = vmatpush.bf16.msra.mxu0 %v2967
        %3170 = vmatpush.bf16.msra.mxu0 %v2961
        %3171 = vmatpush.bf16.msra.mxu0 %v2955
        %3172 = vmatpush.bf16.msra.mxu0 %v2949
        %3173 = vmatpush.bf16.msra.mxu0 %v2943
        %3174 = vmatpush.bf16.msra.mxu0 %v2937
        %3175 = vmatmul.bf16.gmra.mxu0 %v771
        %v3176 = vpop.f32.mrf.mxu0
        %v3177 = vadd.f32 %v3148, %v3176
        %v3178 = vpop.f32.mrf.mxu0
        %v3179 = vadd.f32 %v3150, %v3178
        %3180 = vmatmul.bf16.gmra.mxu0 %v772
        %v3181 = vpop.f32.mrf.mxu0
        %v3182 = vadd.f32 %v3153, %v3181
        %v3183 = vpop.f32.mrf.mxu0
        %v3184 = vadd.f32 %v3155, %v3183
        %3185 = vmatmul.bf16.gmra.mxu0 %v773
        %v3186 = vpop.f32.mrf.mxu0
        %v3187 = vadd.f32 %v3158, %v3186
        %v3188 = vpop.f32.mrf.mxu0
        %v3189 = vadd.f32 %v3160, %v3188
        %3190 = vmatmul.bf16.gmra.mxu0 %v774
        %v3191 = vpop.f32.mrf.mxu0
        %v3192 = vadd.f32 %v3163, %v3191
        %v3193 = vpop.f32.mrf.mxu0
        %v3194 = vadd.f32 %v3165, %v3193
        %3195 = vdwg.mxu0
        %3196 = vmatpush.bf16.msra.mxu0 %v2932
        %3197 = vmatpush.bf16.msra.mxu0 %v2926
        %3198 = vmatpush.bf16.msra.mxu0 %v2920
        %3199 = vmatpush.bf16.msra.mxu0 %v2914
        %3200 = vmatpush.bf16.msra.mxu0 %v2908
        %3201 = vmatpush.bf16.msra.mxu0 %v2902
        %3202 = vmatpush.bf16.msra.mxu0 %v2896
        %3203 = vmatpush.bf16.msra.mxu0 %v2890
        %3204 = vmatmul.bf16.gmra.mxu0 %v2592
        %v3205 = vpop.f32.mrf.mxu0
        %v3206 = vadd.f32 0.0, %v3205
        %v3207 = vpop.f32.mrf.mxu0
        %v3208 = vadd.f32 0.0, %v3207
        %3209 = vmatmul.bf16.gmra.mxu0 %v2593
        %v3210 = vpop.f32.mrf.mxu0
        %v3211 = vadd.f32 0.0, %v3210
        %v3212 = vpop.f32.mrf.mxu0
        %v3213 = vadd.f32 0.0, %v3212
        %3214 = vmatmul.bf16.gmra.mxu0 %v2594
        %v3215 = vpop.f32.mrf.mxu0
        %v3216 = vadd.f32 0.0, %v3215
        %v3217 = vpop.f32.mrf.mxu0
        %v3218 = vadd.f32 0.0, %v3217
        %3219 = vmatmul.bf16.gmra.mxu0 %v2595
        %v3220 = vpop.f32.mrf.mxu0
        %v3221 = vadd.f32 0.0, %v3220
        %v3222 = vpop.f32.mrf.mxu0
        %v3223 = vadd.f32 0.0, %v3222
        %3224 = vdwg.mxu0
        %3225 = vmatpush.bf16.msra.mxu0 %v2980
        %3226 = vmatpush.bf16.msra.mxu0 %v2974
        %3227 = vmatpush.bf16.msra.mxu0 %v2968
        %3228 = vmatpush.bf16.msra.mxu0 %v2962
        %3229 = vmatpush.bf16.msra.mxu0 %v2956
        %3230 = vmatpush.bf16.msra.mxu0 %v2950
        %3231 = vmatpush.bf16.msra.mxu0 %v2944
        %3232 = vmatpush.bf16.msra.mxu0 %v2938
        %3233 = vmatmul.bf16.gmra.mxu0 %v771
        %v3234 = vpop.f32.mrf.mxu0
        %v3235 = vadd.f32 %v3206, %v3234
        %v3236 = vpop.f32.mrf.mxu0
        %v3237 = vadd.f32 %v3208, %v3236
        %3238 = vmatmul.bf16.gmra.mxu0 %v772
        %v3239 = vpop.f32.mrf.mxu0
        %v3240 = vadd.f32 %v3211, %v3239
        %v3241 = vpop.f32.mrf.mxu0
        %v3242 = vadd.f32 %v3213, %v3241
        %3243 = vmatmul.bf16.gmra.mxu0 %v773
        %v3244 = vpop.f32.mrf.mxu0
        %v3245 = vadd.f32 %v3216, %v3244
        %v3246 = vpop.f32.mrf.mxu0
        %v3247 = vadd.f32 %v3218, %v3246
        %3248 = vmatmul.bf16.gmra.mxu0 %v774
        %v3249 = vpop.f32.mrf.mxu0
        %v3250 = vadd.f32 %v3221, %v3249
        %v3251 = vpop.f32.mrf.mxu0
        %v3252 = vadd.f32 %v3223, %v3251
        %3253 = vdwg.mxu0
        %3254 = vmatpush.bf16.msra.mxu0 %v2933
        %3255 = vmatpush.bf16.msra.mxu0 %v2927
        %3256 = vmatpush.bf16.msra.mxu0 %v2921
        %3257 = vmatpush.bf16.msra.mxu0 %v2915
        %3258 = vmatpush.bf16.msra.mxu0 %v2909
        %3259 = vmatpush.bf16.msra.mxu0 %v2903
        %3260 = vmatpush.bf16.msra.mxu0 %v2897
        %3261 = vmatpush.bf16.msra.mxu0 %v2891
        %3262 = vmatmul.bf16.gmra.mxu0 %v2592
        %v3263 = vpop.f32.mrf.mxu0
        %v3264 = vadd.f32 0.0, %v3263
        %v3265 = vpop.f32.mrf.mxu0
        %v3266 = vadd.f32 0.0, %v3265
        %3267 = vmatmul.bf16.gmra.mxu0 %v2593
        %v3268 = vpop.f32.mrf.mxu0
        %v3269 = vadd.f32 0.0, %v3268
        %v3270 = vpop.f32.mrf.mxu0
        %v3271 = vadd.f32 0.0, %v3270
        %3272 = vmatmul.bf16.gmra.mxu0 %v2594
        %v3273 = vpop.f32.mrf.mxu0
        %v3274 = vadd.f32 0.0, %v3273
        %v3275 = vpop.f32.mrf.mxu0
        %v3276 = vadd.f32 0.0, %v3275
        %3277 = vmatmul.bf16.gmra.mxu0 %v2595
        %v3278 = vpop.f32.mrf.mxu0
        %v3279 = vadd.f32 0.0, %v3278
        %v3280 = vpop.f32.mrf.mxu0
        %v3281 = vadd.f32 0.0, %v3280
        %3282 = vdwg.mxu0
        %3283 = vmatpush.bf16.msra.mxu0 %v2981
        %3284 = vmatpush.bf16.msra.mxu0 %v2975
        %3285 = vmatpush.bf16.msra.mxu0 %v2969
        %3286 = vmatpush.bf16.msra.mxu0 %v2963
        %3287 = vmatpush.bf16.msra.mxu0 %v2957
        %3288 = vmatpush.bf16.msra.mxu0 %v2951
        %3289 = vmatpush.bf16.msra.mxu0 %v2945
        %3290 = vmatpush.bf16.msra.mxu0 %v2939
        %3291 = vmatmul.bf16.gmra.mxu0 %v771
        %v3292 = vpop.f32.mrf.mxu0
        %v3293 = vadd.f32 %v3264, %v3292
        %v3294 = vpop.f32.mrf.mxu0
        %v3295 = vadd.f32 %v3266, %v3294
        %3296 = vmatmul.bf16.gmra.mxu0 %v772
        %v3297 = vpop.f32.mrf.mxu0
        %v3298 = vadd.f32 %v3269, %v3297
        %v3299 = vpop.f32.mrf.mxu0
        %v3300 = vadd.f32 %v3271, %v3299
        %3301 = vmatmul.bf16.gmra.mxu0 %v773
        %v3302 = vpop.f32.mrf.mxu0
        %v3303 = vadd.f32 %v3274, %v3302
        %v3304 = vpop.f32.mrf.mxu0
        %v3305 = vadd.f32 %v3276, %v3304
        %3306 = vmatmul.bf16.gmra.mxu0 %v774
        %v3307 = vpop.f32.mrf.mxu0
        %v3308 = vadd.f32 %v3279, %v3307
        %v3309 = vpop.f32.mrf.mxu0
        %v3310 = vadd.f32 %v3281, %v3309
        %3311 = vdwg.mxu0
        %3312 = vmatpush.bf16.msra.mxu0 %v2934
        %3313 = vmatpush.bf16.msra.mxu0 %v2928
        %3314 = vmatpush.bf16.msra.mxu0 %v2922
        %3315 = vmatpush.bf16.msra.mxu0 %v2916
        %3316 = vmatpush.bf16.msra.mxu0 %v2910
        %3317 = vmatpush.bf16.msra.mxu0 %v2904
        %3318 = vmatpush.bf16.msra.mxu0 %v2898
        %3319 = vmatpush.bf16.msra.mxu0 %v2892
        %3320 = vmatmul.bf16.gmra.mxu0 %v2592
        %v3321 = vpop.f32.mrf.mxu0
        %v3322 = vadd.f32 0.0, %v3321
        %v3323 = vpop.f32.mrf.mxu0
        %v3324 = vadd.f32 0.0, %v3323
        %3325 = vmatmul.bf16.gmra.mxu0 %v2593
        %v3326 = vpop.f32.mrf.mxu0
        %v3327 = vadd.f32 0.0, %v3326
        %v3328 = vpop.f32.mrf.mxu0
        %v3329 = vadd.f32 0.0, %v3328
        %3330 = vmatmul.bf16.gmra.mxu0 %v2594
        %v3331 = vpop.f32.mrf.mxu0
        %v3332 = vadd.f32 0.0, %v3331
        %v3333 = vpop.f32.mrf.mxu0
        %v3334 = vadd.f32 0.0, %v3333
        %3335 = vmatmul.bf16.gmra.mxu0 %v2595
        %v3336 = vpop.f32.mrf.mxu0
        %v3337 = vadd.f32 0.0, %v3336
        %v3338 = vpop.f32.mrf.mxu0
        %v3339 = vadd.f32 0.0, %v3338
        %3340 = vdwg.mxu0
        %3341 = vmatpush.bf16.msra.mxu0 %v2982
        %3342 = vmatpush.bf16.msra.mxu0 %v2976
        %3343 = vmatpush.bf16.msra.mxu0 %v2970
        %3344 = vmatpush.bf16.msra.mxu0 %v2964
        %3345 = vmatpush.bf16.msra.mxu0 %v2958
        %3346 = vmatpush.bf16.msra.mxu0 %v2952
        %3347 = vmatpush.bf16.msra.mxu0 %v2946
        %3348 = vmatpush.bf16.msra.mxu0 %v2940
        %3349 = vmatmul.bf16.gmra.mxu0 %v771
        %v3350 = vpop.f32.mrf.mxu0
        %v3351 = vadd.f32 %v3322, %v3350
        %v3352 = vpop.f32.mrf.mxu0
        %v3353 = vadd.f32 %v3324, %v3352
        %3354 = vmatmul.bf16.gmra.mxu0 %v772
        %v3355 = vpop.f32.mrf.mxu0
        %v3356 = vadd.f32 %v3327, %v3355
        %v3357 = vpop.f32.mrf.mxu0
        %v3358 = vadd.f32 %v3329, %v3357
        %3359 = vmatmul.bf16.gmra.mxu0 %v773
        %v3360 = vpop.f32.mrf.mxu0
        %v3361 = vadd.f32 %v3332, %v3360
        %v3362 = vpop.f32.mrf.mxu0
        %v3363 = vadd.f32 %v3334, %v3362
        %3364 = vmatmul.bf16.gmra.mxu0 %v774
        %v3365 = vpop.f32.mrf.mxu0
        %v3366 = vadd.f32 %v3337, %v3365
        %v3367 = vpop.f32.mrf.mxu0
        %v3368 = vadd.f32 %v3339, %v3367
        %3369 = vdwg.mxu0
        %3370 = vmatpush.bf16.msra.mxu0 %v2935
        %3371 = vmatpush.bf16.msra.mxu0 %v2929
        %3372 = vmatpush.bf16.msra.mxu0 %v2923
        %3373 = vmatpush.bf16.msra.mxu0 %v2917
        %3374 = vmatpush.bf16.msra.mxu0 %v2911
        %3375 = vmatpush.bf16.msra.mxu0 %v2905
        %3376 = vmatpush.bf16.msra.mxu0 %v2899
        %3377 = vmatpush.bf16.msra.mxu0 %v2893
        %3378 = vmatmul.bf16.gmra.mxu0 %v2592
        %v3379 = vpop.f32.mrf.mxu0
        %v3380 = vadd.f32 0.0, %v3379
        %v3381 = vpop.f32.mrf.mxu0
        %v3382 = vadd.f32 0.0, %v3381
        %3383 = vmatmul.bf16.gmra.mxu0 %v2593
        %v3384 = vpop.f32.mrf.mxu0
        %v3385 = vadd.f32 0.0, %v3384
        %v3386 = vpop.f32.mrf.mxu0
        %v3387 = vadd.f32 0.0, %v3386
        %3388 = vmatmul.bf16.gmra.mxu0 %v2594
        %v3389 = vpop.f32.mrf.mxu0
        %v3390 = vadd.f32 0.0, %v3389
        %v3391 = vpop.f32.mrf.mxu0
        %v3392 = vadd.f32 0.0, %v3391
        %3393 = vmatmul.bf16.gmra.mxu0 %v2595
        %v3394 = vpop.f32.mrf.mxu0
        %v3395 = vadd.f32 0.0, %v3394
        %v3396 = vpop.f32.mrf.mxu0
        %v3397 = vadd.f32 0.0, %v3396
        %3398 = vdwg.mxu0
        %3399 = vmatpush.bf16.msra.mxu0 %v2983
        %3400 = vmatpush.bf16.msra.mxu0 %v2977
        %3401 = vmatpush.bf16.msra.mxu0 %v2971
        %3402 = vmatpush.bf16.msra.mxu0 %v2965
        %3403 = vmatpush.bf16.msra.mxu0 %v2959
        %3404 = vmatpush.bf16.msra.mxu0 %v2953
        %3405 = vmatpush.bf16.msra.mxu0 %v2947
        %3406 = vmatpush.bf16.msra.mxu0 %v2941
        %3407 = vmatmul.bf16.gmra.mxu0 %v771
        %v3408 = vpop.f32.mrf.mxu0
        %v3409 = vadd.f32 %v3380, %v3408
        %v3410 = vpop.f32.mrf.mxu0
        %v3411 = vadd.f32 %v3382, %v3410
        %3412 = vmatmul.bf16.gmra.mxu0 %v772
        %v3413 = vpop.f32.mrf.mxu0
        %v3414 = vadd.f32 %v3385, %v3413
        %v3415 = vpop.f32.mrf.mxu0
        %v3416 = vadd.f32 %v3387, %v3415
        %3417 = vmatmul.bf16.gmra.mxu0 %v773
        %v3418 = vpop.f32.mrf.mxu0
        %v3419 = vadd.f32 %v3390, %v3418
        %v3420 = vpop.f32.mrf.mxu0
        %v3421 = vadd.f32 %v3392, %v3420
        %3422 = vmatmul.bf16.gmra.mxu0 %v774
        %v3423 = vpop.f32.mrf.mxu0
        %v3424 = vadd.f32 %v3395, %v3423
        %v3425 = vpop.f32.mrf.mxu0
        %v3426 = vadd.f32 %v3397, %v3425
        %3427 = vdwg.mxu0
        %v3428 = vsel %vm2560, 1, 0
        %v3429 = vsel %vm2561, 1, 0
        %v3430 = vsel %vm2562, 1, 0
        %v3431 = vsel %vm2563, 1, 0
        %v3432 = vsel %vm2564, 1, 0
        %v3433 = vsel %vm2565, 1, 0
        %v3434 = vsel %vm2566, 1, 0
        %v3435 = vsel %vm2567, 1, 0
        %vm3436 = vcmp.eq.s32.totalorder %v3428, 1
        %vm3437 = vcmp.eq.s32.totalorder %v3429, 1
        %vm3438 = vcmp.eq.s32.totalorder %v3430, 1
        %vm3439 = vcmp.eq.s32.totalorder %v3431, 1
        %vm3440 = vcmp.eq.s32.totalorder %v3432, 1
        %vm3441 = vcmp.eq.s32.totalorder %v3433, 1
        %vm3442 = vcmp.eq.s32.totalorder %v3434, 1
        %vm3443 = vcmp.eq.s32.totalorder %v3435, 1
        %v3444 = vsel %vm3436, 0.0, %v3136
        %v3445 = vsel %vm3436, 0.0, %v3194
        %v3446 = vsel %vm3437, 0.0, %v3119
        %v3447 = vsel %vm3437, 0.0, %v3177
        %v3448 = vsel %vm3438, 0.0, %v3121
        %v3449 = vsel %vm3438, 0.0, %v3179
        %v3450 = vsel %vm3439, 0.0, %v3124
        %v3451 = vsel %vm3439, 0.0, %v3182
        %v3452 = vsel %vm3440, 0.0, %v3126
        %v3453 = vsel %vm3440, 0.0, %v3184
        %v3454 = vsel %vm3441, 0.0, %v3129
        %v3455 = vsel %vm3441, 0.0, %v3187
        %v3456 = vsel %vm3442, 0.0, %v3131
        %v3457 = vsel %vm3442, 0.0, %v3189
        %v3458 = vsel %vm3443, 0.0, %v3134
        %v3459 = vsel %vm3443, 0.0, %v3192
        %v3460 = vsel %vm2568, 1, 0
        %v3461 = vsel %vm2569, 1, 0
        %v3462 = vsel %vm2570, 1, 0
        %v3463 = vsel %vm2571, 1, 0
        %v3464 = vsel %vm2572, 1, 0
        %v3465 = vsel %vm2573, 1, 0
        %v3466 = vsel %vm2574, 1, 0
        %v3467 = vsel %vm2575, 1, 0
        %vm3468 = vcmp.eq.s32.totalorder %v3460, 1
        %vm3469 = vcmp.eq.s32.totalorder %v3461, 1
        %vm3470 = vcmp.eq.s32.totalorder %v3462, 1
        %vm3471 = vcmp.eq.s32.totalorder %v3463, 1
        %vm3472 = vcmp.eq.s32.totalorder %v3464, 1
        %vm3473 = vcmp.eq.s32.totalorder %v3465, 1
        %vm3474 = vcmp.eq.s32.totalorder %v3466, 1
        %vm3475 = vcmp.eq.s32.totalorder %v3467, 1
        %v3476 = vsel %vm3468, 0.0, %v3353
        %v3477 = vsel %vm3468, 0.0, %v3411
        %v3478 = vsel %vm3469, 0.0, %v3356
        %v3479 = vsel %vm3469, 0.0, %v3414
        %v3480 = vsel %vm3470, 0.0, %v3358
        %v3481 = vsel %vm3470, 0.0, %v3416
        %v3482 = vsel %vm3471, 0.0, %v3361
        %v3483 = vsel %vm3471, 0.0, %v3419
        %v3484 = vsel %vm3472, 0.0, %v3363
        %v3485 = vsel %vm3472, 0.0, %v3421
        %v3486 = vsel %vm3473, 0.0, %v3366
        %v3487 = vsel %vm3473, 0.0, %v3424
        %v3488 = vsel %vm3474, 0.0, %v3368
        %v3489 = vsel %vm3474, 0.0, %v3426
        %v3490 = vsel %vm3475, 0.0, %v3351
        %v3491 = vsel %vm3475, 0.0, %v3409
        %v3492 = vadd.f32 %v3235, %v3444
        %v3493 = vadd.f32 %v3293, %v3445
        %v3494 = vadd.f32 %v3237, %v3446
        %v3495 = vadd.f32 %v3295, %v3447
        %v3496 = vadd.f32 %v3240, %v3448
        %v3497 = vadd.f32 %v3298, %v3449
        %v3498 = vadd.f32 %v3242, %v3450
        %v3499 = vadd.f32 %v3300, %v3451
        %v3500 = vadd.f32 %v3245, %v3452
        %v3501 = vadd.f32 %v3303, %v3453
        %v3502 = vadd.f32 %v3247, %v3454
        %v3503 = vadd.f32 %v3305, %v3455
        %v3504 = vadd.f32 %v3250, %v3456
        %v3505 = vadd.f32 %v3308, %v3457
        %v3506 = vadd.f32 %v3252, %v3458
        %v3507 = vadd.f32 %v3310, %v3459
        %v3508 = vadd.f32 %v3492, %v3476
        %v3509 = vadd.f32 %v3493, %v3477
        %v3510 = vadd.f32 %v3494, %v3478
        %v3511 = vadd.f32 %v3495, %v3479
        %v3512 = vadd.f32 %v3496, %v3480
        %v3513 = vadd.f32 %v3497, %v3481
        %v3514 = vadd.f32 %v3498, %v3482
        %v3515 = vadd.f32 %v3499, %v3483
        %v3516 = vadd.f32 %v3500, %v3484
        %v3517 = vadd.f32 %v3501, %v3485
        %v3518 = vadd.f32 %v3502, %v3486
        %v3519 = vadd.f32 %v3503, %v3487
        %v3520 = vadd.f32 %v3504, %v3488
        %v3521 = vadd.f32 %v3505, %v3489
        %v3522 = vadd.f32 %v3506, %v3490
        %v3523 = vadd.f32 %v3507, %v3491
        %v3525 = vperm.slane %v2494, 0
        %v3526 = vperm.slane %v2494, 1
        %v3529 = vadd.f32 %v3508, %v3525
        %v3530 = vadd.f32 %v3509, %v3526
        %v3531 = vadd.f32 %v3510, %v3525
        %v3532 = vadd.f32 %v3511, %v3526
        %v3533 = vadd.f32 %v3512, %v3525
        %v3534 = vadd.f32 %v3513, %v3526
        %v3535 = vadd.f32 %v3514, %v3525
        %v3536 = vadd.f32 %v3515, %v3526
        %v3537 = vadd.f32 %v3516, %v3525
        %v3538 = vadd.f32 %v3517, %v3526
        %v3539 = vadd.f32 %v3518, %v3525
        %v3540 = vadd.f32 %v3519, %v3526
        %v3541 = vadd.f32 %v3520, %v3525
        %v3542 = vadd.f32 %v3521, %v3526
        %v3543 = vadd.f32 %v3522, %v3525
        %v3544 = vadd.f32 %v3523, %v3526
        %v3545 = vmul.f32 %v3529, 0.5
        %v3546 = vmul.f32 %v3531, 0.5
        %v3547 = vmul.f32 %v3533, 0.5
        %v3548 = vmul.f32 %v3535, 0.5
        %v3549 = vmul.f32 %v3537, 0.5
        %v3550 = vmul.f32 %v3539, 0.5
        %v3551 = vmul.f32 %v3541, 0.5
        %v3552 = vmul.f32 %v3543, 0.5
        %v3553 = vtanh.pop %v3545
        %v3554 = vtanh.pop %v3546
        %v3555 = vtanh.pop %v3547
        %v3556 = vtanh.pop %v3548
        %v3557 = vtanh.pop %v3549
        %v3558 = vtanh.pop %v3550
        %v3559 = vtanh.pop %v3551
        %v3560 = vtanh.pop %v3552
        %v3561 = vadd.f32 %v3553, 1.0
        %v3562 = vadd.f32 %v3554, 1.0
        %v3563 = vadd.f32 %v3555, 1.0
        %v3564 = vadd.f32 %v3556, 1.0
        %v3565 = vadd.f32 %v3557, 1.0
        %v3566 = vadd.f32 %v3558, 1.0
        %v3567 = vadd.f32 %v3559, 1.0
        %v3568 = vadd.f32 %v3560, 1.0
        %v3569 = vmul.f32 %v3561, 0.5
        %v3570 = vmul.f32 %v3562, 0.5
        %v3571 = vmul.f32 %v3563, 0.5
        %v3572 = vmul.f32 %v3564, 0.5
        %v3573 = vmul.f32 %v3565, 0.5
        %v3574 = vmul.f32 %v3566, 0.5
        %v3575 = vmul.f32 %v3567, 0.5
        %v3576 = vmul.f32 %v3568, 0.5
        %v3577 = vmul.f32 %v3530, 0.5
        %v3578 = vmul.f32 %v3532, 0.5
        %v3579 = vmul.f32 %v3534, 0.5
        %v3580 = vmul.f32 %v3536, 0.5
        %v3581 = vmul.f32 %v3538, 0.5
        %v3582 = vmul.f32 %v3540, 0.5
        %v3583 = vmul.f32 %v3542, 0.5
        %v3584 = vmul.f32 %v3544, 0.5
        %v3585 = vtanh.pop %v3577
        %v3586 = vtanh.pop %v3578
        %v3587 = vtanh.pop %v3579
        %v3588 = vtanh.pop %v3580
        %v3589 = vtanh.pop %v3581
        %v3590 = vtanh.pop %v3582
        %v3591 = vtanh.pop %v3583
        %v3592 = vtanh.pop %v3584
        %v3593 = vadd.f32 %v3585, 1.0
        %v3594 = vadd.f32 %v3586, 1.0
        %v3595 = vadd.f32 %v3587, 1.0
        %v3596 = vadd.f32 %v3588, 1.0
        %v3597 = vadd.f32 %v3589, 1.0
        %v3598 = vadd.f32 %v3590, 1.0
        %v3599 = vadd.f32 %v3591, 1.0
        %v3600 = vadd.f32 %v3592, 1.0
        %v3601 = vmul.f32 %v3593, 0.5
        %v3602 = vmul.f32 %v3594, 0.5
        %v3603 = vmul.f32 %v3595, 0.5
        %v3604 = vmul.f32 %v3596, 0.5
        %v3605 = vmul.f32 %v3597, 0.5
        %v3606 = vmul.f32 %v3598, 0.5
        %v3607 = vmul.f32 %v3599, 0.5
        %v3608 = vmul.f32 %v3600, 0.5
        %v3609 = vunpack.c.l.bf16 %v2383
        %v3610 = vunpack.c.l.bf16 %v2384
        %v3611 = vunpack.c.l.bf16 %v2385
        %v3612 = vunpack.c.l.bf16 %v2386
        %v3613 = vunpack.c.l.bf16 %v2387
        %v3614 = vunpack.c.l.bf16 %v2388
        %v3615 = vunpack.c.l.bf16 %v2389
        %v3616 = vunpack.c.l.bf16 %v2390
        %v3617 = vmul.f32 %v3601, %v3609
        %v3618 = vmul.f32 %v3602, %v3610
        %v3619 = vmul.f32 %v3603, %v3611
        %v3620 = vmul.f32 %v3604, %v3612
        %v3621 = vmul.f32 %v3605, %v3613
        %v3622 = vmul.f32 %v3606, %v3614
        %v3623 = vmul.f32 %v3607, %v3615
        %v3624 = vmul.f32 %v3608, %v3616
        %v3625 = vpack.c.bf16 %v3618, %v3617
        %v3626 = vpack.c.bf16 %v3620, %v3619
        %v3627 = vpack.c.bf16 %v3622, %v3621
        %v3628 = vpack.c.bf16 %v3624, %v3623
        %v3661 = vunpack.c.l.b16 %v2495
        %v3662 = vunpack.c.h.b16 %v2495
        %v3663 = vunpack.c.l.b16 %v2496
        %v3664 = vunpack.c.l.b16 %v2497
        %v3665 = vunpack.c.h.b16 %v2497
        %v3666 = vunpack.c.l.b16 %v2498
        %v3667 = vunpack.c.l.b16 %v2499
        %v3668 = vunpack.c.h.b16 %v2499
        %v3669 = vunpack.c.l.b16 %v2500
        %v3670 = vunpack.c.l.b16 %v2501
        %v3671 = vunpack.c.h.b16 %v2501
        %v3672 = vunpack.c.l.b16 %v2502
        %v3673 = vunpack.c.l.b16 %v2503
        %v3674 = vunpack.c.h.b16 %v2503
        %v3675 = vunpack.c.l.b16 %v2504
        %v3676 = vunpack.c.l.b16 %v2505
        %v3677 = vunpack.c.h.b16 %v2505
        %v3678 = vunpack.c.l.b16 %v2506
        %v3679 = vunpack.c.l.b16 %v2507
        %v3680 = vunpack.c.h.b16 %v2507
        %v3681 = vunpack.c.l.b16 %v2508
        %v3682 = vunpack.c.l.b16 %v2509
        %v3683 = vunpack.c.h.b16 %v2509
        %v3684 = vunpack.c.l.b16 %v2510
        %v3685 = vunpack.c.l.b16 %v2511
        %v3686 = vunpack.c.h.b16 %v2511
        %v3687 = vunpack.c.l.b16 %v2512
        %v3688 = vunpack.c.l.b16 %v2513
        %v3689 = vunpack.c.h.b16 %v2513
        %v3690 = vunpack.c.l.b16 %v2514
        %v3691 = vunpack.c.l.b16 %v2515
        %v3692 = vunpack.c.h.b16 %v2515
        %v3693 = vunpack.c.l.b16 %v2516
        %v3694 = vunpack.c.l.b16 %v2517
        %v3695 = vunpack.c.h.b16 %v2517
        %v3696 = vunpack.c.l.b16 %v2518
        %v3697 = vunpack.c.l.b16 %v2519
        %v3698 = vunpack.c.h.b16 %v2519
        %v3699 = vunpack.c.l.b16 %v2520
        %v3700 = vunpack.c.l.b16 %v2521
        %v3701 = vunpack.c.h.b16 %v2521
        %v3702 = vunpack.c.l.b16 %v2522
        %v3703 = vunpack.c.l.b16 %v2523
        %v3704 = vunpack.c.h.b16 %v2523
        %v3705 = vunpack.c.l.b16 %v2524
        %v3706 = vunpack.c.l.b16 %v2525
        %v3707 = vunpack.c.h.b16 %v2525
        %v3708 = vunpack.c.l.b16 %v2526
        %v3709 = vpack.c.b16 %v3664, %v3661
        %v3710 = vpack.c.b16 %v3665, %v3662
        %v3711 = vpack.c.b16 %v3666, %v3663
        %v3712 = vpack.c.b16 %v3670, %v3667
        %v3713 = vpack.c.b16 %v3671, %v3668
        %v3714 = vpack.c.b16 %v3672, %v3669
        %v3715 = vpack.c.b16 %v3676, %v3673
        %v3716 = vpack.c.b16 %v3677, %v3674
        %v3717 = vpack.c.b16 %v3678, %v3675
        %v3718 = vpack.c.b16 %v3682, %v3679
        %v3719 = vpack.c.b16 %v3683, %v3680
        %v3720 = vpack.c.b16 %v3684, %v3681
        %v3721 = vpack.c.b16 %v3688, %v3685
        %v3722 = vpack.c.b16 %v3689, %v3686
        %v3723 = vpack.c.b16 %v3690, %v3687
        %v3724 = vpack.c.b16 %v3694, %v3691
        %v3725 = vpack.c.b16 %v3695, %v3692
        %v3726 = vpack.c.b16 %v3696, %v3693
        %v3727 = vpack.c.b16 %v3700, %v3697
        %v3728 = vpack.c.b16 %v3701, %v3698
        %v3729 = vpack.c.b16 %v3702, %v3699
        %v3730 = vpack.c.b16 %v3706, %v3703
        %v3731 = vpack.c.b16 %v3707, %v3704
        %v3732 = vpack.c.b16 %v3708, %v3705
        %3757 = vmatpush.bf16.msra.mxu0 %v3730
        %3758 = vmatpush.bf16.msra.mxu0 %v3727
        %3759 = vmatpush.bf16.msra.mxu0 %v3724
        %3760 = vmatpush.bf16.msra.mxu0 %v3721
        %3761 = vmatpush.bf16.msra.mxu0 %v3718
        %3762 = vmatpush.bf16.msra.mxu0 %v3715
        %3763 = vmatpush.bf16.msra.mxu0 %v3712
        %3764 = vmatpush.bf16.msra.mxu0 %v3709
        %3765 = vmatmul.bf16.gmra.mxu0 %v3625
        %v3766 = vpop.f32.mrf.mxu0
        %v3767 = vadd.f32 0.0, %v3766
        %v3768 = vpop.f32.mrf.mxu0
        %v3769 = vadd.f32 0.0, %v3768
        %3770 = vmatmul.bf16.gmra.mxu0 %v3626
        %v3771 = vpop.f32.mrf.mxu0
        %v3772 = vadd.f32 0.0, %v3771
        %v3773 = vpop.f32.mrf.mxu0
        %v3774 = vadd.f32 0.0, %v3773
        %3775 = vmatmul.bf16.gmra.mxu0 %v3627
        %v3776 = vpop.f32.mrf.mxu0
        %v3777 = vadd.f32 0.0, %v3776
        %v3778 = vpop.f32.mrf.mxu0
        %v3779 = vadd.f32 0.0, %v3778
        %3780 = vmatmul.bf16.gmra.mxu0 %v3628
        %v3781 = vpop.f32.mrf.mxu0
        %v3782 = vadd.f32 0.0, %v3781
        %v3783 = vpop.f32.mrf.mxu0
        %v3784 = vadd.f32 0.0, %v3783
        %3785 = vdwg.mxu0
        %3786 = vmatpush.bf16.msra.mxu0 %v3731
        %3787 = vmatpush.bf16.msra.mxu0 %v3728
        %3788 = vmatpush.bf16.msra.mxu0 %v3725
        %3789 = vmatpush.bf16.msra.mxu0 %v3722
        %3790 = vmatpush.bf16.msra.mxu0 %v3719
        %3791 = vmatpush.bf16.msra.mxu0 %v3716
        %3792 = vmatpush.bf16.msra.mxu0 %v3713
        %3793 = vmatpush.bf16.msra.mxu0 %v3710
        %3794 = vmatmul.bf16.gmra.mxu0 %v3625
        %v3795 = vpop.f32.mrf.mxu0
        %v3796 = vadd.f32 0.0, %v3795
        %v3797 = vpop.f32.mrf.mxu0
        %v3798 = vadd.f32 0.0, %v3797
        %3799 = vmatmul.bf16.gmra.mxu0 %v3626
        %v3800 = vpop.f32.mrf.mxu0
        %v3801 = vadd.f32 0.0, %v3800
        %v3802 = vpop.f32.mrf.mxu0
        %v3803 = vadd.f32 0.0, %v3802
        %3804 = vmatmul.bf16.gmra.mxu0 %v3627
        %v3805 = vpop.f32.mrf.mxu0
        %v3806 = vadd.f32 0.0, %v3805
        %v3807 = vpop.f32.mrf.mxu0
        %v3808 = vadd.f32 0.0, %v3807
        %3809 = vmatmul.bf16.gmra.mxu0 %v3628
        %v3810 = vpop.f32.mrf.mxu0
        %v3811 = vadd.f32 0.0, %v3810
        %v3812 = vpop.f32.mrf.mxu0
        %v3813 = vadd.f32 0.0, %v3812
        %3814 = vdwg.mxu0
        %3815 = vmatpush.bf16.msra.mxu0 %v3732
        %3816 = vmatpush.bf16.msra.mxu0 %v3729
        %3817 = vmatpush.bf16.msra.mxu0 %v3726
        %3818 = vmatpush.bf16.msra.mxu0 %v3723
        %3819 = vmatpush.bf16.msra.mxu0 %v3720
        %3820 = vmatpush.bf16.msra.mxu0 %v3717
        %3821 = vmatpush.bf16.msra.mxu0 %v3714
        %3822 = vmatpush.bf16.msra.mxu0 %v3711
        %3823 = vmatmul.bf16.gmra.mxu0 %v3625
        %v3824 = vpop.f32.mrf.mxu0
        %v3825 = vadd.f32 0.0, %v3824
        %v3826 = vpop.f32.mrf.mxu0
        %v3827 = vadd.f32 0.0, %v3826
        %3828 = vmatmul.bf16.gmra.mxu0 %v3626
        %v3829 = vpop.f32.mrf.mxu0
        %v3830 = vadd.f32 0.0, %v3829
        %v3831 = vpop.f32.mrf.mxu0
        %v3832 = vadd.f32 0.0, %v3831
        %3833 = vmatmul.bf16.gmra.mxu0 %v3627
        %v3834 = vpop.f32.mrf.mxu0
        %v3835 = vadd.f32 0.0, %v3834
        %v3836 = vpop.f32.mrf.mxu0
        %v3837 = vadd.f32 0.0, %v3836
        %3838 = vmatmul.bf16.gmra.mxu0 %v3628
        %v3839 = vpop.f32.mrf.mxu0
        %v3840 = vadd.f32 0.0, %v3839
        %v3841 = vpop.f32.mrf.mxu0
        %v3842 = vadd.f32 0.0, %v3841
        %3843 = vdwg.mxu0
        %v3876 = vunpack.c.l.b16 %v2527
        %v3877 = vunpack.c.h.b16 %v2527
        %v3878 = vunpack.c.l.b16 %v2528
        %v3879 = vunpack.c.l.b16 %v2529
        %v3880 = vunpack.c.h.b16 %v2529
        %v3881 = vunpack.c.l.b16 %v2530
        %v3882 = vunpack.c.l.b16 %v2531
        %v3883 = vunpack.c.h.b16 %v2531
        %v3884 = vunpack.c.l.b16 %v2532
        %v3885 = vunpack.c.l.b16 %v2533
        %v3886 = vunpack.c.h.b16 %v2533
        %v3887 = vunpack.c.l.b16 %v2534
        %v3888 = vunpack.c.l.b16 %v2535
        %v3889 = vunpack.c.h.b16 %v2535
        %v3890 = vunpack.c.l.b16 %v2536
        %v3891 = vunpack.c.l.b16 %v2537
        %v3892 = vunpack.c.h.b16 %v2537
        %v3893 = vunpack.c.l.b16 %v2538
        %v3894 = vunpack.c.l.b16 %v2539
        %v3895 = vunpack.c.h.b16 %v2539
        %v3896 = vunpack.c.l.b16 %v2540
        %v3897 = vunpack.c.l.b16 %v2541
        %v3898 = vunpack.c.h.b16 %v2541
        %v3899 = vunpack.c.l.b16 %v2542
        %v3900 = vunpack.c.l.b16 %v2543
        %v3901 = vunpack.c.h.b16 %v2543
        %v3902 = vunpack.c.l.b16 %v2544
        %v3903 = vunpack.c.l.b16 %v2545
        %v3904 = vunpack.c.h.b16 %v2545
        %v3905 = vunpack.c.l.b16 %v2546
        %v3906 = vunpack.c.l.b16 %v2547
        %v3907 = vunpack.c.h.b16 %v2547
        %v3908 = vunpack.c.l.b16 %v2548
        %v3909 = vunpack.c.l.b16 %v2549
        %v3910 = vunpack.c.h.b16 %v2549
        %v3911 = vunpack.c.l.b16 %v2550
        %v3912 = vunpack.c.l.b16 %v2551
        %v3913 = vunpack.c.h.b16 %v2551
        %v3914 = vunpack.c.l.b16 %v2552
        %v3915 = vunpack.c.l.b16 %v2553
        %v3916 = vunpack.c.h.b16 %v2553
        %v3917 = vunpack.c.l.b16 %v2554
        %v3918 = vunpack.c.l.b16 %v2555
        %v3919 = vunpack.c.h.b16 %v2555
        %v3920 = vunpack.c.l.b16 %v2556
        %v3921 = vunpack.c.l.b16 %v2557
        %v3922 = vunpack.c.h.b16 %v2557
        %v3923 = vunpack.c.l.b16 %v2558
        %v3924 = vpack.c.b16 %v3879, %v3876
        %v3925 = vpack.c.b16 %v3880, %v3877
        %v3926 = vpack.c.b16 %v3881, %v3878
        %v3927 = vpack.c.b16 %v3885, %v3882
        %v3928 = vpack.c.b16 %v3886, %v3883
        %v3929 = vpack.c.b16 %v3887, %v3884
        %v3930 = vpack.c.b16 %v3891, %v3888
        %v3931 = vpack.c.b16 %v3892, %v3889
        %v3932 = vpack.c.b16 %v3893, %v3890
        %v3933 = vpack.c.b16 %v3897, %v3894
        %v3934 = vpack.c.b16 %v3898, %v3895
        %v3935 = vpack.c.b16 %v3899, %v3896
        %v3936 = vpack.c.b16 %v3903, %v3900
        %v3937 = vpack.c.b16 %v3904, %v3901
        %v3938 = vpack.c.b16 %v3905, %v3902
        %v3939 = vpack.c.b16 %v3909, %v3906
        %v3940 = vpack.c.b16 %v3910, %v3907
        %v3941 = vpack.c.b16 %v3911, %v3908
        %v3942 = vpack.c.b16 %v3915, %v3912
        %v3943 = vpack.c.b16 %v3916, %v3913
        %v3944 = vpack.c.b16 %v3917, %v3914
        %v3945 = vpack.c.b16 %v3921, %v3918
        %v3946 = vpack.c.b16 %v3922, %v3919
        %v3947 = vpack.c.b16 %v3923, %v3920
        %3972 = vmatpush.bf16.msra.mxu0 %v3945
        %3973 = vmatpush.bf16.msra.mxu0 %v3942
        %3974 = vmatpush.bf16.msra.mxu0 %v3939
        %3975 = vmatpush.bf16.msra.mxu0 %v3936
        %3976 = vmatpush.bf16.msra.mxu0 %v3933
        %3977 = vmatpush.bf16.msra.mxu0 %v3930
        %3978 = vmatpush.bf16.msra.mxu0 %v3927
        %3979 = vmatpush.bf16.msra.mxu0 %v3924
        %3980 = vmatmul.bf16.gmra.mxu0 %v771
        %v3981 = vpop.f32.mrf.mxu0
        %v3982 = vadd.f32 %v3767, %v3981
        %v3983 = vpop.f32.mrf.mxu0
        %v3984 = vadd.f32 %v3769, %v3983
        %3985 = vmatmul.bf16.gmra.mxu0 %v772
        %v3986 = vpop.f32.mrf.mxu0
        %v3987 = vadd.f32 %v3772, %v3986
        %v3988 = vpop.f32.mrf.mxu0
        %v3989 = vadd.f32 %v3774, %v3988
        %3990 = vmatmul.bf16.gmra.mxu0 %v773
        %v3991 = vpop.f32.mrf.mxu0
        %v3992 = vadd.f32 %v3777, %v3991
        %v3993 = vpop.f32.mrf.mxu0
        %v3994 = vadd.f32 %v3779, %v3993
        %3995 = vmatmul.bf16.gmra.mxu0 %v774
        %v3996 = vpop.f32.mrf.mxu0
        %v3997 = vadd.f32 %v3782, %v3996
        %v3998 = vpop.f32.mrf.mxu0
        %v3999 = vadd.f32 %v3784, %v3998
        %4000 = vdwg.mxu0
        %4001 = vmatpush.bf16.msra.mxu0 %v3946
        %4002 = vmatpush.bf16.msra.mxu0 %v3943
        %4003 = vmatpush.bf16.msra.mxu0 %v3940
        %4004 = vmatpush.bf16.msra.mxu0 %v3937
        %4005 = vmatpush.bf16.msra.mxu0 %v3934
        %4006 = vmatpush.bf16.msra.mxu0 %v3931
        %4007 = vmatpush.bf16.msra.mxu0 %v3928
        %4008 = vmatpush.bf16.msra.mxu0 %v3925
        %4009 = vmatmul.bf16.gmra.mxu0 %v771
        %v4010 = vpop.f32.mrf.mxu0
        %v4011 = vadd.f32 %v3796, %v4010
        %v4012 = vpop.f32.mrf.mxu0
        %v4013 = vadd.f32 %v3798, %v4012
        %4014 = vmatmul.bf16.gmra.mxu0 %v772
        %v4015 = vpop.f32.mrf.mxu0
        %v4016 = vadd.f32 %v3801, %v4015
        %v4017 = vpop.f32.mrf.mxu0
        %v4018 = vadd.f32 %v3803, %v4017
        %4019 = vmatmul.bf16.gmra.mxu0 %v773
        %v4020 = vpop.f32.mrf.mxu0
        %v4021 = vadd.f32 %v3806, %v4020
        %v4022 = vpop.f32.mrf.mxu0
        %v4023 = vadd.f32 %v3808, %v4022
        %4024 = vmatmul.bf16.gmra.mxu0 %v774
        %v4025 = vpop.f32.mrf.mxu0
        %v4026 = vadd.f32 %v3811, %v4025
        %v4027 = vpop.f32.mrf.mxu0
        %v4028 = vadd.f32 %v3813, %v4027
        %4029 = vdwg.mxu0
        %4030 = vmatpush.bf16.msra.mxu0 %v3947
        %4031 = vmatpush.bf16.msra.mxu0 %v3944
        %4032 = vmatpush.bf16.msra.mxu0 %v3941
        %4033 = vmatpush.bf16.msra.mxu0 %v3938
        %4034 = vmatpush.bf16.msra.mxu0 %v3935
        %4035 = vmatpush.bf16.msra.mxu0 %v3932
        %4036 = vmatpush.bf16.msra.mxu0 %v3929
        %4037 = vmatpush.bf16.msra.mxu0 %v3926
        %4038 = vmatmul.bf16.gmra.mxu0 %v771
        %v4039 = vpop.f32.mrf.mxu0
        %v4040 = vadd.f32 %v3825, %v4039
        %v4041 = vpop.f32.mrf.mxu0
        %v4042 = vadd.f32 %v3827, %v4041
        %4043 = vmatmul.bf16.gmra.mxu0 %v772
        %v4044 = vpop.f32.mrf.mxu0
        %v4045 = vadd.f32 %v3830, %v4044
        %v4046 = vpop.f32.mrf.mxu0
        %v4047 = vadd.f32 %v3832, %v4046
        %4048 = vmatmul.bf16.gmra.mxu0 %v773
        %v4049 = vpop.f32.mrf.mxu0
        %v4050 = vadd.f32 %v3835, %v4049
        %v4051 = vpop.f32.mrf.mxu0
        %v4052 = vadd.f32 %v3837, %v4051
        %4053 = vmatmul.bf16.gmra.mxu0 %v774
        %v4054 = vpop.f32.mrf.mxu0
        %v4055 = vadd.f32 %v3840, %v4054
        %v4056 = vpop.f32.mrf.mxu0
        %v4057 = vadd.f32 %v3842, %v4056
        %4058 = vdwg.mxu0
        %v4059 = vsel %vm3436, 0.0, %v3999
        %v4060 = vsel %vm3437, 0.0, %v3982
        %v4061 = vsel %vm3438, 0.0, %v3984
        %v4062 = vsel %vm3439, 0.0, %v3987
        %v4063 = vsel %vm3440, 0.0, %v3989
        %v4064 = vsel %vm3441, 0.0, %v3992
        %v4065 = vsel %vm3442, 0.0, %v3994
        %v4066 = vsel %vm3443, 0.0, %v3997
        %v4067 = vsel %vm3468, 0.0, %v4042
        %v4068 = vsel %vm3469, 0.0, %v4045
        %v4069 = vsel %vm3470, 0.0, %v4047
        %v4070 = vsel %vm3471, 0.0, %v4050
        %v4071 = vsel %vm3472, 0.0, %v4052
        %v4072 = vsel %vm3473, 0.0, %v4055
        %v4073 = vsel %vm3474, 0.0, %v4057
        %v4074 = vsel %vm3475, 0.0, %v4040
        %v4075 = vadd.f32 %v4011, %v4059
        %v4076 = vadd.f32 %v4013, %v4060
        %v4077 = vadd.f32 %v4016, %v4061
        %v4078 = vadd.f32 %v4018, %v4062
        %v4079 = vadd.f32 %v4021, %v4063
        %v4080 = vadd.f32 %v4023, %v4064
        %v4081 = vadd.f32 %v4026, %v4065
        %v4082 = vadd.f32 %v4028, %v4066
        %v4083 = vadd.f32 %v4075, %v4067
        %v4084 = vadd.f32 %v4076, %v4068
        %v4085 = vadd.f32 %v4077, %v4069
        %v4086 = vadd.f32 %v4078, %v4070
        %v4087 = vadd.f32 %v4079, %v4071
        %v4088 = vadd.f32 %v4080, %v4072
        %v4089 = vadd.f32 %v4081, %v4073
        %v4090 = vadd.f32 %v4082, %v4074
        %v4092 = vperm.slane %v2559, 0
        %v4094 = vadd.f32 %v4083, %v4092
        %v4095 = vadd.f32 %v4084, %v4092
        %v4096 = vadd.f32 %v4085, %v4092
        %v4097 = vadd.f32 %v4086, %v4092
        %v4098 = vadd.f32 %v4087, %v4092
        %v4099 = vadd.f32 %v4088, %v4092
        %v4100 = vadd.f32 %v4089, %v4092
        %v4101 = vadd.f32 %v4090, %v4092
        %v4102 = vtanh.pop %v4094
        %v4103 = vtanh.pop %v4095
        %v4104 = vtanh.pop %v4096
        %v4105 = vtanh.pop %v4097
        %v4106 = vtanh.pop %v4098
        %v4107 = vtanh.pop %v4099
        %v4108 = vtanh.pop %v4100
        %v4109 = vtanh.pop %v4101
        %v4110 = vsub.f32 %v4102, %v3609
        %v4111 = vsub.f32 %v4103, %v3610
        %v4112 = vsub.f32 %v4104, %v3611
        %v4113 = vsub.f32 %v4105, %v3612
        %v4114 = vsub.f32 %v4106, %v3613
        %v4115 = vsub.f32 %v4107, %v3614
        %v4116 = vsub.f32 %v4108, %v3615
        %v4117 = vsub.f32 %v4109, %v3616
        %v4118 = vmul.f32 %v3569, %v4110
        %v4119 = vmul.f32 %v3570, %v4111
        %v4120 = vmul.f32 %v3571, %v4112
        %v4121 = vmul.f32 %v3572, %v4113
        %v4122 = vmul.f32 %v3573, %v4114
        %v4123 = vmul.f32 %v3574, %v4115
        %v4124 = vmul.f32 %v3575, %v4116
        %v4125 = vmul.f32 %v3576, %v4117
        %v4126 = vadd.f32 %v3609, %v4118
        %v4127 = vadd.f32 %v3610, %v4119
        %v4128 = vadd.f32 %v3611, %v4120
        %v4129 = vadd.f32 %v3612, %v4121
        %v4130 = vadd.f32 %v3613, %v4122
        %v4131 = vadd.f32 %v3614, %v4123
        %v4132 = vadd.f32 %v3615, %v4124
        %v4133 = vadd.f32 %v3616, %v4125
        %v4134 = vpack.c.bf16 %v4126, %v4126
        %v4135 = vpack.c.bf16 %v4127, %v4127
        %v4136 = vpack.c.bf16 %v4128, %v4128
        %v4137 = vpack.c.bf16 %v4129, %v4129
        %v4138 = vpack.c.bf16 %v4130, %v4130
        %v4139 = vpack.c.bf16 %v4131, %v4131
        %v4140 = vpack.c.bf16 %v4132, %v4132
        %v4141 = vpack.c.bf16 %v4133, %v4133
        %4142 = vst [vmem:[%s516] sm:$0xf] %v4134
        %4143 = vst [vmem:[%s516 + $0x4] sm:$0xf] %v4135
        %4144 = vst [vmem:[%s516 + $0x8] sm:$0xf] %v4136
        %4145 = vst [vmem:[%s516 + $0xc] sm:$0xf] %v4137
        %4146 = vst [vmem:[%s516 + $0x10] sm:$0xf] %v4138
        %4147 = vst [vmem:[%s516 + $0x14] sm:$0xf] %v4139
        %4148 = vst [vmem:[%s516 + $0x18] sm:$0xf] %v4140
        %4149 = vst [vmem:[%s516 + $0x1c] sm:$0xf] %v4141
        %p4150 = scmp.lt.s32.totalorder %s26, 1
        %s4151 = scalar_select %p4150, %s26, 1
        %s4152 = smul.addr %s4151, 8
        %s4153 = smul.addr %s4152, 4
        %s4154 = scalar_lea.vmem %s12, %s4153
        // Predicated region
        $region89: #{sepconv_gru_forward.1} parent=67 // pred_check
          %p4155 = pneg %p306
        $region90: #{sepconv_gru_forward.1} parent=67 // pred_check_branch
          %4157 = sbr.rel (%p4155) target = $region92
        $region91: #{sepconv_gru_forward.1} parent=67 // pred_region
          _
        $region92: #{sepconv_gru_forward.1} parent=67 // pred_fallthru
          _
      $region68: #{sepconv_gru_forward.1} parent=5 // pred_fallthru
        _
      %p4158 = scmp.le.s32.totalorder 2, %s21
      // Predicated region
      $region93: #{sepconv_gru_forward.1} parent=5 // pred_check
        %p4159 = pneg %p4158
      $region94: #{sepconv_gru_forward.1} parent=5 // pred_check_branch
        %4161 = sbr.rel (%p4159) target = $region96
      $region95: #{sepconv_gru_forward.1} parent=5 // pred_region
        %s4162 = ssub.s32 %s21, 2
        // Predicated region
        $region97: #{sepconv_gru_forward.1} parent=95 // pred_check
          %p4163 = pneg %p312
        $region98: #{sepconv_gru_forward.1} parent=95 // pred_check_branch
          %4165 = sbr.rel (%p4163) target = $region100
        $region99: #{sepconv_gru_forward.1} parent=95 // pred_region
          %p4166 = scmp.lt.s32.totalorder %s27, 1
          %s4167 = scalar_select %p4166, %s27, 1
          %s4168 = smul.addr %s4167, 8
          %s4169 = smul.addr %s4168, 4
          %s4170 = scalar_lea.vmem %s12, %s4169
        $region100: #{sepconv_gru_forward.1} parent=95 // pred_fallthru
          _
      $region96: #{sepconv_gru_forward.1} parent=5 // pred_fallthru
        _
    $region6: #{sepconv_gru_forward.1} parent=1 // loop_footer
      %s25 = sadd.s32 1, %s21
    $region7: #{sepconv_gru_forward.1} parent=1 // loop_footer_branch
      %20 = sbr.rel target = $region3
    $region8: #{sepconv_gru_forward.1} parent=1 // loop_exit
      _
    %4171 = vsyncpa [#allocation3], 1
    %s4172 = scalar_lea.sflag [#allocation3], 1
    %4173 = vsyncpa %s4172, 1
    %4174 = vsyncpa [#allocation5], 1
    %4175 = vsyncpa [#allocation8], 1

</llo_original>
